<compile_context>
chip_gen: v5e
topology: v5e:2x2
jax: 0.10.0
libtpu: 0.0.40
codegen_flags: <defaults>
</compile_context>

<pallas_src>
import functools

import numpy as np
import jax
import jax.numpy as jnp
from jax.experimental import pallas as pl
from jax.experimental.pallas import tpu as pltpu


# Matmul compute dtype: jnp.float32 (exact semantics) or jnp.bfloat16 (MXU-native).
MATMUL_DTYPE = jnp.float32

_LN_EPS = 1e-5

# Order in which packed parameters are passed to the kernel.
_PARAM_ORDER = (
    "wq", "bq", "wk", "bk", "wv", "bv", "wo", "bo",
    "ln1w", "ln1b", "w1", "b1", "w2", "b2", "ln2w", "ln2b",
    "lnfw", "lnfb", "wf", "bf",
)


# ----------------------------- elementwise helpers ----------------------------

def _layernorm(x, w, b, eps=_LN_EPS):
    mu = jnp.mean(x, axis=-1, keepdims=True)
    var = jnp.mean((x - mu) ** 2, axis=-1, keepdims=True)
    return (x - mu) * jax.lax.rsqrt(var + eps) * w + b


def _erf(x):
    # Abramowitz & Stegun 7.1.26 rational approximation of erf (f32-accurate).
    # Kept instead of lax.erf so the kernel lowers on every Mosaic version;
    # exp goes to the EUP, the polynomial is a handful of VPU FMAs.
    a1, a2, a3 = 0.254829592, -0.284496736, 1.421413741
    a4, a5, p = -1.453152027, 1.061405429, 0.3275911
    sgn = jnp.where(x >= 0.0, 1.0, -1.0)
    ax = jnp.abs(x)
    t = 1.0 / (1.0 + p * ax)
    poly = ((((a5 * t + a4) * t + a3) * t + a2) * t + a1) * t
    return sgn * (1.0 - poly * jnp.exp(-ax * ax))


def _gelu_exact(x):
    # nn.GELU() default (erf-based) semantics.
    return 0.5 * x * (1.0 + _erf(x * 0.7071067811865476))


# --------------------------- fully fused forward kernel -----------------------

def _transformer_kernel(x_ref, pos_ref,
                        wq_ref, bq_ref, wk_ref, bk_ref, wv_ref, bv_ref,
                        wo_ref, bo_ref, ln1w_ref, ln1b_ref,
                        w1_ref, b1_ref, w2_ref, b2_ref, ln2w_ref, ln2b_ref,
                        lnfw_ref, lnfb_ref, wf_ref, bf_ref,
                        o_ref):
    B, S, D = x_ref.shape
    L, H, _, hd = wq_ref.shape
    BS, HB = B * S, H * B
    dt = MATMUL_DTYPE
    scale = 1.0 / float(np.sqrt(hd))        # PyTorch MHA scales q by 1/sqrt(head_dim)

    # Positional-encoding add fused in; residual stream kept as one lane-dense
    # (B*S, D) slab so every token-parallel matmul sees the whole batch at once.
    h0 = (x_ref[...] + pos_ref[...]).reshape(BS, D)

    # Causal additive mask, built ONCE per invocation (hoisted out of the layer
    # loop); large finite negative instead of -inf so exp() can never see NaN.
    row = jax.lax.broadcasted_iota(jnp.int32, (S, S), 0)
    col = jax.lax.broadcasted_iota(jnp.int32, (S, S), 1)
    mask = jnp.where(col > row, jnp.float32(-1e30), jnp.float32(0.0))

    def rep_b(w):
        # (H, a, b) -> (H*B, a, b): replicate a per-head tensor across the batch
        # so it can be the rhs of a single (H*B)-batched dot_general.
        return jnp.broadcast_to(w[:, None], (H, B) + w.shape[1:]).reshape(
            (HB,) + w.shape[1:])

    # Batched matmul over a leading batch axis: (N, m, k) x (N, k, n) -> (N, m, n).
    bmm = functools.partial(
        jax.lax.dot_general,
        dimension_numbers=(((2,), (1,)), ((0,), (0,))),
        preferred_element_type=jnp.float32)

    def layer(l, h):
        # ------------------ causal multi-head self-attention ------------------
        # Tokens replicated per head -> one batched dot per projection; the
        # head-split (lane-aligned) weights avoid any qkv lane slicing, head
        # transpose or concat inside the kernel.
        xb = jnp.broadcast_to(h.reshape(B, S, D)[None].astype(dt),
                              (H, B, S, D)).reshape(HB, S, D)
        q = bmm(xb, rep_b(wq_ref[l].astype(dt))) + rep_b(bq_ref[l])   # (HB,S,hd)
        k = bmm(xb, rep_b(wk_ref[l].astype(dt))) + rep_b(bk_ref[l])
        v = bmm(xb, rep_b(wv_ref[l].astype(dt))) + rep_b(bv_ref[l])

        s = jax.lax.dot_general(q * scale, k, (((2,), (2,)), ((0,), (0,))),
                                preferred_element_type=jnp.float32)   # (HB,S,S)
        s = s + mask
        s = s - jnp.max(s, axis=-1, keepdims=True)
        e = jnp.exp(s)
        p = e * pl.reciprocal(jnp.sum(e, axis=-1, keepdims=True), approx=True)

        o = bmm(p.astype(dt), v.astype(dt))                           # (HB,S,hd)
        part = bmm(o.astype(dt), rep_b(wo_ref[l].astype(dt)))         # (HB,S,D)
        attn = part.reshape(H, BS, D).sum(axis=0) + bo_ref[l]         # (BS,D)

        a1 = _layernorm(h + attn, ln1w_ref[l], ln1b_ref[l])
        # TODO(synk): nn.Dropout is identity in eval/inference; training-mode
        # RNG dropout is not implemented.

        # --------------- feed-forward: Linear -> GELU -> Linear ---------------
        h1 = jnp.dot(a1.astype(dt), w1_ref[l].astype(dt),
                     preferred_element_type=jnp.float32) + b1_ref[l]
        h1 = _gelu_exact(h1)
        h2 = jnp.dot(h1.astype(dt), w2_ref[l].astype(dt),
                     preferred_element_type=jnp.float32) + b2_ref[l]
        return _layernorm(a1 + h2, ln2w_ref[l], ln2b_ref[l])

    hL = jax.lax.fori_loop(0, L, layer, h0, unroll=True)

    # ---------- final LayerNorm + Linear, only the last token row ----------
    x_last = hL.reshape(B, S, D)[:, S - 1, :]                         # (B, D)
    xn = _layernorm(x_last, lnfw_ref[...], lnfb_ref[...])
    o_ref[...] = (jnp.dot(xn.astype(dt), wf_ref[...].astype(dt),
                          preferred_element_type=jnp.float32)
                  + bf_ref[...]).astype(o_ref.dtype)


# ---------------------------------- wrapper -----------------------------------

def position_encoding(seq_len, dim_model):
    # mirrors TransformerWithDropout._position_encoding exactly (numpy f64 -> f32)
    pos = np.arange(seq_len)[:, np.newaxis]
    i = np.arange(dim_model)[np.newaxis, :]
    angle_rates = 1.0 / np.power(10000, 2 * (i // 2) / dim_model)
    angle_rads = pos * angle_rates
    angle_rads[:, 0::2] = np.sin(angle_rads[:, 0::2])
    angle_rads[:, 1::2] = np.cos(angle_rads[:, 1::2])
    return jnp.asarray(angle_rads[np.newaxis, ...], dtype=jnp.float32)   # (1, S, D)


@jax.jit
def transformer_forward(x, packed):
    """Full TransformerWithDropout forward in ONE fused Pallas call -> (B, T)."""
    B, S, D = x.shape
    T = packed["wf"].shape[-1]
    pos = position_encoding(S, D)
    vmem = pl.BlockSpec(memory_space=pltpu.MemorySpace.VMEM)
    n_in = 2 + len(_PARAM_ORDER)
    return pl.pallas_call(
        _transformer_kernel,
        out_shape=jax.ShapeDtypeStruct((B, T), jnp.float32),
        in_specs=[vmem] * n_in,
        out_specs=vmem,
        # No grid: the whole (tiny) problem runs in a single invocation, so all
        # launch / per-grid-step overhead and HBM activation traffic are gone.
    )(x, pos, *[packed[k] for k in _PARAM_ORDER])


# ------------------------ parameters & host-side packing ----------------------

def init_params(key, num_layers, D, T):
    """Parameters in the natural (PyTorch-like) layout."""
    F = 4 * D
    layers = []
    for _ in range(num_layers):
        key, k0, k1, k2, k3 = jax.random.split(key, 5)
        layers.append({
            "w_qkv": 0.02 * jax.random.normal(k0, (D, 3 * D), jnp.float32),
            "b_qkv": jnp.zeros((1, 3 * D), jnp.float32),
            "w_o": 0.02 * jax.random.normal(k1, (D, D), jnp.float32),
            "b_o": jnp.zeros((1, D), jnp.float32),
            "ln1_w": jnp.ones((1, D), jnp.float32),
            "ln1_b": jnp.zeros((1, D), jnp.float32),
            "w1": 0.02 * jax.random.normal(k2, (D, F), jnp.float32),
            "b1": jnp.zeros((1, F), jnp.float32),
            "w2": 0.02 * jax.random.normal(k3, (F, D), jnp.float32),
            "b2": jnp.zeros((1, D), jnp.float32),
            "ln2_w": jnp.ones((1, D), jnp.float32),
            "ln2_b": jnp.zeros((1, D), jnp.float32),
        })
    key, kf = jax.random.split(key)
    final = {
        "ln_w": jnp.ones((1, D), jnp.float32),
        "ln_b": jnp.zeros((1, D), jnp.float32),
        "w": 0.02 * jax.random.normal(kf, (D, T), jnp.float32),
        "b": jnp.zeros((1, T), jnp.float32),
    }
    return {"layers": layers, "final": final}


def pack_params(params, n_heads):
    """Stack per-layer weights on a leading L axis and split attention weights
    per head (lane-aligned) for the fused kernel.  Runs once, host-side."""
    layers = params["layers"]
    D = layers[0]["w_qkv"].shape[0]
    hd = D // n_heads

    def heads_w(w):   # (D, D) -> (H, D, hd)
        return jnp.transpose(w.reshape(D, n_heads, hd), (1, 0, 2))

    def heads_b(b):   # (1, D) -> (H, 1, hd)
        return jnp.transpose(b.reshape(1, n_heads, hd), (1, 0, 2))

    def stack(fn):
        return jnp.stack([fn(lp) for lp in layers], axis=0)

    fin = params["final"]
    return {
        "wq": stack(lambda p: heads_w(p["w_qkv"][:, :D])),
        "bq": stack(lambda p: heads_b(p["b_qkv"][:, :D])),
        "wk": stack(lambda p: heads_w(p["w_qkv"][:, D:2 * D])),
        "bk": stack(lambda p: heads_b(p["b_qkv"][:, D:2 * D])),
        "wv": stack(lambda p: heads_w(p["w_qkv"][:, 2 * D:])),
        "bv": stack(lambda p: heads_b(p["b_qkv"][:, 2 * D:])),
        "wo": stack(lambda p: p["w_o"].reshape(n_heads, hd, D)),
        "bo": stack(lambda p: p["b_o"]),
        "ln1w": stack(lambda p: p["ln1_w"]),
        "ln1b": stack(lambda p: p["ln1_b"]),
        "w1": stack(lambda p: p["w1"]),
        "b1": stack(lambda p: p["b1"]),
        "w2": stack(lambda p: p["w2"]),
        "b2": stack(lambda p: p["b2"]),
        "ln2w": stack(lambda p: p["ln2_w"]),
        "ln2b": stack(lambda p: p["ln2_b"]),
        "lnfw": fin["ln_w"], "lnfb": fin["ln_b"],
        "wf": fin["w"], "bf": fin["b"],
    }


# ------------------------- pure-JAX reference (self-check) --------------------

def forward_reference(x, params, n_heads):
    B, S, D = x.shape
    hd = D // n_heads
    scale = 1.0 / float(np.sqrt(hd))
    h = x + position_encoding(S, D)
    mask = jnp.where(jnp.arange(S)[None, :] > jnp.arange(S)[:, None],
                     -jnp.inf, 0.0).astype(jnp.float32)
    for lp in params["layers"]:
        qkv = h @ lp["w_qkv"] + lp["b_qkv"]
        q, k, v = qkv[..., :D], qkv[..., D:2 * D], qkv[..., 2 * D:]

        def split(t):
            return t.reshape(B, S, n_heads, hd).transpose(0, 2, 1, 3)

        qh, kh, vh = split(q) * scale, split(k), split(v)
        sc = jnp.einsum("bhqd,bhkd->bhqk", qh, kh) + mask
        p = jax.nn.softmax(sc, axis=-1)
        oh = jnp.einsum("bhqk,bhkd->bhqd", p, vh)
        attn = oh.transpose(0, 2, 1, 3).reshape(B, S, D) @ lp["w_o"] + lp["b_o"]
        a1 = _layernorm(h + attn, lp["ln1_w"], lp["ln1_b"])
        h1 = jax.nn.gelu(a1 @ lp["w1"] + lp["b1"], approximate=False)
        h = _layernorm(a1 + (h1 @ lp["w2"] + lp["b2"]), lp["ln2_w"], lp["ln2_b"])
    f = params["final"]
    return _layernorm(h[:, -1, :], f["ln_w"], f["ln_b"]) @ f["w"] + f["b"]


# ------------------------------------ main -------------------------------------

if __name__ == "__main__":
    # TransformerWithDropout(num_layers=2, dim_model=32, num_heads=4, num_tokens=16)
    B, S, D, H, L, T = 2, 8, 32, 4, 2, 16
    key = jax.random.PRNGKey(0)
    kx, kp = jax.random.split(key)
    x = jax.random.normal(kx, (B, S, D), jnp.float32)
    params = init_params(kp, L, D, T)
    packed = pack_params(params, H)

    out = transformer_forward(x, packed)
    out = jax.block_until_ready(out)

    assert out.shape == (B, T), out.shape
    assert bool(jnp.all(jnp.isfinite(out)))

    # Self-check against a pure-JAX implementation of the same PyTorch forward.
    ref = forward_reference(x, params, H)
    np.testing.assert_allclose(np.asarray(out), np.asarray(ref),
                               rtol=1e-2, atol=1e-2)

    print("KERNEL_OK")
</pallas_src>

<mosaic_0001>
module attributes {stable_mosaic.version = 11 : i64} {
  func.func @_transformer_kernel(%arg0: memref<2x8x32xf32, #tpu.memory_space<vmem>>, %arg1: memref<1x8x32xf32, #tpu.memory_space<vmem>>, %arg2: memref<2x4x32x8xf32, #tpu.memory_space<vmem>>, %arg3: memref<2x4x1x8xf32, #tpu.memory_space<vmem>>, %arg4: memref<2x4x32x8xf32, #tpu.memory_space<vmem>>, %arg5: memref<2x4x1x8xf32, #tpu.memory_space<vmem>>, %arg6: memref<2x4x32x8xf32, #tpu.memory_space<vmem>>, %arg7: memref<2x4x1x8xf32, #tpu.memory_space<vmem>>, %arg8: memref<2x4x8x32xf32, #tpu.memory_space<vmem>>, %arg9: memref<2x1x32xf32, #tpu.memory_space<vmem>>, %arg10: memref<2x1x32xf32, #tpu.memory_space<vmem>>, %arg11: memref<2x1x32xf32, #tpu.memory_space<vmem>>, %arg12: memref<2x32x128xf32, #tpu.memory_space<vmem>>, %arg13: memref<2x1x128xf32, #tpu.memory_space<vmem>>, %arg14: memref<2x128x32xf32, #tpu.memory_space<vmem>>, %arg15: memref<2x1x32xf32, #tpu.memory_space<vmem>>, %arg16: memref<2x1x32xf32, #tpu.memory_space<vmem>>, %arg17: memref<2x1x32xf32, #tpu.memory_space<vmem>>, %arg18: memref<1x32xf32, #tpu.memory_space<vmem>>, %arg19: memref<1x32xf32, #tpu.memory_space<vmem>>, %arg20: memref<32x16xf32, #tpu.memory_space<vmem>>, %arg21: memref<1x16xf32, #tpu.memory_space<vmem>>, %arg22: memref<2x16xf32, #tpu.memory_space<vmem>>) attributes {dimension_semantics = [], scalar_prefetch = 0 : i64, scratch_operands = 0 : i64, tpu.core_type = #tpu.core_type<tc>} {
    %c0 = arith.constant 0 : index
    %c0_0 = arith.constant 0 : index
    %c0_1 = arith.constant 0 : index
    %0 = vector.load %arg0[%c0, %c0_0, %c0_1] : memref<2x8x32xf32, #tpu.memory_space<vmem>>, vector<2x8x32xf32>
    %c0_2 = arith.constant 0 : index
    %c0_3 = arith.constant 0 : index
    %c0_4 = arith.constant 0 : index
    %1 = vector.load %arg1[%c0_2, %c0_3, %c0_4] : memref<1x8x32xf32, #tpu.memory_space<vmem>>, vector<1x8x32xf32>
    %2 = vector.broadcast %1 : vector<1x8x32xf32> to vector<2x8x32xf32>
    %3 = arith.addf %0, %2 : vector<2x8x32xf32>
    %4 = vector.shape_cast %3 : vector<2x8x32xf32> to vector<16x32xf32>
    %5 = tpu.iota {dimensions = array<i32: 0>} : vector<8x8xi32>
    %6 = tpu.iota {dimensions = array<i32: 1>} : vector<8x8xi32>
    %7 = arith.cmpi sgt, %6, %5 : vector<8x8xi32>
    %cst = arith.constant -1.000000e+30 : f32
    %cst_5 = arith.constant 0.000000e+00 : f32
    %8 = vector.broadcast %cst : f32 to vector<8x8xf32>
    %9 = vector.broadcast %cst_5 : f32 to vector<8x8xf32>
    %10 = arith.select %7, %8, %9 : vector<8x8xi1>, vector<8x8xf32>
    %c0_i32 = arith.constant 0 : i32
    %11 = vector.shape_cast %4 : vector<16x32xf32> to vector<2x8x32xf32>
    %12 = vector.shape_cast %11 : vector<2x8x32xf32> to vector<1x2x8x32xf32>
    %13 = vector.shape_cast %12 : vector<1x2x8x32xf32> to vector<1x2x8x32xf32>
    %14 = vector.broadcast %13 : vector<1x2x8x32xf32> to vector<4x2x8x32xf32>
    %15 = vector.shape_cast %14 : vector<4x2x8x32xf32> to vector<8x8x32xf32>
    %16 = arith.index_cast %c0_i32 : i32 to index
    %c0_6 = arith.constant 0 : index
    %c0_7 = arith.constant 0 : index
    %c0_8 = arith.constant 0 : index
    %17 = vector.load %arg2[%16, %c0_6, %c0_7, %c0_8] : memref<2x4x32x8xf32, #tpu.memory_space<vmem>>, vector<1x4x32x8xf32>
    %18 = vector.shape_cast %17 : vector<1x4x32x8xf32> to vector<4x32x8xf32>
    %19 = vector.shape_cast %18 : vector<4x32x8xf32> to vector<4x1x32x8xf32>
    %20 = vector.shape_cast %19 : vector<4x1x32x8xf32> to vector<4x1x32x8xf32>
    %21 = vector.broadcast %20 : vector<4x1x32x8xf32> to vector<4x2x32x8xf32>
    %22 = vector.shape_cast %21 : vector<4x2x32x8xf32> to vector<8x32x8xf32>
    %cst_9 = arith.constant dense<0.000000e+00> : vector<8x8x8xf32>
    %23 = tpu.matmul %15, %22, %cst_9 {dimension_numbers = #tpu.dot_dimension_numbers<[2], [1], [1], [2], [0, 0, 0, 1, 1, 2], [0], [0]>} : vector<8x8x32xf32>, vector<8x32x8xf32>, vector<8x8x8xf32> -> vector<8x8x8xf32>
    %24 = arith.index_cast %c0_i32 : i32 to index
    %c0_10 = arith.constant 0 : index
    %c0_11 = arith.constant 0 : index
    %c0_12 = arith.constant 0 : index
    %25 = vector.load %arg3[%24, %c0_10, %c0_11, %c0_12] : memref<2x4x1x8xf32, #tpu.memory_space<vmem>>, vector<1x4x1x8xf32>
    %26 = vector.shape_cast %25 : vector<1x4x1x8xf32> to vector<4x1x8xf32>
    %27 = vector.shape_cast %26 : vector<4x1x8xf32> to vector<4x1x1x8xf32>
    %28 = vector.shape_cast %27 : vector<4x1x1x8xf32> to vector<4x1x1x8xf32>
    %29 = vector.broadcast %28 : vector<4x1x1x8xf32> to vector<4x2x1x8xf32>
    %30 = vector.shape_cast %29 : vector<4x2x1x8xf32> to vector<8x1x8xf32>
    %31 = vector.broadcast %30 : vector<8x1x8xf32> to vector<8x8x8xf32>
    %32 = arith.addf %23, %31 : vector<8x8x8xf32>
    %33 = arith.index_cast %c0_i32 : i32 to index
    %c0_13 = arith.constant 0 : index
    %c0_14 = arith.constant 0 : index
    %c0_15 = arith.constant 0 : index
    %34 = vector.load %arg4[%33, %c0_13, %c0_14, %c0_15] : memref<2x4x32x8xf32, #tpu.memory_space<vmem>>, vector<1x4x32x8xf32>
    %35 = vector.shape_cast %34 : vector<1x4x32x8xf32> to vector<4x32x8xf32>
    %36 = vector.shape_cast %35 : vector<4x32x8xf32> to vector<4x1x32x8xf32>
    %37 = vector.shape_cast %36 : vector<4x1x32x8xf32> to vector<4x1x32x8xf32>
    %38 = vector.broadcast %37 : vector<4x1x32x8xf32> to vector<4x2x32x8xf32>
    %39 = vector.shape_cast %38 : vector<4x2x32x8xf32> to vector<8x32x8xf32>
    %cst_16 = arith.constant dense<0.000000e+00> : vector<8x8x8xf32>
    %40 = tpu.matmul %15, %39, %cst_16 {dimension_numbers = #tpu.dot_dimension_numbers<[2], [1], [1], [2], [0, 0, 0, 1, 1, 2], [0], [0]>} : vector<8x8x32xf32>, vector<8x32x8xf32>, vector<8x8x8xf32> -> vector<8x8x8xf32>
    %41 = arith.index_cast %c0_i32 : i32 to index
    %c0_17 = arith.constant 0 : index
    %c0_18 = arith.constant 0 : index
    %c0_19 = arith.constant 0 : index
    %42 = vector.load %arg5[%41, %c0_17, %c0_18, %c0_19] : memref<2x4x1x8xf32, #tpu.memory_space<vmem>>, vector<1x4x1x8xf32>
    %43 = vector.shape_cast %42 : vector<1x4x1x8xf32> to vector<4x1x8xf32>
    %44 = vector.shape_cast %43 : vector<4x1x8xf32> to vector<4x1x1x8xf32>
    %45 = vector.shape_cast %44 : vector<4x1x1x8xf32> to vector<4x1x1x8xf32>
    %46 = vector.broadcast %45 : vector<4x1x1x8xf32> to vector<4x2x1x8xf32>
    %47 = vector.shape_cast %46 : vector<4x2x1x8xf32> to vector<8x1x8xf32>
    %48 = vector.broadcast %47 : vector<8x1x8xf32> to vector<8x8x8xf32>
    %49 = arith.addf %40, %48 : vector<8x8x8xf32>
    %50 = arith.index_cast %c0_i32 : i32 to index
    %c0_20 = arith.constant 0 : index
    %c0_21 = arith.constant 0 : index
    %c0_22 = arith.constant 0 : index
    %51 = vector.load %arg6[%50, %c0_20, %c0_21, %c0_22] : memref<2x4x32x8xf32, #tpu.memory_space<vmem>>, vector<1x4x32x8xf32>
    %52 = vector.shape_cast %51 : vector<1x4x32x8xf32> to vector<4x32x8xf32>
    %53 = vector.shape_cast %52 : vector<4x32x8xf32> to vector<4x1x32x8xf32>
    %54 = vector.shape_cast %53 : vector<4x1x32x8xf32> to vector<4x1x32x8xf32>
    %55 = vector.broadcast %54 : vector<4x1x32x8xf32> to vector<4x2x32x8xf32>
    %56 = vector.shape_cast %55 : vector<4x2x32x8xf32> to vector<8x32x8xf32>
    %cst_23 = arith.constant dense<0.000000e+00> : vector<8x8x8xf32>
    %57 = tpu.matmul %15, %56, %cst_23 {dimension_numbers = #tpu.dot_dimension_numbers<[2], [1], [1], [2], [0, 0, 0, 1, 1, 2], [0], [0]>} : vector<8x8x32xf32>, vector<8x32x8xf32>, vector<8x8x8xf32> -> vector<8x8x8xf32>
    %58 = arith.index_cast %c0_i32 : i32 to index
    %c0_24 = arith.constant 0 : index
    %c0_25 = arith.constant 0 : index
    %c0_26 = arith.constant 0 : index
    %59 = vector.load %arg7[%58, %c0_24, %c0_25, %c0_26] : memref<2x4x1x8xf32, #tpu.memory_space<vmem>>, vector<1x4x1x8xf32>
    %60 = vector.shape_cast %59 : vector<1x4x1x8xf32> to vector<4x1x8xf32>
    %61 = vector.shape_cast %60 : vector<4x1x8xf32> to vector<4x1x1x8xf32>
    %62 = vector.shape_cast %61 : vector<4x1x1x8xf32> to vector<4x1x1x8xf32>
    %63 = vector.broadcast %62 : vector<4x1x1x8xf32> to vector<4x2x1x8xf32>
    %64 = vector.shape_cast %63 : vector<4x2x1x8xf32> to vector<8x1x8xf32>
    %65 = vector.broadcast %64 : vector<8x1x8xf32> to vector<8x8x8xf32>
    %66 = arith.addf %57, %65 : vector<8x8x8xf32>
    %cst_27 = arith.constant 0.353553385 : f32
    %67 = vector.broadcast %cst_27 : f32 to vector<8x8x8xf32>
    %68 = arith.mulf %32, %67 : vector<8x8x8xf32>
    %cst_28 = arith.constant dense<0.000000e+00> : vector<8x8x8xf32>
    %69 = tpu.matmul %68, %49, %cst_28 {dimension_numbers = #tpu.dot_dimension_numbers<[2], [2], [1], [1], [0, 0, 0, 1, 1, 1], [0], [0]>} : vector<8x8x8xf32>, vector<8x8x8xf32>, vector<8x8x8xf32> -> vector<8x8x8xf32>
    %70 = vector.shape_cast %10 : vector<8x8xf32> to vector<1x8x8xf32>
    %71 = vector.broadcast %70 : vector<1x8x8xf32> to vector<8x8x8xf32>
    %72 = arith.addf %69, %71 : vector<8x8x8xf32>
    %cst_29 = arith.constant dense<0xFF800000> : vector<8x8xf32>
    %73 = vector.multi_reduction <maximumf>, %72, %cst_29 [2] : vector<8x8x8xf32> to vector<8x8xf32>
    %74 = vector.shape_cast %73 : vector<8x8xf32> to vector<8x8x1xf32>
    %75 = vector.broadcast %74 : vector<8x8x1xf32> to vector<8x8x8xf32>
    %76 = arith.subf %72, %75 : vector<8x8x8xf32>
    %77 = math.exp %76 : vector<8x8x8xf32>
    %cst_30 = arith.constant dense<0.000000e+00> : vector<8x8xf32>
    %78 = vector.multi_reduction <add>, %77, %cst_30 [2] : vector<8x8x8xf32> to vector<8x8xf32>
    %79 = vector.shape_cast %78 : vector<8x8xf32> to vector<8x8x1xf32>
    %80 = tpu.reciprocal %79 {approx = true} : vector<8x8x1xf32> -> vector<8x8x1xf32>
    %81 = vector.broadcast %80 : vector<8x8x1xf32> to vector<8x8x8xf32>
    %82 = arith.mulf %77, %81 : vector<8x8x8xf32>
    %cst_31 = arith.constant dense<0.000000e+00> : vector<8x8x8xf32>
    %83 = tpu.matmul %82, %66, %cst_31 {dimension_numbers = #tpu.dot_dimension_numbers<[2], [1], [1], [2], [0, 0, 0, 1, 1, 2], [0], [0]>} : vector<8x8x8xf32>, vector<8x8x8xf32>, vector<8x8x8xf32> -> vector<8x8x8xf32>
    %84 = arith.index_cast %c0_i32 : i32 to index
    %c0_32 = arith.constant 0 : index
    %c0_33 = arith.constant 0 : index
    %c0_34 = arith.constant 0 : index
    %85 = vector.load %arg8[%84, %c0_32, %c0_33, %c0_34] : memref<2x4x8x32xf32, #tpu.memory_space<vmem>>, vector<1x4x8x32xf32>
    %86 = vector.shape_cast %85 : vector<1x4x8x32xf32> to vector<4x8x32xf32>
    %87 = vector.shape_cast %86 : vector<4x8x32xf32> to vector<4x1x8x32xf32>
    %88 = vector.shape_cast %87 : vector<4x1x8x32xf32> to vector<4x1x8x32xf32>
    %89 = vector.broadcast %88 : vector<4x1x8x32xf32> to vector<4x2x8x32xf32>
    %90 = vector.shape_cast %89 : vector<4x2x8x32xf32> to vector<8x8x32xf32>
    %cst_35 = arith.constant dense<0.000000e+00> : vector<8x8x32xf32>
    %91 = tpu.matmul %83, %90, %cst_35 {dimension_numbers = #tpu.dot_dimension_numbers<[2], [1], [1], [2], [0, 0, 0, 1, 1, 2], [0], [0]>} : vector<8x8x8xf32>, vector<8x8x32xf32>, vector<8x8x32xf32> -> vector<8x8x32xf32>
    %92 = vector.shape_cast %91 : vector<8x8x32xf32> to vector<4x16x32xf32>
    %cst_36 = arith.constant dense<0.000000e+00> : vector<16x32xf32>
    %93 = vector.multi_reduction <add>, %92, %cst_36 [0] : vector<4x16x32xf32> to vector<16x32xf32>
    %94 = arith.index_cast %c0_i32 : i32 to index
    %c0_37 = arith.constant 0 : index
    %c0_38 = arith.constant 0 : index
    %95 = vector.load %arg9[%94, %c0_37, %c0_38] : memref<2x1x32xf32, #tpu.memory_space<vmem>>, vector<1x1x32xf32>
    %96 = vector.shape_cast %95 : vector<1x1x32xf32> to vector<1x32xf32>
    %97 = vector.broadcast %96 : vector<1x32xf32> to vector<16x32xf32>
    %98 = arith.addf %93, %97 : vector<16x32xf32>
    %99 = arith.addf %4, %98 : vector<16x32xf32>
    %100 = arith.index_cast %c0_i32 : i32 to index
    %c0_39 = arith.constant 0 : index
    %c0_40 = arith.constant 0 : index
    %101 = vector.load %arg10[%100, %c0_39, %c0_40] : memref<2x1x32xf32, #tpu.memory_space<vmem>>, vector<1x1x32xf32>
    %102 = vector.shape_cast %101 : vector<1x1x32xf32> to vector<1x32xf32>
    %103 = arith.index_cast %c0_i32 : i32 to index
    %c0_41 = arith.constant 0 : index
    %c0_42 = arith.constant 0 : index
    %104 = vector.load %arg11[%103, %c0_41, %c0_42] : memref<2x1x32xf32, #tpu.memory_space<vmem>>, vector<1x1x32xf32>
    %105 = vector.shape_cast %104 : vector<1x1x32xf32> to vector<1x32xf32>
    %cst_43 = arith.constant dense<0.000000e+00> : vector<16xf32>
    %106 = vector.multi_reduction <add>, %99, %cst_43 [1] : vector<16x32xf32> to vector<16xf32>
    %107 = vector.shape_cast %106 : vector<16xf32> to vector<16x1xf32>
    %cst_44 = arith.constant 3.200000e+01 : f32
    %108 = vector.broadcast %cst_44 : f32 to vector<16x1xf32>
    %109 = arith.divf %107, %108 : vector<16x1xf32>
    %110 = vector.broadcast %109 : vector<16x1xf32> to vector<16x32xf32>
    %111 = arith.subf %99, %110 : vector<16x32xf32>
    %112 = arith.mulf %111, %111 : vector<16x32xf32>
    %cst_45 = arith.constant dense<0.000000e+00> : vector<16xf32>
    %113 = vector.multi_reduction <add>, %112, %cst_45 [1] : vector<16x32xf32> to vector<16xf32>
    %114 = vector.shape_cast %113 : vector<16xf32> to vector<16x1xf32>
    %cst_46 = arith.constant 3.200000e+01 : f32
    %115 = vector.broadcast %cst_46 : f32 to vector<16x1xf32>
    %116 = arith.divf %114, %115 : vector<16x1xf32>
    %117 = vector.broadcast %109 : vector<16x1xf32> to vector<16x32xf32>
    %118 = arith.subf %99, %117 : vector<16x32xf32>
    %cst_47 = arith.constant 9.99999974E-6 : f32
    %119 = vector.broadcast %cst_47 : f32 to vector<16x1xf32>
    %120 = arith.addf %116, %119 : vector<16x1xf32>
    %121 = math.rsqrt %120 : vector<16x1xf32>
    %122 = vector.broadcast %121 : vector<16x1xf32> to vector<16x32xf32>
    %123 = arith.mulf %118, %122 : vector<16x32xf32>
    %124 = vector.broadcast %102 : vector<1x32xf32> to vector<16x32xf32>
    %125 = arith.mulf %123, %124 : vector<16x32xf32>
    %126 = vector.broadcast %105 : vector<1x32xf32> to vector<16x32xf32>
    %127 = arith.addf %125, %126 : vector<16x32xf32>
    %128 = arith.index_cast %c0_i32 : i32 to index
    %c0_48 = arith.constant 0 : index
    %c0_49 = arith.constant 0 : index
    %129 = vector.load %arg12[%128, %c0_48, %c0_49] : memref<2x32x128xf32, #tpu.memory_space<vmem>>, vector<1x32x128xf32>
    %130 = vector.shape_cast %129 : vector<1x32x128xf32> to vector<32x128xf32>
    %cst_50 = arith.constant dense<0.000000e+00> : vector<16x128xf32>
    %131 = tpu.matmul %127, %130, %cst_50 {dimension_numbers = #tpu.dot_dimension_numbers<[1], [0], [0], [1], [0, 0, 1, 1], [], []>} : vector<16x32xf32>, vector<32x128xf32>, vector<16x128xf32> -> vector<16x128xf32>
    %132 = arith.index_cast %c0_i32 : i32 to index
    %c0_51 = arith.constant 0 : index
    %c0_52 = arith.constant 0 : index
    %133 = vector.load %arg13[%132, %c0_51, %c0_52] : memref<2x1x128xf32, #tpu.memory_space<vmem>>, vector<1x1x128xf32>
    %134 = vector.shape_cast %133 : vector<1x1x128xf32> to vector<1x128xf32>
    %135 = vector.broadcast %134 : vector<1x128xf32> to vector<16x128xf32>
    %136 = arith.addf %131, %135 : vector<16x128xf32>
    %cst_53 = arith.constant 5.000000e-01 : f32
    %137 = vector.broadcast %cst_53 : f32 to vector<16x128xf32>
    %138 = arith.mulf %137, %136 : vector<16x128xf32>
    %cst_54 = arith.constant 0.707106769 : f32
    %139 = vector.broadcast %cst_54 : f32 to vector<16x128xf32>
    %140 = arith.mulf %136, %139 : vector<16x128xf32>
    %cst_55 = arith.constant 0.000000e+00 : f32
    %141 = vector.broadcast %cst_55 : f32 to vector<16x128xf32>
    %142 = arith.cmpf oge, %140, %141 : vector<16x128xf32>
    %cst_56 = arith.constant 1.000000e+00 : f32
    %cst_57 = arith.constant -1.000000e+00 : f32
    %143 = vector.broadcast %cst_56 : f32 to vector<16x128xf32>
    %144 = vector.broadcast %cst_57 : f32 to vector<16x128xf32>
    %145 = arith.select %142, %143, %144 : vector<16x128xi1>, vector<16x128xf32>
    %146 = math.absf %140 : vector<16x128xf32>
    %cst_58 = arith.constant 0.327591091 : f32
    %147 = vector.broadcast %cst_58 : f32 to vector<16x128xf32>
    %148 = arith.mulf %147, %146 : vector<16x128xf32>
    %cst_59 = arith.constant 1.000000e+00 : f32
    %149 = vector.broadcast %cst_59 : f32 to vector<16x128xf32>
    %150 = arith.addf %149, %148 : vector<16x128xf32>
    %cst_60 = arith.constant 1.000000e+00 : f32
    %151 = vector.broadcast %cst_60 : f32 to vector<16x128xf32>
    %152 = arith.divf %151, %150 : vector<16x128xf32>
    %cst_61 = arith.constant 1.06140542 : f32
    %153 = vector.broadcast %cst_61 : f32 to vector<16x128xf32>
    %154 = arith.mulf %153, %152 : vector<16x128xf32>
    %cst_62 = arith.constant -1.45315206 : f32
    %155 = vector.broadcast %cst_62 : f32 to vector<16x128xf32>
    %156 = arith.addf %154, %155 : vector<16x128xf32>
    %157 = arith.mulf %156, %152 : vector<16x128xf32>
    %cst_63 = arith.constant 1.42141378 : f32
    %158 = vector.broadcast %cst_63 : f32 to vector<16x128xf32>
    %159 = arith.addf %157, %158 : vector<16x128xf32>
    %160 = arith.mulf %159, %152 : vector<16x128xf32>
    %cst_64 = arith.constant -0.284496725 : f32
    %161 = vector.broadcast %cst_64 : f32 to vector<16x128xf32>
    %162 = arith.addf %160, %161 : vector<16x128xf32>
    %163 = arith.mulf %162, %152 : vector<16x128xf32>
    %cst_65 = arith.constant 0.254829586 : f32
    %164 = vector.broadcast %cst_65 : f32 to vector<16x128xf32>
    %165 = arith.addf %163, %164 : vector<16x128xf32>
    %166 = arith.mulf %165, %152 : vector<16x128xf32>
    %cst_66 = arith.constant 0.000000e+00 : f32
    %167 = vector.broadcast %cst_66 : f32 to vector<16x128xf32>
    %168 = arith.subf %167, %146 : vector<16x128xf32>
    %169 = arith.mulf %168, %146 : vector<16x128xf32>
    %170 = math.exp %169 : vector<16x128xf32>
    %171 = arith.mulf %166, %170 : vector<16x128xf32>
    %cst_67 = arith.constant 1.000000e+00 : f32
    %172 = vector.broadcast %cst_67 : f32 to vector<16x128xf32>
    %173 = arith.subf %172, %171 : vector<16x128xf32>
    %174 = arith.mulf %145, %173 : vector<16x128xf32>
    %cst_68 = arith.constant 1.000000e+00 : f32
    %175 = vector.broadcast %cst_68 : f32 to vector<16x128xf32>
    %176 = arith.addf %175, %174 : vector<16x128xf32>
    %177 = arith.mulf %138, %176 : vector<16x128xf32>
    %178 = arith.index_cast %c0_i32 : i32 to index
    %c0_69 = arith.constant 0 : index
    %c0_70 = arith.constant 0 : index
    %179 = vector.load %arg14[%178, %c0_69, %c0_70] : memref<2x128x32xf32, #tpu.memory_space<vmem>>, vector<1x128x32xf32>
    %180 = vector.shape_cast %179 : vector<1x128x32xf32> to vector<128x32xf32>
    %cst_71 = arith.constant dense<0.000000e+00> : vector<16x32xf32>
    %181 = tpu.matmul %177, %180, %cst_71 {dimension_numbers = #tpu.dot_dimension_numbers<[1], [0], [0], [1], [0, 0, 1, 1], [], []>} : vector<16x128xf32>, vector<128x32xf32>, vector<16x32xf32> -> vector<16x32xf32>
    %182 = arith.index_cast %c0_i32 : i32 to index
    %c0_72 = arith.constant 0 : index
    %c0_73 = arith.constant 0 : index
    %183 = vector.load %arg15[%182, %c0_72, %c0_73] : memref<2x1x32xf32, #tpu.memory_space<vmem>>, vector<1x1x32xf32>
    %184 = vector.shape_cast %183 : vector<1x1x32xf32> to vector<1x32xf32>
    %185 = vector.broadcast %184 : vector<1x32xf32> to vector<16x32xf32>
    %186 = arith.addf %181, %185 : vector<16x32xf32>
    %187 = arith.addf %127, %186 : vector<16x32xf32>
    %188 = arith.index_cast %c0_i32 : i32 to index
    %c0_74 = arith.constant 0 : index
    %c0_75 = arith.constant 0 : index
    %189 = vector.load %arg16[%188, %c0_74, %c0_75] : memref<2x1x32xf32, #tpu.memory_space<vmem>>, vector<1x1x32xf32>
    %190 = vector.shape_cast %189 : vector<1x1x32xf32> to vector<1x32xf32>
    %191 = arith.index_cast %c0_i32 : i32 to index
    %c0_76 = arith.constant 0 : index
    %c0_77 = arith.constant 0 : index
    %192 = vector.load %arg17[%191, %c0_76, %c0_77] : memref<2x1x32xf32, #tpu.memory_space<vmem>>, vector<1x1x32xf32>
    %193 = vector.shape_cast %192 : vector<1x1x32xf32> to vector<1x32xf32>
    %cst_78 = arith.constant dense<0.000000e+00> : vector<16xf32>
    %194 = vector.multi_reduction <add>, %187, %cst_78 [1] : vector<16x32xf32> to vector<16xf32>
    %195 = vector.shape_cast %194 : vector<16xf32> to vector<16x1xf32>
    %cst_79 = arith.constant 3.200000e+01 : f32
    %196 = vector.broadcast %cst_79 : f32 to vector<16x1xf32>
    %197 = arith.divf %195, %196 : vector<16x1xf32>
    %198 = vector.broadcast %197 : vector<16x1xf32> to vector<16x32xf32>
    %199 = arith.subf %187, %198 : vector<16x32xf32>
    %200 = arith.mulf %199, %199 : vector<16x32xf32>
    %cst_80 = arith.constant dense<0.000000e+00> : vector<16xf32>
    %201 = vector.multi_reduction <add>, %200, %cst_80 [1] : vector<16x32xf32> to vector<16xf32>
    %202 = vector.shape_cast %201 : vector<16xf32> to vector<16x1xf32>
    %cst_81 = arith.constant 3.200000e+01 : f32
    %203 = vector.broadcast %cst_81 : f32 to vector<16x1xf32>
    %204 = arith.divf %202, %203 : vector<16x1xf32>
    %205 = vector.broadcast %197 : vector<16x1xf32> to vector<16x32xf32>
    %206 = arith.subf %187, %205 : vector<16x32xf32>
    %cst_82 = arith.constant 9.99999974E-6 : f32
    %207 = vector.broadcast %cst_82 : f32 to vector<16x1xf32>
    %208 = arith.addf %204, %207 : vector<16x1xf32>
    %209 = math.rsqrt %208 : vector<16x1xf32>
    %210 = vector.broadcast %209 : vector<16x1xf32> to vector<16x32xf32>
    %211 = arith.mulf %206, %210 : vector<16x32xf32>
    %212 = vector.broadcast %190 : vector<1x32xf32> to vector<16x32xf32>
    %213 = arith.mulf %211, %212 : vector<16x32xf32>
    %214 = vector.broadcast %193 : vector<1x32xf32> to vector<16x32xf32>
    %215 = arith.addf %213, %214 : vector<16x32xf32>
    %c1_i32 = arith.constant 1 : i32
    %216 = vector.shape_cast %215 : vector<16x32xf32> to vector<2x8x32xf32>
    %217 = vector.shape_cast %216 : vector<2x8x32xf32> to vector<1x2x8x32xf32>
    %218 = vector.shape_cast %217 : vector<1x2x8x32xf32> to vector<1x2x8x32xf32>
    %219 = vector.broadcast %218 : vector<1x2x8x32xf32> to vector<4x2x8x32xf32>
    %220 = vector.shape_cast %219 : vector<4x2x8x32xf32> to vector<8x8x32xf32>
    %221 = arith.index_cast %c1_i32 : i32 to index
    %c0_83 = arith.constant 0 : index
    %c0_84 = arith.constant 0 : index
    %c0_85 = arith.constant 0 : index
    %222 = vector.load %arg2[%221, %c0_83, %c0_84, %c0_85] : memref<2x4x32x8xf32, #tpu.memory_space<vmem>>, vector<1x4x32x8xf32>
    %223 = vector.shape_cast %222 : vector<1x4x32x8xf32> to vector<4x32x8xf32>
    %224 = vector.shape_cast %223 : vector<4x32x8xf32> to vector<4x1x32x8xf32>
    %225 = vector.shape_cast %224 : vector<4x1x32x8xf32> to vector<4x1x32x8xf32>
    %226 = vector.broadcast %225 : vector<4x1x32x8xf32> to vector<4x2x32x8xf32>
    %227 = vector.shape_cast %226 : vector<4x2x32x8xf32> to vector<8x32x8xf32>
    %cst_86 = arith.constant dense<0.000000e+00> : vector<8x8x8xf32>
    %228 = tpu.matmul %220, %227, %cst_86 {dimension_numbers = #tpu.dot_dimension_numbers<[2], [1], [1], [2], [0, 0, 0, 1, 1, 2], [0], [0]>} : vector<8x8x32xf32>, vector<8x32x8xf32>, vector<8x8x8xf32> -> vector<8x8x8xf32>
    %229 = arith.index_cast %c1_i32 : i32 to index
    %c0_87 = arith.constant 0 : index
    %c0_88 = arith.constant 0 : index
    %c0_89 = arith.constant 0 : index
    %230 = vector.load %arg3[%229, %c0_87, %c0_88, %c0_89] : memref<2x4x1x8xf32, #tpu.memory_space<vmem>>, vector<1x4x1x8xf32>
    %231 = vector.shape_cast %230 : vector<1x4x1x8xf32> to vector<4x1x8xf32>
    %232 = vector.shape_cast %231 : vector<4x1x8xf32> to vector<4x1x1x8xf32>
    %233 = vector.shape_cast %232 : vector<4x1x1x8xf32> to vector<4x1x1x8xf32>
    %234 = vector.broadcast %233 : vector<4x1x1x8xf32> to vector<4x2x1x8xf32>
    %235 = vector.shape_cast %234 : vector<4x2x1x8xf32> to vector<8x1x8xf32>
    %236 = vector.broadcast %235 : vector<8x1x8xf32> to vector<8x8x8xf32>
    %237 = arith.addf %228, %236 : vector<8x8x8xf32>
    %238 = arith.index_cast %c1_i32 : i32 to index
    %c0_90 = arith.constant 0 : index
    %c0_91 = arith.constant 0 : index
    %c0_92 = arith.constant 0 : index
    %239 = vector.load %arg4[%238, %c0_90, %c0_91, %c0_92] : memref<2x4x32x8xf32, #tpu.memory_space<vmem>>, vector<1x4x32x8xf32>
    %240 = vector.shape_cast %239 : vector<1x4x32x8xf32> to vector<4x32x8xf32>
    %241 = vector.shape_cast %240 : vector<4x32x8xf32> to vector<4x1x32x8xf32>
    %242 = vector.shape_cast %241 : vector<4x1x32x8xf32> to vector<4x1x32x8xf32>
    %243 = vector.broadcast %242 : vector<4x1x32x8xf32> to vector<4x2x32x8xf32>
    %244 = vector.shape_cast %243 : vector<4x2x32x8xf32> to vector<8x32x8xf32>
    %cst_93 = arith.constant dense<0.000000e+00> : vector<8x8x8xf32>
    %245 = tpu.matmul %220, %244, %cst_93 {dimension_numbers = #tpu.dot_dimension_numbers<[2], [1], [1], [2], [0, 0, 0, 1, 1, 2], [0], [0]>} : vector<8x8x32xf32>, vector<8x32x8xf32>, vector<8x8x8xf32> -> vector<8x8x8xf32>
    %246 = arith.index_cast %c1_i32 : i32 to index
    %c0_94 = arith.constant 0 : index
    %c0_95 = arith.constant 0 : index
    %c0_96 = arith.constant 0 : index
    %247 = vector.load %arg5[%246, %c0_94, %c0_95, %c0_96] : memref<2x4x1x8xf32, #tpu.memory_space<vmem>>, vector<1x4x1x8xf32>
    %248 = vector.shape_cast %247 : vector<1x4x1x8xf32> to vector<4x1x8xf32>
    %249 = vector.shape_cast %248 : vector<4x1x8xf32> to vector<4x1x1x8xf32>
    %250 = vector.shape_cast %249 : vector<4x1x1x8xf32> to vector<4x1x1x8xf32>
    %251 = vector.broadcast %250 : vector<4x1x1x8xf32> to vector<4x2x1x8xf32>
    %252 = vector.shape_cast %251 : vector<4x2x1x8xf32> to vector<8x1x8xf32>
    %253 = vector.broadcast %252 : vector<8x1x8xf32> to vector<8x8x8xf32>
    %254 = arith.addf %245, %253 : vector<8x8x8xf32>
    %255 = arith.index_cast %c1_i32 : i32 to index
    %c0_97 = arith.constant 0 : index
    %c0_98 = arith.constant 0 : index
    %c0_99 = arith.constant 0 : index
    %256 = vector.load %arg6[%255, %c0_97, %c0_98, %c0_99] : memref<2x4x32x8xf32, #tpu.memory_space<vmem>>, vector<1x4x32x8xf32>
    %257 = vector.shape_cast %256 : vector<1x4x32x8xf32> to vector<4x32x8xf32>
    %258 = vector.shape_cast %257 : vector<4x32x8xf32> to vector<4x1x32x8xf32>
    %259 = vector.shape_cast %258 : vector<4x1x32x8xf32> to vector<4x1x32x8xf32>
    %260 = vector.broadcast %259 : vector<4x1x32x8xf32> to vector<4x2x32x8xf32>
    %261 = vector.shape_cast %260 : vector<4x2x32x8xf32> to vector<8x32x8xf32>
    %cst_100 = arith.constant dense<0.000000e+00> : vector<8x8x8xf32>
    %262 = tpu.matmul %220, %261, %cst_100 {dimension_numbers = #tpu.dot_dimension_numbers<[2], [1], [1], [2], [0, 0, 0, 1, 1, 2], [0], [0]>} : vector<8x8x32xf32>, vector<8x32x8xf32>, vector<8x8x8xf32> -> vector<8x8x8xf32>
    %263 = arith.index_cast %c1_i32 : i32 to index
    %c0_101 = arith.constant 0 : index
    %c0_102 = arith.constant 0 : index
    %c0_103 = arith.constant 0 : index
    %264 = vector.load %arg7[%263, %c0_101, %c0_102, %c0_103] : memref<2x4x1x8xf32, #tpu.memory_space<vmem>>, vector<1x4x1x8xf32>
    %265 = vector.shape_cast %264 : vector<1x4x1x8xf32> to vector<4x1x8xf32>
    %266 = vector.shape_cast %265 : vector<4x1x8xf32> to vector<4x1x1x8xf32>
    %267 = vector.shape_cast %266 : vector<4x1x1x8xf32> to vector<4x1x1x8xf32>
    %268 = vector.broadcast %267 : vector<4x1x1x8xf32> to vector<4x2x1x8xf32>
    %269 = vector.shape_cast %268 : vector<4x2x1x8xf32> to vector<8x1x8xf32>
    %270 = vector.broadcast %269 : vector<8x1x8xf32> to vector<8x8x8xf32>
    %271 = arith.addf %262, %270 : vector<8x8x8xf32>
    %cst_104 = arith.constant 0.353553385 : f32
    %272 = vector.broadcast %cst_104 : f32 to vector<8x8x8xf32>
    %273 = arith.mulf %237, %272 : vector<8x8x8xf32>
    %cst_105 = arith.constant dense<0.000000e+00> : vector<8x8x8xf32>
    %274 = tpu.matmul %273, %254, %cst_105 {dimension_numbers = #tpu.dot_dimension_numbers<[2], [2], [1], [1], [0, 0, 0, 1, 1, 1], [0], [0]>} : vector<8x8x8xf32>, vector<8x8x8xf32>, vector<8x8x8xf32> -> vector<8x8x8xf32>
    %275 = vector.shape_cast %10 : vector<8x8xf32> to vector<1x8x8xf32>
    %276 = vector.broadcast %275 : vector<1x8x8xf32> to vector<8x8x8xf32>
    %277 = arith.addf %274, %276 : vector<8x8x8xf32>
    %cst_106 = arith.constant dense<0xFF800000> : vector<8x8xf32>
    %278 = vector.multi_reduction <maximumf>, %277, %cst_106 [2] : vector<8x8x8xf32> to vector<8x8xf32>
    %279 = vector.shape_cast %278 : vector<8x8xf32> to vector<8x8x1xf32>
    %280 = vector.broadcast %279 : vector<8x8x1xf32> to vector<8x8x8xf32>
    %281 = arith.subf %277, %280 : vector<8x8x8xf32>
    %282 = math.exp %281 : vector<8x8x8xf32>
    %cst_107 = arith.constant dense<0.000000e+00> : vector<8x8xf32>
    %283 = vector.multi_reduction <add>, %282, %cst_107 [2] : vector<8x8x8xf32> to vector<8x8xf32>
    %284 = vector.shape_cast %283 : vector<8x8xf32> to vector<8x8x1xf32>
    %285 = tpu.reciprocal %284 {approx = true} : vector<8x8x1xf32> -> vector<8x8x1xf32>
    %286 = vector.broadcast %285 : vector<8x8x1xf32> to vector<8x8x8xf32>
    %287 = arith.mulf %282, %286 : vector<8x8x8xf32>
    %cst_108 = arith.constant dense<0.000000e+00> : vector<8x8x8xf32>
    %288 = tpu.matmul %287, %271, %cst_108 {dimension_numbers = #tpu.dot_dimension_numbers<[2], [1], [1], [2], [0, 0, 0, 1, 1, 2], [0], [0]>} : vector<8x8x8xf32>, vector<8x8x8xf32>, vector<8x8x8xf32> -> vector<8x8x8xf32>
    %289 = arith.index_cast %c1_i32 : i32 to index
    %c0_109 = arith.constant 0 : index
    %c0_110 = arith.constant 0 : index
    %c0_111 = arith.constant 0 : index
    %290 = vector.load %arg8[%289, %c0_109, %c0_110, %c0_111] : memref<2x4x8x32xf32, #tpu.memory_space<vmem>>, vector<1x4x8x32xf32>
    %291 = vector.shape_cast %290 : vector<1x4x8x32xf32> to vector<4x8x32xf32>
    %292 = vector.shape_cast %291 : vector<4x8x32xf32> to vector<4x1x8x32xf32>
    %293 = vector.shape_cast %292 : vector<4x1x8x32xf32> to vector<4x1x8x32xf32>
    %294 = vector.broadcast %293 : vector<4x1x8x32xf32> to vector<4x2x8x32xf32>
    %295 = vector.shape_cast %294 : vector<4x2x8x32xf32> to vector<8x8x32xf32>
    %cst_112 = arith.constant dense<0.000000e+00> : vector<8x8x32xf32>
    %296 = tpu.matmul %288, %295, %cst_112 {dimension_numbers = #tpu.dot_dimension_numbers<[2], [1], [1], [2], [0, 0, 0, 1, 1, 2], [0], [0]>} : vector<8x8x8xf32>, vector<8x8x32xf32>, vector<8x8x32xf32> -> vector<8x8x32xf32>
    %297 = vector.shape_cast %296 : vector<8x8x32xf32> to vector<4x16x32xf32>
    %cst_113 = arith.constant dense<0.000000e+00> : vector<16x32xf32>
    %298 = vector.multi_reduction <add>, %297, %cst_113 [0] : vector<4x16x32xf32> to vector<16x32xf32>
    %299 = arith.index_cast %c1_i32 : i32 to index
    %c0_114 = arith.constant 0 : index
    %c0_115 = arith.constant 0 : index
    %300 = vector.load %arg9[%299, %c0_114, %c0_115] : memref<2x1x32xf32, #tpu.memory_space<vmem>>, vector<1x1x32xf32>
    %301 = vector.shape_cast %300 : vector<1x1x32xf32> to vector<1x32xf32>
    %302 = vector.broadcast %301 : vector<1x32xf32> to vector<16x32xf32>
    %303 = arith.addf %298, %302 : vector<16x32xf32>
    %304 = arith.addf %215, %303 : vector<16x32xf32>
    %305 = arith.index_cast %c1_i32 : i32 to index
    %c0_116 = arith.constant 0 : index
    %c0_117 = arith.constant 0 : index
    %306 = vector.load %arg10[%305, %c0_116, %c0_117] : memref<2x1x32xf32, #tpu.memory_space<vmem>>, vector<1x1x32xf32>
    %307 = vector.shape_cast %306 : vector<1x1x32xf32> to vector<1x32xf32>
    %308 = arith.index_cast %c1_i32 : i32 to index
    %c0_118 = arith.constant 0 : index
    %c0_119 = arith.constant 0 : index
    %309 = vector.load %arg11[%308, %c0_118, %c0_119] : memref<2x1x32xf32, #tpu.memory_space<vmem>>, vector<1x1x32xf32>
    %310 = vector.shape_cast %309 : vector<1x1x32xf32> to vector<1x32xf32>
    %cst_120 = arith.constant dense<0.000000e+00> : vector<16xf32>
    %311 = vector.multi_reduction <add>, %304, %cst_120 [1] : vector<16x32xf32> to vector<16xf32>
    %312 = vector.shape_cast %311 : vector<16xf32> to vector<16x1xf32>
    %cst_121 = arith.constant 3.200000e+01 : f32
    %313 = vector.broadcast %cst_121 : f32 to vector<16x1xf32>
    %314 = arith.divf %312, %313 : vector<16x1xf32>
    %315 = vector.broadcast %314 : vector<16x1xf32> to vector<16x32xf32>
    %316 = arith.subf %304, %315 : vector<16x32xf32>
    %317 = arith.mulf %316, %316 : vector<16x32xf32>
    %cst_122 = arith.constant dense<0.000000e+00> : vector<16xf32>
    %318 = vector.multi_reduction <add>, %317, %cst_122 [1] : vector<16x32xf32> to vector<16xf32>
    %319 = vector.shape_cast %318 : vector<16xf32> to vector<16x1xf32>
    %cst_123 = arith.constant 3.200000e+01 : f32
    %320 = vector.broadcast %cst_123 : f32 to vector<16x1xf32>
    %321 = arith.divf %319, %320 : vector<16x1xf32>
    %322 = vector.broadcast %314 : vector<16x1xf32> to vector<16x32xf32>
    %323 = arith.subf %304, %322 : vector<16x32xf32>
    %cst_124 = arith.constant 9.99999974E-6 : f32
    %324 = vector.broadcast %cst_124 : f32 to vector<16x1xf32>
    %325 = arith.addf %321, %324 : vector<16x1xf32>
    %326 = math.rsqrt %325 : vector<16x1xf32>
    %327 = vector.broadcast %326 : vector<16x1xf32> to vector<16x32xf32>
    %328 = arith.mulf %323, %327 : vector<16x32xf32>
    %329 = vector.broadcast %307 : vector<1x32xf32> to vector<16x32xf32>
    %330 = arith.mulf %328, %329 : vector<16x32xf32>
    %331 = vector.broadcast %310 : vector<1x32xf32> to vector<16x32xf32>
    %332 = arith.addf %330, %331 : vector<16x32xf32>
    %333 = arith.index_cast %c1_i32 : i32 to index
    %c0_125 = arith.constant 0 : index
    %c0_126 = arith.constant 0 : index
    %334 = vector.load %arg12[%333, %c0_125, %c0_126] : memref<2x32x128xf32, #tpu.memory_space<vmem>>, vector<1x32x128xf32>
    %335 = vector.shape_cast %334 : vector<1x32x128xf32> to vector<32x128xf32>
    %cst_127 = arith.constant dense<0.000000e+00> : vector<16x128xf32>
    %336 = tpu.matmul %332, %335, %cst_127 {dimension_numbers = #tpu.dot_dimension_numbers<[1], [0], [0], [1], [0, 0, 1, 1], [], []>} : vector<16x32xf32>, vector<32x128xf32>, vector<16x128xf32> -> vector<16x128xf32>
    %337 = arith.index_cast %c1_i32 : i32 to index
    %c0_128 = arith.constant 0 : index
    %c0_129 = arith.constant 0 : index
    %338 = vector.load %arg13[%337, %c0_128, %c0_129] : memref<2x1x128xf32, #tpu.memory_space<vmem>>, vector<1x1x128xf32>
    %339 = vector.shape_cast %338 : vector<1x1x128xf32> to vector<1x128xf32>
    %340 = vector.broadcast %339 : vector<1x128xf32> to vector<16x128xf32>
    %341 = arith.addf %336, %340 : vector<16x128xf32>
    %cst_130 = arith.constant 5.000000e-01 : f32
    %342 = vector.broadcast %cst_130 : f32 to vector<16x128xf32>
    %343 = arith.mulf %342, %341 : vector<16x128xf32>
    %cst_131 = arith.constant 0.707106769 : f32
    %344 = vector.broadcast %cst_131 : f32 to vector<16x128xf32>
    %345 = arith.mulf %341, %344 : vector<16x128xf32>
    %cst_132 = arith.constant 0.000000e+00 : f32
    %346 = vector.broadcast %cst_132 : f32 to vector<16x128xf32>
    %347 = arith.cmpf oge, %345, %346 : vector<16x128xf32>
    %cst_133 = arith.constant 1.000000e+00 : f32
    %cst_134 = arith.constant -1.000000e+00 : f32
    %348 = vector.broadcast %cst_133 : f32 to vector<16x128xf32>
    %349 = vector.broadcast %cst_134 : f32 to vector<16x128xf32>
    %350 = arith.select %347, %348, %349 : vector<16x128xi1>, vector<16x128xf32>
    %351 = math.absf %345 : vector<16x128xf32>
    %cst_135 = arith.constant 0.327591091 : f32
    %352 = vector.broadcast %cst_135 : f32 to vector<16x128xf32>
    %353 = arith.mulf %352, %351 : vector<16x128xf32>
    %cst_136 = arith.constant 1.000000e+00 : f32
    %354 = vector.broadcast %cst_136 : f32 to vector<16x128xf32>
    %355 = arith.addf %354, %353 : vector<16x128xf32>
    %cst_137 = arith.constant 1.000000e+00 : f32
    %356 = vector.broadcast %cst_137 : f32 to vector<16x128xf32>
    %357 = arith.divf %356, %355 : vector<16x128xf32>
    %cst_138 = arith.constant 1.06140542 : f32
    %358 = vector.broadcast %cst_138 : f32 to vector<16x128xf32>
    %359 = arith.mulf %358, %357 : vector<16x128xf32>
    %cst_139 = arith.constant -1.45315206 : f32
    %360 = vector.broadcast %cst_139 : f32 to vector<16x128xf32>
    %361 = arith.addf %359, %360 : vector<16x128xf32>
    %362 = arith.mulf %361, %357 : vector<16x128xf32>
    %cst_140 = arith.constant 1.42141378 : f32
    %363 = vector.broadcast %cst_140 : f32 to vector<16x128xf32>
    %364 = arith.addf %362, %363 : vector<16x128xf32>
    %365 = arith.mulf %364, %357 : vector<16x128xf32>
    %cst_141 = arith.constant -0.284496725 : f32
    %366 = vector.broadcast %cst_141 : f32 to vector<16x128xf32>
    %367 = arith.addf %365, %366 : vector<16x128xf32>
    %368 = arith.mulf %367, %357 : vector<16x128xf32>
    %cst_142 = arith.constant 0.254829586 : f32
    %369 = vector.broadcast %cst_142 : f32 to vector<16x128xf32>
    %370 = arith.addf %368, %369 : vector<16x128xf32>
    %371 = arith.mulf %370, %357 : vector<16x128xf32>
    %cst_143 = arith.constant 0.000000e+00 : f32
    %372 = vector.broadcast %cst_143 : f32 to vector<16x128xf32>
    %373 = arith.subf %372, %351 : vector<16x128xf32>
    %374 = arith.mulf %373, %351 : vector<16x128xf32>
    %375 = math.exp %374 : vector<16x128xf32>
    %376 = arith.mulf %371, %375 : vector<16x128xf32>
    %cst_144 = arith.constant 1.000000e+00 : f32
    %377 = vector.broadcast %cst_144 : f32 to vector<16x128xf32>
    %378 = arith.subf %377, %376 : vector<16x128xf32>
    %379 = arith.mulf %350, %378 : vector<16x128xf32>
    %cst_145 = arith.constant 1.000000e+00 : f32
    %380 = vector.broadcast %cst_145 : f32 to vector<16x128xf32>
    %381 = arith.addf %380, %379 : vector<16x128xf32>
    %382 = arith.mulf %343, %381 : vector<16x128xf32>
    %383 = arith.index_cast %c1_i32 : i32 to index
    %c0_146 = arith.constant 0 : index
    %c0_147 = arith.constant 0 : index
    %384 = vector.load %arg14[%383, %c0_146, %c0_147] : memref<2x128x32xf32, #tpu.memory_space<vmem>>, vector<1x128x32xf32>
    %385 = vector.shape_cast %384 : vector<1x128x32xf32> to vector<128x32xf32>
    %cst_148 = arith.constant dense<0.000000e+00> : vector<16x32xf32>
    %386 = tpu.matmul %382, %385, %cst_148 {dimension_numbers = #tpu.dot_dimension_numbers<[1], [0], [0], [1], [0, 0, 1, 1], [], []>} : vector<16x128xf32>, vector<128x32xf32>, vector<16x32xf32> -> vector<16x32xf32>
    %387 = arith.index_cast %c1_i32 : i32 to index
    %c0_149 = arith.constant 0 : index
    %c0_150 = arith.constant 0 : index
    %388 = vector.load %arg15[%387, %c0_149, %c0_150] : memref<2x1x32xf32, #tpu.memory_space<vmem>>, vector<1x1x32xf32>
    %389 = vector.shape_cast %388 : vector<1x1x32xf32> to vector<1x32xf32>
    %390 = vector.broadcast %389 : vector<1x32xf32> to vector<16x32xf32>
    %391 = arith.addf %386, %390 : vector<16x32xf32>
    %392 = arith.addf %332, %391 : vector<16x32xf32>
    %393 = arith.index_cast %c1_i32 : i32 to index
    %c0_151 = arith.constant 0 : index
    %c0_152 = arith.constant 0 : index
    %394 = vector.load %arg16[%393, %c0_151, %c0_152] : memref<2x1x32xf32, #tpu.memory_space<vmem>>, vector<1x1x32xf32>
    %395 = vector.shape_cast %394 : vector<1x1x32xf32> to vector<1x32xf32>
    %396 = arith.index_cast %c1_i32 : i32 to index
    %c0_153 = arith.constant 0 : index
    %c0_154 = arith.constant 0 : index
    %397 = vector.load %arg17[%396, %c0_153, %c0_154] : memref<2x1x32xf32, #tpu.memory_space<vmem>>, vector<1x1x32xf32>
    %398 = vector.shape_cast %397 : vector<1x1x32xf32> to vector<1x32xf32>
    %cst_155 = arith.constant dense<0.000000e+00> : vector<16xf32>
    %399 = vector.multi_reduction <add>, %392, %cst_155 [1] : vector<16x32xf32> to vector<16xf32>
    %400 = vector.shape_cast %399 : vector<16xf32> to vector<16x1xf32>
    %cst_156 = arith.constant 3.200000e+01 : f32
    %401 = vector.broadcast %cst_156 : f32 to vector<16x1xf32>
    %402 = arith.divf %400, %401 : vector<16x1xf32>
    %403 = vector.broadcast %402 : vector<16x1xf32> to vector<16x32xf32>
    %404 = arith.subf %392, %403 : vector<16x32xf32>
    %405 = arith.mulf %404, %404 : vector<16x32xf32>
    %cst_157 = arith.constant dense<0.000000e+00> : vector<16xf32>
    %406 = vector.multi_reduction <add>, %405, %cst_157 [1] : vector<16x32xf32> to vector<16xf32>
    %407 = vector.shape_cast %406 : vector<16xf32> to vector<16x1xf32>
    %cst_158 = arith.constant 3.200000e+01 : f32
    %408 = vector.broadcast %cst_158 : f32 to vector<16x1xf32>
    %409 = arith.divf %407, %408 : vector<16x1xf32>
    %410 = vector.broadcast %402 : vector<16x1xf32> to vector<16x32xf32>
    %411 = arith.subf %392, %410 : vector<16x32xf32>
    %cst_159 = arith.constant 9.99999974E-6 : f32
    %412 = vector.broadcast %cst_159 : f32 to vector<16x1xf32>
    %413 = arith.addf %409, %412 : vector<16x1xf32>
    %414 = math.rsqrt %413 : vector<16x1xf32>
    %415 = vector.broadcast %414 : vector<16x1xf32> to vector<16x32xf32>
    %416 = arith.mulf %411, %415 : vector<16x32xf32>
    %417 = vector.broadcast %395 : vector<1x32xf32> to vector<16x32xf32>
    %418 = arith.mulf %416, %417 : vector<16x32xf32>
    %419 = vector.broadcast %398 : vector<1x32xf32> to vector<16x32xf32>
    %420 = arith.addf %418, %419 : vector<16x32xf32>
    %c2_i32 = arith.constant 2 : i32
    %421 = vector.shape_cast %420 : vector<16x32xf32> to vector<2x8x32xf32>
    %422 = vector.extract_strided_slice %421 {offsets = [0, 7, 0], sizes = [2, 1, 32], strides = [1, 1, 1]} : vector<2x8x32xf32> to vector<2x1x32xf32>
    %423 = vector.shape_cast %422 : vector<2x1x32xf32> to vector<2x32xf32>
    %c0_160 = arith.constant 0 : index
    %c0_161 = arith.constant 0 : index
    %424 = vector.load %arg18[%c0_160, %c0_161] : memref<1x32xf32, #tpu.memory_space<vmem>>, vector<1x32xf32>
    %c0_162 = arith.constant 0 : index
    %c0_163 = arith.constant 0 : index
    %425 = vector.load %arg19[%c0_162, %c0_163] : memref<1x32xf32, #tpu.memory_space<vmem>>, vector<1x32xf32>
    %cst_164 = arith.constant dense<0.000000e+00> : vector<2xf32>
    %426 = vector.multi_reduction <add>, %423, %cst_164 [1] : vector<2x32xf32> to vector<2xf32>
    %427 = vector.shape_cast %426 : vector<2xf32> to vector<2x1xf32>
    %cst_165 = arith.constant 3.200000e+01 : f32
    %428 = vector.broadcast %cst_165 : f32 to vector<2x1xf32>
    %429 = arith.divf %427, %428 : vector<2x1xf32>
    %430 = vector.broadcast %429 : vector<2x1xf32> to vector<2x32xf32>
    %431 = arith.subf %423, %430 : vector<2x32xf32>
    %432 = arith.mulf %431, %431 : vector<2x32xf32>
    %cst_166 = arith.constant dense<0.000000e+00> : vector<2xf32>
    %433 = vector.multi_reduction <add>, %432, %cst_166 [1] : vector<2x32xf32> to vector<2xf32>
    %434 = vector.shape_cast %433 : vector<2xf32> to vector<2x1xf32>
    %cst_167 = arith.constant 3.200000e+01 : f32
    %435 = vector.broadcast %cst_167 : f32 to vector<2x1xf32>
    %436 = arith.divf %434, %435 : vector<2x1xf32>
    %437 = vector.broadcast %429 : vector<2x1xf32> to vector<2x32xf32>
    %438 = arith.subf %423, %437 : vector<2x32xf32>
    %cst_168 = arith.constant 9.99999974E-6 : f32
    %439 = vector.broadcast %cst_168 : f32 to vector<2x1xf32>
    %440 = arith.addf %436, %439 : vector<2x1xf32>
    %441 = math.rsqrt %440 : vector<2x1xf32>
    %442 = vector.broadcast %441 : vector<2x1xf32> to vector<2x32xf32>
    %443 = arith.mulf %438, %442 : vector<2x32xf32>
    %444 = vector.broadcast %424 : vector<1x32xf32> to vector<2x32xf32>
    %445 = arith.mulf %443, %444 : vector<2x32xf32>
    %446 = vector.broadcast %425 : vector<1x32xf32> to vector<2x32xf32>
    %447 = arith.addf %445, %446 : vector<2x32xf32>
    %c0_169 = arith.constant 0 : index
    %c0_170 = arith.constant 0 : index
    %448 = vector.load %arg20[%c0_169, %c0_170] : memref<32x16xf32, #tpu.memory_space<vmem>>, vector<32x16xf32>
    %cst_171 = arith.constant dense<0.000000e+00> : vector<2x16xf32>
    %449 = tpu.matmul %447, %448, %cst_171 {dimension_numbers = #tpu.dot_dimension_numbers<[1], [0], [0], [1], [0, 0, 1, 1], [], []>} : vector<2x32xf32>, vector<32x16xf32>, vector<2x16xf32> -> vector<2x16xf32>
    %c0_172 = arith.constant 0 : index
    %c0_173 = arith.constant 0 : index
    %450 = vector.load %arg21[%c0_172, %c0_173] : memref<1x16xf32, #tpu.memory_space<vmem>>, vector<1x16xf32>
    %451 = vector.broadcast %450 : vector<1x16xf32> to vector<2x16xf32>
    %452 = arith.addf %449, %451 : vector<2x16xf32>
    %c0_174 = arith.constant 0 : index
    %c0_175 = arith.constant 0 : index
    %453 = vector.load %arg22[%c0_174, %c0_175] : memref<2x16xf32, #tpu.memory_space<vmem>>, vector<2x16xf32>
    tpu.vector_store %arg22[%c0_174, %c0_175], %452 {strides = array<i32>} : memref<2x16xf32, #tpu.memory_space<vmem>>, vector<2x16xf32>,
    return
  }
}

</mosaic_0001>

<llo_original>
// kernel: transformer_forward.1
$region0: #{transformer_forward.1}
  #allocation0 [shape = 'u32[]', space=smem, size = 0x4, offset = 0x4, fixed_abs, tag = 'smem constant byte address 0x4 - core index']
  #allocation1 [shape = 'u32[72,128]{1,0:T(1,128)}', space=vmem, size = 0x9000, scoped, tag = 'internal scratch']
  %s0 = inlined_call_operand.vmem [shape: f32[2,8,32], index: 0, kind: input, shape index: {}]
  %s1 = inlined_call_operand.vmem [shape: f32[1,8,32], index: 1, kind: input, shape index: {}]
  %s2 = inlined_call_operand.vmem [shape: f32[2,4,32,8], index: 2, kind: input, shape index: {}]
  %s3 = inlined_call_operand.vmem [shape: f32[2,4,1,8], index: 3, kind: input, shape index: {}]
  %s4 = inlined_call_operand.vmem [shape: f32[2,4,32,8], index: 4, kind: input, shape index: {}]
  %s5 = inlined_call_operand.vmem [shape: f32[2,4,1,8], index: 5, kind: input, shape index: {}]
  %s6 = inlined_call_operand.vmem [shape: f32[2,4,32,8], index: 6, kind: input, shape index: {}]
  %s7 = inlined_call_operand.vmem [shape: f32[2,4,1,8], index: 7, kind: input, shape index: {}]
  %s8 = inlined_call_operand.vmem [shape: f32[2,4,8,32], index: 8, kind: input, shape index: {}]
  %s9 = inlined_call_operand.vmem [shape: f32[2,1,32], index: 9, kind: input, shape index: {}]
  %s10 = inlined_call_operand.vmem [shape: f32[2,1,32], index: 10, kind: input, shape index: {}]
  %s11 = inlined_call_operand.vmem [shape: f32[2,1,32], index: 11, kind: input, shape index: {}]
  %s12 = inlined_call_operand.vmem [shape: f32[2,32,128], index: 12, kind: input, shape index: {}]
  %s13 = inlined_call_operand.vmem [shape: f32[2,1,128], index: 13, kind: input, shape index: {}]
  %s14 = inlined_call_operand.vmem [shape: f32[2,128,32], index: 14, kind: input, shape index: {}]
  %s15 = inlined_call_operand.vmem [shape: f32[2,1,32], index: 15, kind: input, shape index: {}]
  %s16 = inlined_call_operand.vmem [shape: f32[2,1,32], index: 16, kind: input, shape index: {}]
  %s17 = inlined_call_operand.vmem [shape: f32[2,1,32], index: 17, kind: input, shape index: {}]
  %s18 = inlined_call_operand.vmem [shape: f32[1,32], index: 18, kind: input, shape index: {}]
  %s19 = inlined_call_operand.vmem [shape: f32[1,32], index: 19, kind: input, shape index: {}]
  %s20 = inlined_call_operand.vmem [shape: f32[32,16], index: 20, kind: input, shape index: {}]
  %s21 = inlined_call_operand.vmem [shape: f32[1,16], index: 21, kind: input, shape index: {}]
  %s22 = inlined_call_operand.hbm [shape: f32[2,16], index: 22, kind: output, shape index: {}]
  %s23 = sld [smem:[#allocation0]]
  $region98: #{transformer_forward.1} parent=0
    _
  %s25 = ssub.s32 1, %s23
  %s26 = scalar_select 0, %s25, %s23
  $region1: #{transformer_forward.1} parent=0
    #allocation2 [shape = 'u8[1024]{0}', space=vmem, size = 0x400, scoped, tag = 'output window, operand 0, single buffered']
    #allocation3 [shape = 's32[1]{0}', space=sflag, size = 0x4, scoped, tag = 'scoped memory for transformer_forward.1']
    %27 = vsyncpa [#allocation3], 0
    // Predicated region
    $region2: #{transformer_forward.1} parent=1 // pred_check
      _
    $region3: #{transformer_forward.1} parent=1 // pred_check_branch
      %29 = sbr.rel (0) target = $region5
    $region4: #{transformer_forward.1} parent=1 // pred_region
      _
    $region5: #{transformer_forward.1} parent=1 // pred_fallthru
      _
    // Predicated region
    $region6: #{transformer_forward.1} parent=1 // pred_check
      _
    $region7: #{transformer_forward.1} parent=1 // pred_check_branch
      %31 = sbr.rel (0) target = $region9
    $region8: #{transformer_forward.1} parent=1 // pred_region
      _
    $region9: #{transformer_forward.1} parent=1 // pred_fallthru
      _
    // Predicated region
    $region10: #{transformer_forward.1} parent=1 // pred_check
      _
    $region11: #{transformer_forward.1} parent=1 // pred_check_branch
      %33 = sbr.rel (0) target = $region13
    $region12: #{transformer_forward.1} parent=1 // pred_region
      _
    $region13: #{transformer_forward.1} parent=1 // pred_fallthru
      _
    // Predicated region
    $region14: #{transformer_forward.1} parent=1 // pred_check
      _
    $region15: #{transformer_forward.1} parent=1 // pred_check_branch
      %35 = sbr.rel (0) target = $region17
    $region16: #{transformer_forward.1} parent=1 // pred_region
      _
    $region17: #{transformer_forward.1} parent=1 // pred_fallthru
      _
    // Predicated region
    $region18: #{transformer_forward.1} parent=1 // pred_check
      _
    $region19: #{transformer_forward.1} parent=1 // pred_check_branch
      %37 = sbr.rel (0) target = $region21
    $region20: #{transformer_forward.1} parent=1 // pred_region
      _
    $region21: #{transformer_forward.1} parent=1 // pred_fallthru
      _
    // Predicated region
    $region22: #{transformer_forward.1} parent=1 // pred_check
      _
    $region23: #{transformer_forward.1} parent=1 // pred_check_branch
      %39 = sbr.rel (0) target = $region25
    $region24: #{transformer_forward.1} parent=1 // pred_region
      _
    $region25: #{transformer_forward.1} parent=1 // pred_fallthru
      _
    // Predicated region
    $region26: #{transformer_forward.1} parent=1 // pred_check
      _
    $region27: #{transformer_forward.1} parent=1 // pred_check_branch
      %41 = sbr.rel (0) target = $region29
    $region28: #{transformer_forward.1} parent=1 // pred_region
      _
    $region29: #{transformer_forward.1} parent=1 // pred_fallthru
      _
    // Predicated region
    $region30: #{transformer_forward.1} parent=1 // pred_check
      _
    $region31: #{transformer_forward.1} parent=1 // pred_check_branch
      %43 = sbr.rel (0) target = $region33
    $region32: #{transformer_forward.1} parent=1 // pred_region
      _
    $region33: #{transformer_forward.1} parent=1 // pred_fallthru
      _
    // Predicated region
    $region34: #{transformer_forward.1} parent=1 // pred_check
      _
    $region35: #{transformer_forward.1} parent=1 // pred_check_branch
      %45 = sbr.rel (0) target = $region37
    $region36: #{transformer_forward.1} parent=1 // pred_region
      _
    $region37: #{transformer_forward.1} parent=1 // pred_fallthru
      _
    // Predicated region
    $region38: #{transformer_forward.1} parent=1 // pred_check
      _
    $region39: #{transformer_forward.1} parent=1 // pred_check_branch
      %47 = sbr.rel (0) target = $region41
    $region40: #{transformer_forward.1} parent=1 // pred_region
      _
    $region41: #{transformer_forward.1} parent=1 // pred_fallthru
      _
    // Predicated region
    $region42: #{transformer_forward.1} parent=1 // pred_check
      _
    $region43: #{transformer_forward.1} parent=1 // pred_check_branch
      %49 = sbr.rel (0) target = $region45
    $region44: #{transformer_forward.1} parent=1 // pred_region
      _
    $region45: #{transformer_forward.1} parent=1 // pred_fallthru
      _
    // Predicated region
    $region46: #{transformer_forward.1} parent=1 // pred_check
      _
    $region47: #{transformer_forward.1} parent=1 // pred_check_branch
      %51 = sbr.rel (0) target = $region49
    $region48: #{transformer_forward.1} parent=1 // pred_region
      _
    $region49: #{transformer_forward.1} parent=1 // pred_fallthru
      _
    // Predicated region
    $region50: #{transformer_forward.1} parent=1 // pred_check
      _
    $region51: #{transformer_forward.1} parent=1 // pred_check_branch
      %53 = sbr.rel (0) target = $region53
    $region52: #{transformer_forward.1} parent=1 // pred_region
      _
    $region53: #{transformer_forward.1} parent=1 // pred_fallthru
      _
    // Predicated region
    $region54: #{transformer_forward.1} parent=1 // pred_check
      _
    $region55: #{transformer_forward.1} parent=1 // pred_check_branch
      %55 = sbr.rel (0) target = $region57
    $region56: #{transformer_forward.1} parent=1 // pred_region
      _
    $region57: #{transformer_forward.1} parent=1 // pred_fallthru
      _
    // Predicated region
    $region58: #{transformer_forward.1} parent=1 // pred_check
      _
    $region59: #{transformer_forward.1} parent=1 // pred_check_branch
      %57 = sbr.rel (0) target = $region61
    $region60: #{transformer_forward.1} parent=1 // pred_region
      _
    $region61: #{transformer_forward.1} parent=1 // pred_fallthru
      _
    // Predicated region
    $region62: #{transformer_forward.1} parent=1 // pred_check
      _
    $region63: #{transformer_forward.1} parent=1 // pred_check_branch
      %59 = sbr.rel (0) target = $region65
    $region64: #{transformer_forward.1} parent=1 // pred_region
      _
    $region65: #{transformer_forward.1} parent=1 // pred_fallthru
      _
    // Predicated region
    $region66: #{transformer_forward.1} parent=1 // pred_check
      _
    $region67: #{transformer_forward.1} parent=1 // pred_check_branch
      %61 = sbr.rel (0) target = $region69
    $region68: #{transformer_forward.1} parent=1 // pred_region
      _
    $region69: #{transformer_forward.1} parent=1 // pred_fallthru
      _
    // Predicated region
    $region70: #{transformer_forward.1} parent=1 // pred_check
      _
    $region71: #{transformer_forward.1} parent=1 // pred_check_branch
      %63 = sbr.rel (0) target = $region73
    $region72: #{transformer_forward.1} parent=1 // pred_region
      _
    $region73: #{transformer_forward.1} parent=1 // pred_fallthru
      _
    // Predicated region
    $region74: #{transformer_forward.1} parent=1 // pred_check
      _
    $region75: #{transformer_forward.1} parent=1 // pred_check_branch
      %65 = sbr.rel (0) target = $region77
    $region76: #{transformer_forward.1} parent=1 // pred_region
      _
    $region77: #{transformer_forward.1} parent=1 // pred_fallthru
      _
    // Predicated region
    $region78: #{transformer_forward.1} parent=1 // pred_check
      _
    $region79: #{transformer_forward.1} parent=1 // pred_check_branch
      %67 = sbr.rel (0) target = $region81
    $region80: #{transformer_forward.1} parent=1 // pred_region
      _
    $region81: #{transformer_forward.1} parent=1 // pred_fallthru
      _
    // Predicated region
    $region82: #{transformer_forward.1} parent=1 // pred_check
      _
    $region83: #{transformer_forward.1} parent=1 // pred_check_branch
      %69 = sbr.rel (0) target = $region85
    $region84: #{transformer_forward.1} parent=1 // pred_region
      _
    $region85: #{transformer_forward.1} parent=1 // pred_fallthru
      _
    // Predicated region
    $region86: #{transformer_forward.1} parent=1 // pred_check
      _
    $region87: #{transformer_forward.1} parent=1 // pred_check_branch
      %71 = sbr.rel (0) target = $region89
    $region88: #{transformer_forward.1} parent=1 // pred_region
      _
    $region89: #{transformer_forward.1} parent=1 // pred_fallthru
      _
    %v72 = vld [vmem:[%s0] sm:$0xff]
    %v73 = vld [vmem:[%s0 + $0x8] sm:$0xff]
    %v74 = vld [vmem:[%s1] sm:$0xff]
    %v75 = vadd.f32 %v72, %v74
    %v76 = vadd.f32 %v73, %v74
    %v77 = vlaneseq
    %v78 = vshrl.u32 %v77, 7
    %v79 = vlaneseq
    %v80 = vand.u32 %v79, 127
    %vm81 = vcmp.gt.s32.totalorder %v80, %v78
    %v82 = vsel %vm81, -1e+30, 0.0
    %v83 = vld [vmem:[%s2] sm:$0xff]
    %v84 = vld [vmem:[%s2 + $0x8] sm:$0xff]
    %v85 = vld [vmem:[%s2 + $0x10] sm:$0xff]
    %v86 = vld [vmem:[%s2 + $0x18] sm:$0xff]
    %v87 = vld [vmem:[%s2 + $0x20] sm:$0xff]
    %v88 = vld [vmem:[%s2 + $0x28] sm:$0xff]
    %v89 = vld [vmem:[%s2 + $0x30] sm:$0xff]
    %v90 = vld [vmem:[%s2 + $0x38] sm:$0xff]
    %v91 = vld [vmem:[%s2 + $0x40] sm:$0xff]
    %v92 = vld [vmem:[%s2 + $0x48] sm:$0xff]
    %v93 = vld [vmem:[%s2 + $0x50] sm:$0xff]
    %v94 = vld [vmem:[%s2 + $0x58] sm:$0xff]
    %v95 = vld [vmem:[%s2 + $0x60] sm:$0xff]
    %v96 = vld [vmem:[%s2 + $0x68] sm:$0xff]
    %v97 = vld [vmem:[%s2 + $0x70] sm:$0xff]
    %v98 = vld [vmem:[%s2 + $0x78] sm:$0xff]
    %v99 = vld [vmem:[%s3] sm:$0x1]
    %v100 = vld [vmem:[%s3 + $0x1] sm:$0x1]
    %v101 = vld [vmem:[%s3 + $0x2] sm:$0x1]
    %v102 = vld [vmem:[%s3 + $0x3] sm:$0x1]
    %v107 = vperm.slane %v99, 0
    %v108 = vperm.slane %v100, 0
    %v109 = vperm.slane %v101, 0
    %v110 = vperm.slane %v102, 0
    %vm115 = vcmask 261120
    %v117 = vsel %vm115, %v75, 0
    %119 = vmatpush.msra.mxu0 0.0
    %120 = vmatpush.msra.mxu0 0.0
    %121 = vmatpush.msra.mxu0 0.0
    %122 = vmatpush.msra.mxu0 0.0
    %123 = vmatpush.msra.mxu0 0.0
    %124 = vmatpush.msra.mxu0 0.0
    %125 = vmatpush.msra.mxu0 0.0
    %126 = vmatpush.msra.mxu0 0.0
    %127 = vmatpush.msra.mxu0 0.0
    %128 = vmatpush.msra.mxu0 0.0
    %129 = vmatpush.msra.mxu0 0.0
    %130 = vmatpush.msra.mxu0 0.0
    %131 = vmatpush.msra.mxu0 %v86
    %132 = vmatpush.msra.mxu0 %v85
    %133 = vmatpush.msra.mxu0 %v84
    %134 = vmatpush.msra.mxu0 %v83
    %135 = vmatmul.f32.gmra.mxu0 %v117
    %v136 = vpop.f32.mrf.mxu0
    %v137 = vadd.f32 %v107, %v136
    %138 = vdwg.mxu0
    %v140 = vsel %vm115, %v76, 0
    %142 = vmatpush.msra.mxu0 0.0
    %143 = vmatpush.msra.mxu0 0.0
    %144 = vmatpush.msra.mxu0 0.0
    %145 = vmatpush.msra.mxu0 0.0
    %146 = vmatpush.msra.mxu0 0.0
    %147 = vmatpush.msra.mxu0 0.0
    %148 = vmatpush.msra.mxu0 0.0
    %149 = vmatpush.msra.mxu0 0.0
    %150 = vmatpush.msra.mxu0 0.0
    %151 = vmatpush.msra.mxu0 0.0
    %152 = vmatpush.msra.mxu0 0.0
    %153 = vmatpush.msra.mxu0 0.0
    %154 = vmatpush.msra.mxu0 %v86
    %155 = vmatpush.msra.mxu0 %v85
    %156 = vmatpush.msra.mxu0 %v84
    %157 = vmatpush.msra.mxu0 %v83
    %158 = vmatmul.f32.gmra.mxu0 %v140
    %v159 = vpop.f32.mrf.mxu0
    %v160 = vadd.f32 %v107, %v159
    %161 = vdwg.mxu0
    %162 = vmatpush.msra.mxu0 0.0
    %163 = vmatpush.msra.mxu0 0.0
    %164 = vmatpush.msra.mxu0 0.0
    %165 = vmatpush.msra.mxu0 0.0
    %166 = vmatpush.msra.mxu0 0.0
    %167 = vmatpush.msra.mxu0 0.0
    %168 = vmatpush.msra.mxu0 0.0
    %169 = vmatpush.msra.mxu0 0.0
    %170 = vmatpush.msra.mxu0 0.0
    %171 = vmatpush.msra.mxu0 0.0
    %172 = vmatpush.msra.mxu0 0.0
    %173 = vmatpush.msra.mxu0 0.0
    %174 = vmatpush.msra.mxu0 %v90
    %175 = vmatpush.msra.mxu0 %v89
    %176 = vmatpush.msra.mxu0 %v88
    %177 = vmatpush.msra.mxu0 %v87
    %178 = vmatmul.f32.gmra.mxu0 %v117
    %v179 = vpop.f32.mrf.mxu0
    %v180 = vadd.f32 %v108, %v179
    %181 = vdwg.mxu0
    %182 = vmatpush.msra.mxu0 0.0
    %183 = vmatpush.msra.mxu0 0.0
    %184 = vmatpush.msra.mxu0 0.0
    %185 = vmatpush.msra.mxu0 0.0
    %186 = vmatpush.msra.mxu0 0.0
    %187 = vmatpush.msra.mxu0 0.0
    %188 = vmatpush.msra.mxu0 0.0
    %189 = vmatpush.msra.mxu0 0.0
    %190 = vmatpush.msra.mxu0 0.0
    %191 = vmatpush.msra.mxu0 0.0
    %192 = vmatpush.msra.mxu0 0.0
    %193 = vmatpush.msra.mxu0 0.0
    %194 = vmatpush.msra.mxu0 %v90
    %195 = vmatpush.msra.mxu0 %v89
    %196 = vmatpush.msra.mxu0 %v88
    %197 = vmatpush.msra.mxu0 %v87
    %198 = vmatmul.f32.gmra.mxu0 %v140
    %v199 = vpop.f32.mrf.mxu0
    %v200 = vadd.f32 %v108, %v199
    %201 = vdwg.mxu0
    %202 = vmatpush.msra.mxu0 0.0
    %203 = vmatpush.msra.mxu0 0.0
    %204 = vmatpush.msra.mxu0 0.0
    %205 = vmatpush.msra.mxu0 0.0
    %206 = vmatpush.msra.mxu0 0.0
    %207 = vmatpush.msra.mxu0 0.0
    %208 = vmatpush.msra.mxu0 0.0
    %209 = vmatpush.msra.mxu0 0.0
    %210 = vmatpush.msra.mxu0 0.0
    %211 = vmatpush.msra.mxu0 0.0
    %212 = vmatpush.msra.mxu0 0.0
    %213 = vmatpush.msra.mxu0 0.0
    %214 = vmatpush.msra.mxu0 %v94
    %215 = vmatpush.msra.mxu0 %v93
    %216 = vmatpush.msra.mxu0 %v92
    %217 = vmatpush.msra.mxu0 %v91
    %218 = vmatmul.f32.gmra.mxu0 %v117
    %v219 = vpop.f32.mrf.mxu0
    %v220 = vadd.f32 %v109, %v219
    %221 = vdwg.mxu0
    %222 = vmatpush.msra.mxu0 0.0
    %223 = vmatpush.msra.mxu0 0.0
    %224 = vmatpush.msra.mxu0 0.0
    %225 = vmatpush.msra.mxu0 0.0
    %226 = vmatpush.msra.mxu0 0.0
    %227 = vmatpush.msra.mxu0 0.0
    %228 = vmatpush.msra.mxu0 0.0
    %229 = vmatpush.msra.mxu0 0.0
    %230 = vmatpush.msra.mxu0 0.0
    %231 = vmatpush.msra.mxu0 0.0
    %232 = vmatpush.msra.mxu0 0.0
    %233 = vmatpush.msra.mxu0 0.0
    %234 = vmatpush.msra.mxu0 %v94
    %235 = vmatpush.msra.mxu0 %v93
    %236 = vmatpush.msra.mxu0 %v92
    %237 = vmatpush.msra.mxu0 %v91
    %238 = vmatmul.f32.gmra.mxu0 %v140
    %v239 = vpop.f32.mrf.mxu0
    %v240 = vadd.f32 %v109, %v239
    %241 = vdwg.mxu0
    %242 = vmatpush.msra.mxu0 0.0
    %243 = vmatpush.msra.mxu0 0.0
    %244 = vmatpush.msra.mxu0 0.0
    %245 = vmatpush.msra.mxu0 0.0
    %246 = vmatpush.msra.mxu0 0.0
    %247 = vmatpush.msra.mxu0 0.0
    %248 = vmatpush.msra.mxu0 0.0
    %249 = vmatpush.msra.mxu0 0.0
    %250 = vmatpush.msra.mxu0 0.0
    %251 = vmatpush.msra.mxu0 0.0
    %252 = vmatpush.msra.mxu0 0.0
    %253 = vmatpush.msra.mxu0 0.0
    %254 = vmatpush.msra.mxu0 %v98
    %255 = vmatpush.msra.mxu0 %v97
    %256 = vmatpush.msra.mxu0 %v96
    %257 = vmatpush.msra.mxu0 %v95
    %258 = vmatmul.f32.gmra.mxu0 %v117
    %v259 = vpop.f32.mrf.mxu0
    %v260 = vadd.f32 %v110, %v259
    %261 = vdwg.mxu0
    %262 = vmatpush.msra.mxu0 0.0
    %263 = vmatpush.msra.mxu0 0.0
    %264 = vmatpush.msra.mxu0 0.0
    %265 = vmatpush.msra.mxu0 0.0
    %266 = vmatpush.msra.mxu0 0.0
    %267 = vmatpush.msra.mxu0 0.0
    %268 = vmatpush.msra.mxu0 0.0
    %269 = vmatpush.msra.mxu0 0.0
    %270 = vmatpush.msra.mxu0 0.0
    %271 = vmatpush.msra.mxu0 0.0
    %272 = vmatpush.msra.mxu0 0.0
    %273 = vmatpush.msra.mxu0 0.0
    %274 = vmatpush.msra.mxu0 %v98
    %275 = vmatpush.msra.mxu0 %v97
    %276 = vmatpush.msra.mxu0 %v96
    %277 = vmatpush.msra.mxu0 %v95
    %278 = vmatmul.f32.gmra.mxu0 %v140
    %v279 = vpop.f32.mrf.mxu0
    %v280 = vadd.f32 %v110, %v279
    %281 = vdwg.mxu0
    %v282 = vld [vmem:[%s4] sm:$0xff]
    %v283 = vld [vmem:[%s4 + $0x8] sm:$0xff]
    %v284 = vld [vmem:[%s4 + $0x10] sm:$0xff]
    %v285 = vld [vmem:[%s4 + $0x18] sm:$0xff]
    %v286 = vld [vmem:[%s4 + $0x20] sm:$0xff]
    %v287 = vld [vmem:[%s4 + $0x28] sm:$0xff]
    %v288 = vld [vmem:[%s4 + $0x30] sm:$0xff]
    %v289 = vld [vmem:[%s4 + $0x38] sm:$0xff]
    %v290 = vld [vmem:[%s4 + $0x40] sm:$0xff]
    %v291 = vld [vmem:[%s4 + $0x48] sm:$0xff]
    %v292 = vld [vmem:[%s4 + $0x50] sm:$0xff]
    %v293 = vld [vmem:[%s4 + $0x58] sm:$0xff]
    %v294 = vld [vmem:[%s4 + $0x60] sm:$0xff]
    %v295 = vld [vmem:[%s4 + $0x68] sm:$0xff]
    %v296 = vld [vmem:[%s4 + $0x70] sm:$0xff]
    %v297 = vld [vmem:[%s4 + $0x78] sm:$0xff]
    %v298 = vld [vmem:[%s5] sm:$0x1]
    %v299 = vld [vmem:[%s5 + $0x1] sm:$0x1]
    %v300 = vld [vmem:[%s5 + $0x2] sm:$0x1]
    %v301 = vld [vmem:[%s5 + $0x3] sm:$0x1]
    %v306 = vperm.slane %v298, 0
    %v307 = vperm.slane %v299, 0
    %v308 = vperm.slane %v300, 0
    %v309 = vperm.slane %v301, 0
    %314 = vmatpush.msra.mxu0 0.0
    %315 = vmatpush.msra.mxu0 0.0
    %316 = vmatpush.msra.mxu0 0.0
    %317 = vmatpush.msra.mxu0 0.0
    %318 = vmatpush.msra.mxu0 0.0
    %319 = vmatpush.msra.mxu0 0.0
    %320 = vmatpush.msra.mxu0 0.0
    %321 = vmatpush.msra.mxu0 0.0
    %322 = vmatpush.msra.mxu0 0.0
    %323 = vmatpush.msra.mxu0 0.0
    %324 = vmatpush.msra.mxu0 0.0
    %325 = vmatpush.msra.mxu0 0.0
    %326 = vmatpush.msra.mxu0 %v285
    %327 = vmatpush.msra.mxu0 %v284
    %328 = vmatpush.msra.mxu0 %v283
    %329 = vmatpush.msra.mxu0 %v282
    %330 = vmatmul.f32.gmra.mxu0 %v117
    %v331 = vpop.f32.mrf.mxu0
    %v332 = vadd.f32 %v306, %v331
    %333 = vdwg.mxu0
    %334 = vmatpush.msra.mxu0 0.0
    %335 = vmatpush.msra.mxu0 0.0
    %336 = vmatpush.msra.mxu0 0.0
    %337 = vmatpush.msra.mxu0 0.0
    %338 = vmatpush.msra.mxu0 0.0
    %339 = vmatpush.msra.mxu0 0.0
    %340 = vmatpush.msra.mxu0 0.0
    %341 = vmatpush.msra.mxu0 0.0
    %342 = vmatpush.msra.mxu0 0.0
    %343 = vmatpush.msra.mxu0 0.0
    %344 = vmatpush.msra.mxu0 0.0
    %345 = vmatpush.msra.mxu0 0.0
    %346 = vmatpush.msra.mxu0 %v285
    %347 = vmatpush.msra.mxu0 %v284
    %348 = vmatpush.msra.mxu0 %v283
    %349 = vmatpush.msra.mxu0 %v282
    %350 = vmatmul.f32.gmra.mxu0 %v140
    %v351 = vpop.f32.mrf.mxu0
    %v352 = vadd.f32 %v306, %v351
    %353 = vdwg.mxu0
    %354 = vmatpush.msra.mxu0 0.0
    %355 = vmatpush.msra.mxu0 0.0
    %356 = vmatpush.msra.mxu0 0.0
    %357 = vmatpush.msra.mxu0 0.0
    %358 = vmatpush.msra.mxu0 0.0
    %359 = vmatpush.msra.mxu0 0.0
    %360 = vmatpush.msra.mxu0 0.0
    %361 = vmatpush.msra.mxu0 0.0
    %362 = vmatpush.msra.mxu0 0.0
    %363 = vmatpush.msra.mxu0 0.0
    %364 = vmatpush.msra.mxu0 0.0
    %365 = vmatpush.msra.mxu0 0.0
    %366 = vmatpush.msra.mxu0 %v289
    %367 = vmatpush.msra.mxu0 %v288
    %368 = vmatpush.msra.mxu0 %v287
    %369 = vmatpush.msra.mxu0 %v286
    %370 = vmatmul.f32.gmra.mxu0 %v117
    %v371 = vpop.f32.mrf.mxu0
    %v372 = vadd.f32 %v307, %v371
    %373 = vdwg.mxu0
    %374 = vmatpush.msra.mxu0 0.0
    %375 = vmatpush.msra.mxu0 0.0
    %376 = vmatpush.msra.mxu0 0.0
    %377 = vmatpush.msra.mxu0 0.0
    %378 = vmatpush.msra.mxu0 0.0
    %379 = vmatpush.msra.mxu0 0.0
    %380 = vmatpush.msra.mxu0 0.0
    %381 = vmatpush.msra.mxu0 0.0
    %382 = vmatpush.msra.mxu0 0.0
    %383 = vmatpush.msra.mxu0 0.0
    %384 = vmatpush.msra.mxu0 0.0
    %385 = vmatpush.msra.mxu0 0.0
    %386 = vmatpush.msra.mxu0 %v289
    %387 = vmatpush.msra.mxu0 %v288
    %388 = vmatpush.msra.mxu0 %v287
    %389 = vmatpush.msra.mxu0 %v286
    %390 = vmatmul.f32.gmra.mxu0 %v140
    %v391 = vpop.f32.mrf.mxu0
    %v392 = vadd.f32 %v307, %v391
    %393 = vdwg.mxu0
    %394 = vmatpush.msra.mxu0 0.0
    %395 = vmatpush.msra.mxu0 0.0
    %396 = vmatpush.msra.mxu0 0.0
    %397 = vmatpush.msra.mxu0 0.0
    %398 = vmatpush.msra.mxu0 0.0
    %399 = vmatpush.msra.mxu0 0.0
    %400 = vmatpush.msra.mxu0 0.0
    %401 = vmatpush.msra.mxu0 0.0
    %402 = vmatpush.msra.mxu0 0.0
    %403 = vmatpush.msra.mxu0 0.0
    %404 = vmatpush.msra.mxu0 0.0
    %405 = vmatpush.msra.mxu0 0.0
    %406 = vmatpush.msra.mxu0 %v293
    %407 = vmatpush.msra.mxu0 %v292
    %408 = vmatpush.msra.mxu0 %v291
    %409 = vmatpush.msra.mxu0 %v290
    %410 = vmatmul.f32.gmra.mxu0 %v117
    %v411 = vpop.f32.mrf.mxu0
    %v412 = vadd.f32 %v308, %v411
    %413 = vdwg.mxu0
    %414 = vmatpush.msra.mxu0 0.0
    %415 = vmatpush.msra.mxu0 0.0
    %416 = vmatpush.msra.mxu0 0.0
    %417 = vmatpush.msra.mxu0 0.0
    %418 = vmatpush.msra.mxu0 0.0
    %419 = vmatpush.msra.mxu0 0.0
    %420 = vmatpush.msra.mxu0 0.0
    %421 = vmatpush.msra.mxu0 0.0
    %422 = vmatpush.msra.mxu0 0.0
    %423 = vmatpush.msra.mxu0 0.0
    %424 = vmatpush.msra.mxu0 0.0
    %425 = vmatpush.msra.mxu0 0.0
    %426 = vmatpush.msra.mxu0 %v293
    %427 = vmatpush.msra.mxu0 %v292
    %428 = vmatpush.msra.mxu0 %v291
    %429 = vmatpush.msra.mxu0 %v290
    %430 = vmatmul.f32.gmra.mxu0 %v140
    %v431 = vpop.f32.mrf.mxu0
    %v432 = vadd.f32 %v308, %v431
    %433 = vdwg.mxu0
    %434 = vmatpush.msra.mxu0 0.0
    %435 = vmatpush.msra.mxu0 0.0
    %436 = vmatpush.msra.mxu0 0.0
    %437 = vmatpush.msra.mxu0 0.0
    %438 = vmatpush.msra.mxu0 0.0
    %439 = vmatpush.msra.mxu0 0.0
    %440 = vmatpush.msra.mxu0 0.0
    %441 = vmatpush.msra.mxu0 0.0
    %442 = vmatpush.msra.mxu0 0.0
    %443 = vmatpush.msra.mxu0 0.0
    %444 = vmatpush.msra.mxu0 0.0
    %445 = vmatpush.msra.mxu0 0.0
    %446 = vmatpush.msra.mxu0 %v297
    %447 = vmatpush.msra.mxu0 %v296
    %448 = vmatpush.msra.mxu0 %v295
    %449 = vmatpush.msra.mxu0 %v294
    %450 = vmatmul.f32.gmra.mxu0 %v117
    %v451 = vpop.f32.mrf.mxu0
    %v452 = vadd.f32 %v309, %v451
    %453 = vdwg.mxu0
    %454 = vmatpush.msra.mxu0 0.0
    %455 = vmatpush.msra.mxu0 0.0
    %456 = vmatpush.msra.mxu0 0.0
    %457 = vmatpush.msra.mxu0 0.0
    %458 = vmatpush.msra.mxu0 0.0
    %459 = vmatpush.msra.mxu0 0.0
    %460 = vmatpush.msra.mxu0 0.0
    %461 = vmatpush.msra.mxu0 0.0
    %462 = vmatpush.msra.mxu0 0.0
    %463 = vmatpush.msra.mxu0 0.0
    %464 = vmatpush.msra.mxu0 0.0
    %465 = vmatpush.msra.mxu0 0.0
    %466 = vmatpush.msra.mxu0 %v297
    %467 = vmatpush.msra.mxu0 %v296
    %468 = vmatpush.msra.mxu0 %v295
    %469 = vmatpush.msra.mxu0 %v294
    %470 = vmatmul.f32.gmra.mxu0 %v140
    %v471 = vpop.f32.mrf.mxu0
    %v472 = vadd.f32 %v309, %v471
    %473 = vdwg.mxu0
    %v474 = vld [vmem:[%s6] sm:$0xff]
    %v475 = vld [vmem:[%s6 + $0x8] sm:$0xff]
    %v476 = vld [vmem:[%s6 + $0x10] sm:$0xff]
    %v477 = vld [vmem:[%s6 + $0x18] sm:$0xff]
    %v478 = vld [vmem:[%s6 + $0x20] sm:$0xff]
    %v479 = vld [vmem:[%s6 + $0x28] sm:$0xff]
    %v480 = vld [vmem:[%s6 + $0x30] sm:$0xff]
    %v481 = vld [vmem:[%s6 + $0x38] sm:$0xff]
    %v482 = vld [vmem:[%s6 + $0x40] sm:$0xff]
    %v483 = vld [vmem:[%s6 + $0x48] sm:$0xff]
    %v484 = vld [vmem:[%s6 + $0x50] sm:$0xff]
    %v485 = vld [vmem:[%s6 + $0x58] sm:$0xff]
    %v486 = vld [vmem:[%s6 + $0x60] sm:$0xff]
    %v487 = vld [vmem:[%s6 + $0x68] sm:$0xff]
    %v488 = vld [vmem:[%s6 + $0x70] sm:$0xff]
    %v489 = vld [vmem:[%s6 + $0x78] sm:$0xff]
    %v490 = vld [vmem:[%s7] sm:$0x1]
    %v491 = vld [vmem:[%s7 + $0x1] sm:$0x1]
    %v492 = vld [vmem:[%s7 + $0x2] sm:$0x1]
    %v493 = vld [vmem:[%s7 + $0x3] sm:$0x1]
    %v498 = vperm.slane %v490, 0
    %v499 = vperm.slane %v491, 0
    %v500 = vperm.slane %v492, 0
    %v501 = vperm.slane %v493, 0
    %506 = vmatpush.msra.mxu0 0.0
    %507 = vmatpush.msra.mxu0 0.0
    %508 = vmatpush.msra.mxu0 0.0
    %509 = vmatpush.msra.mxu0 0.0
    %510 = vmatpush.msra.mxu0 0.0
    %511 = vmatpush.msra.mxu0 0.0
    %512 = vmatpush.msra.mxu0 0.0
    %513 = vmatpush.msra.mxu0 0.0
    %514 = vmatpush.msra.mxu0 0.0
    %515 = vmatpush.msra.mxu0 0.0
    %516 = vmatpush.msra.mxu0 0.0
    %517 = vmatpush.msra.mxu0 0.0
    %518 = vmatpush.msra.mxu0 %v477
    %519 = vmatpush.msra.mxu0 %v476
    %520 = vmatpush.msra.mxu0 %v475
    %521 = vmatpush.msra.mxu0 %v474
    %522 = vmatmul.f32.gmra.mxu0 %v117
    %v523 = vpop.f32.mrf.mxu0
    %v524 = vadd.f32 %v498, %v523
    %525 = vdwg.mxu0
    %526 = vmatpush.msra.mxu0 0.0
    %527 = vmatpush.msra.mxu0 0.0
    %528 = vmatpush.msra.mxu0 0.0
    %529 = vmatpush.msra.mxu0 0.0
    %530 = vmatpush.msra.mxu0 0.0
    %531 = vmatpush.msra.mxu0 0.0
    %532 = vmatpush.msra.mxu0 0.0
    %533 = vmatpush.msra.mxu0 0.0
    %534 = vmatpush.msra.mxu0 0.0
    %535 = vmatpush.msra.mxu0 0.0
    %536 = vmatpush.msra.mxu0 0.0
    %537 = vmatpush.msra.mxu0 0.0
    %538 = vmatpush.msra.mxu0 %v477
    %539 = vmatpush.msra.mxu0 %v476
    %540 = vmatpush.msra.mxu0 %v475
    %541 = vmatpush.msra.mxu0 %v474
    %542 = vmatmul.f32.gmra.mxu0 %v140
    %v543 = vpop.f32.mrf.mxu0
    %v544 = vadd.f32 %v498, %v543
    %545 = vdwg.mxu0
    %546 = vmatpush.msra.mxu0 0.0
    %547 = vmatpush.msra.mxu0 0.0
    %548 = vmatpush.msra.mxu0 0.0
    %549 = vmatpush.msra.mxu0 0.0
    %550 = vmatpush.msra.mxu0 0.0
    %551 = vmatpush.msra.mxu0 0.0
    %552 = vmatpush.msra.mxu0 0.0
    %553 = vmatpush.msra.mxu0 0.0
    %554 = vmatpush.msra.mxu0 0.0
    %555 = vmatpush.msra.mxu0 0.0
    %556 = vmatpush.msra.mxu0 0.0
    %557 = vmatpush.msra.mxu0 0.0
    %558 = vmatpush.msra.mxu0 %v481
    %559 = vmatpush.msra.mxu0 %v480
    %560 = vmatpush.msra.mxu0 %v479
    %561 = vmatpush.msra.mxu0 %v478
    %562 = vmatmul.f32.gmra.mxu0 %v117
    %v563 = vpop.f32.mrf.mxu0
    %v564 = vadd.f32 %v499, %v563
    %565 = vdwg.mxu0
    %566 = vmatpush.msra.mxu0 0.0
    %567 = vmatpush.msra.mxu0 0.0
    %568 = vmatpush.msra.mxu0 0.0
    %569 = vmatpush.msra.mxu0 0.0
    %570 = vmatpush.msra.mxu0 0.0
    %571 = vmatpush.msra.mxu0 0.0
    %572 = vmatpush.msra.mxu0 0.0
    %573 = vmatpush.msra.mxu0 0.0
    %574 = vmatpush.msra.mxu0 0.0
    %575 = vmatpush.msra.mxu0 0.0
    %576 = vmatpush.msra.mxu0 0.0
    %577 = vmatpush.msra.mxu0 0.0
    %578 = vmatpush.msra.mxu0 %v481
    %579 = vmatpush.msra.mxu0 %v480
    %580 = vmatpush.msra.mxu0 %v479
    %581 = vmatpush.msra.mxu0 %v478
    %582 = vmatmul.f32.gmra.mxu0 %v140
    %v583 = vpop.f32.mrf.mxu0
    %v584 = vadd.f32 %v499, %v583
    %585 = vdwg.mxu0
    %586 = vmatpush.msra.mxu0 0.0
    %587 = vmatpush.msra.mxu0 0.0
    %588 = vmatpush.msra.mxu0 0.0
    %589 = vmatpush.msra.mxu0 0.0
    %590 = vmatpush.msra.mxu0 0.0
    %591 = vmatpush.msra.mxu0 0.0
    %592 = vmatpush.msra.mxu0 0.0
    %593 = vmatpush.msra.mxu0 0.0
    %594 = vmatpush.msra.mxu0 0.0
    %595 = vmatpush.msra.mxu0 0.0
    %596 = vmatpush.msra.mxu0 0.0
    %597 = vmatpush.msra.mxu0 0.0
    %598 = vmatpush.msra.mxu0 %v485
    %599 = vmatpush.msra.mxu0 %v484
    %600 = vmatpush.msra.mxu0 %v483
    %601 = vmatpush.msra.mxu0 %v482
    %602 = vmatmul.f32.gmra.mxu0 %v117
    %v603 = vpop.f32.mrf.mxu0
    %v604 = vadd.f32 %v500, %v603
    %605 = vdwg.mxu0
    %606 = vmatpush.msra.mxu0 0.0
    %607 = vmatpush.msra.mxu0 0.0
    %608 = vmatpush.msra.mxu0 0.0
    %609 = vmatpush.msra.mxu0 0.0
    %610 = vmatpush.msra.mxu0 0.0
    %611 = vmatpush.msra.mxu0 0.0
    %612 = vmatpush.msra.mxu0 0.0
    %613 = vmatpush.msra.mxu0 0.0
    %614 = vmatpush.msra.mxu0 0.0
    %615 = vmatpush.msra.mxu0 0.0
    %616 = vmatpush.msra.mxu0 0.0
    %617 = vmatpush.msra.mxu0 0.0
    %618 = vmatpush.msra.mxu0 %v485
    %619 = vmatpush.msra.mxu0 %v484
    %620 = vmatpush.msra.mxu0 %v483
    %621 = vmatpush.msra.mxu0 %v482
    %622 = vmatmul.f32.gmra.mxu0 %v140
    %v623 = vpop.f32.mrf.mxu0
    %v624 = vadd.f32 %v500, %v623
    %625 = vdwg.mxu0
    %626 = vmatpush.msra.mxu0 0.0
    %627 = vmatpush.msra.mxu0 0.0
    %628 = vmatpush.msra.mxu0 0.0
    %629 = vmatpush.msra.mxu0 0.0
    %630 = vmatpush.msra.mxu0 0.0
    %631 = vmatpush.msra.mxu0 0.0
    %632 = vmatpush.msra.mxu0 0.0
    %633 = vmatpush.msra.mxu0 0.0
    %634 = vmatpush.msra.mxu0 0.0
    %635 = vmatpush.msra.mxu0 0.0
    %636 = vmatpush.msra.mxu0 0.0
    %637 = vmatpush.msra.mxu0 0.0
    %638 = vmatpush.msra.mxu0 %v489
    %639 = vmatpush.msra.mxu0 %v488
    %640 = vmatpush.msra.mxu0 %v487
    %641 = vmatpush.msra.mxu0 %v486
    %642 = vmatmul.f32.gmra.mxu0 %v117
    %v643 = vpop.f32.mrf.mxu0
    %v644 = vadd.f32 %v501, %v643
    %645 = vdwg.mxu0
    %646 = vmatpush.msra.mxu0 0.0
    %647 = vmatpush.msra.mxu0 0.0
    %648 = vmatpush.msra.mxu0 0.0
    %649 = vmatpush.msra.mxu0 0.0
    %650 = vmatpush.msra.mxu0 0.0
    %651 = vmatpush.msra.mxu0 0.0
    %652 = vmatpush.msra.mxu0 0.0
    %653 = vmatpush.msra.mxu0 0.0
    %654 = vmatpush.msra.mxu0 0.0
    %655 = vmatpush.msra.mxu0 0.0
    %656 = vmatpush.msra.mxu0 0.0
    %657 = vmatpush.msra.mxu0 0.0
    %658 = vmatpush.msra.mxu0 %v489
    %659 = vmatpush.msra.mxu0 %v488
    %660 = vmatpush.msra.mxu0 %v487
    %661 = vmatpush.msra.mxu0 %v486
    %662 = vmatmul.f32.gmra.mxu0 %v140
    %v663 = vpop.f32.mrf.mxu0
    %v664 = vadd.f32 %v501, %v663
    %665 = vdwg.mxu0
    %v666 = vmul.f32 %v137, 0.35355338
    %v667 = vmul.f32 %v160, 0.35355338
    %v668 = vmul.f32 %v180, 0.35355338
    %v669 = vmul.f32 %v200, 0.35355338
    %v670 = vmul.f32 %v220, 0.35355338
    %v671 = vmul.f32 %v240, 0.35355338
    %v672 = vmul.f32 %v260, 0.35355338
    %v673 = vmul.f32 %v280, 0.35355338
    %vm674 = vcmask 64512
    %v676 = vsel %vm674, %v666, 0
    %v679 = vsel %vm674, %v332, 0
    %681 = vmatpush.xpose.msra.mxu0 0.0
    %682 = vmatpush.xpose.msra.mxu0 0.0
    %683 = vmatpush.xpose.msra.mxu0 0.0
    %684 = vmatpush.xpose.msra.mxu0 0.0
    %685 = vmatpush.xpose.msra.mxu0 0.0
    %686 = vmatpush.xpose.msra.mxu0 0.0
    %687 = vmatpush.xpose.msra.mxu0 0.0
    %688 = vmatpush.xpose.msra.mxu0 0.0
    %689 = vmatpush.xpose.msra.mxu0 0.0
    %690 = vmatpush.xpose.msra.mxu0 0.0
    %691 = vmatpush.xpose.msra.mxu0 0.0
    %692 = vmatpush.xpose.msra.mxu0 0.0
    %693 = vmatpush.xpose.msra.mxu0 0.0
    %694 = vmatpush.xpose.msra.mxu0 0.0
    %695 = vmatpush.xpose.msra.mxu0 0.0
    %696 = vmatpush.xpose.msra.mxu0 %v679
    %697 = vmatmul.f32.gmra.mxu0 %v676
    %v698 = vpop.f32.mrf.mxu0
    %v699 = vadd.f32 %v82, %v698
    %700 = vdwg.mxu0
    %v702 = vsel %vm674, %v667, 0
    %v705 = vsel %vm674, %v352, 0
    %707 = vmatpush.xpose.msra.mxu0 0.0
    %708 = vmatpush.xpose.msra.mxu0 0.0
    %709 = vmatpush.xpose.msra.mxu0 0.0
    %710 = vmatpush.xpose.msra.mxu0 0.0
    %711 = vmatpush.xpose.msra.mxu0 0.0
    %712 = vmatpush.xpose.msra.mxu0 0.0
    %713 = vmatpush.xpose.msra.mxu0 0.0
    %714 = vmatpush.xpose.msra.mxu0 0.0
    %715 = vmatpush.xpose.msra.mxu0 0.0
    %716 = vmatpush.xpose.msra.mxu0 0.0
    %717 = vmatpush.xpose.msra.mxu0 0.0
    %718 = vmatpush.xpose.msra.mxu0 0.0
    %719 = vmatpush.xpose.msra.mxu0 0.0
    %720 = vmatpush.xpose.msra.mxu0 0.0
    %721 = vmatpush.xpose.msra.mxu0 0.0
    %722 = vmatpush.xpose.msra.mxu0 %v705
    %723 = vmatmul.f32.gmra.mxu0 %v702
    %v724 = vpop.f32.mrf.mxu0
    %v725 = vadd.f32 %v82, %v724
    %726 = vdwg.mxu0
    %v728 = vsel %vm674, %v668, 0
    %v731 = vsel %vm674, %v372, 0
    %733 = vmatpush.xpose.msra.mxu0 0.0
    %734 = vmatpush.xpose.msra.mxu0 0.0
    %735 = vmatpush.xpose.msra.mxu0 0.0
    %736 = vmatpush.xpose.msra.mxu0 0.0
    %737 = vmatpush.xpose.msra.mxu0 0.0
    %738 = vmatpush.xpose.msra.mxu0 0.0
    %739 = vmatpush.xpose.msra.mxu0 0.0
    %740 = vmatpush.xpose.msra.mxu0 0.0
    %741 = vmatpush.xpose.msra.mxu0 0.0
    %742 = vmatpush.xpose.msra.mxu0 0.0
    %743 = vmatpush.xpose.msra.mxu0 0.0
    %744 = vmatpush.xpose.msra.mxu0 0.0
    %745 = vmatpush.xpose.msra.mxu0 0.0
    %746 = vmatpush.xpose.msra.mxu0 0.0
    %747 = vmatpush.xpose.msra.mxu0 0.0
    %748 = vmatpush.xpose.msra.mxu0 %v731
    %749 = vmatmul.f32.gmra.mxu0 %v728
    %v750 = vpop.f32.mrf.mxu0
    %v751 = vadd.f32 %v82, %v750
    %752 = vdwg.mxu0
    %v754 = vsel %vm674, %v669, 0
    %v757 = vsel %vm674, %v392, 0
    %759 = vmatpush.xpose.msra.mxu0 0.0
    %760 = vmatpush.xpose.msra.mxu0 0.0
    %761 = vmatpush.xpose.msra.mxu0 0.0
    %762 = vmatpush.xpose.msra.mxu0 0.0
    %763 = vmatpush.xpose.msra.mxu0 0.0
    %764 = vmatpush.xpose.msra.mxu0 0.0
    %765 = vmatpush.xpose.msra.mxu0 0.0
    %766 = vmatpush.xpose.msra.mxu0 0.0
    %767 = vmatpush.xpose.msra.mxu0 0.0
    %768 = vmatpush.xpose.msra.mxu0 0.0
    %769 = vmatpush.xpose.msra.mxu0 0.0
    %770 = vmatpush.xpose.msra.mxu0 0.0
    %771 = vmatpush.xpose.msra.mxu0 0.0
    %772 = vmatpush.xpose.msra.mxu0 0.0
    %773 = vmatpush.xpose.msra.mxu0 0.0
    %774 = vmatpush.xpose.msra.mxu0 %v757
    %775 = vmatmul.f32.gmra.mxu0 %v754
    %v776 = vpop.f32.mrf.mxu0
    %v777 = vadd.f32 %v82, %v776
    %778 = vdwg.mxu0
    %v780 = vsel %vm674, %v670, 0
    %v783 = vsel %vm674, %v412, 0
    %785 = vmatpush.xpose.msra.mxu0 0.0
    %786 = vmatpush.xpose.msra.mxu0 0.0
    %787 = vmatpush.xpose.msra.mxu0 0.0
    %788 = vmatpush.xpose.msra.mxu0 0.0
    %789 = vmatpush.xpose.msra.mxu0 0.0
    %790 = vmatpush.xpose.msra.mxu0 0.0
    %791 = vmatpush.xpose.msra.mxu0 0.0
    %792 = vmatpush.xpose.msra.mxu0 0.0
    %793 = vmatpush.xpose.msra.mxu0 0.0
    %794 = vmatpush.xpose.msra.mxu0 0.0
    %795 = vmatpush.xpose.msra.mxu0 0.0
    %796 = vmatpush.xpose.msra.mxu0 0.0
    %797 = vmatpush.xpose.msra.mxu0 0.0
    %798 = vmatpush.xpose.msra.mxu0 0.0
    %799 = vmatpush.xpose.msra.mxu0 0.0
    %800 = vmatpush.xpose.msra.mxu0 %v783
    %801 = vmatmul.f32.gmra.mxu0 %v780
    %v802 = vpop.f32.mrf.mxu0
    %v803 = vadd.f32 %v82, %v802
    %804 = vdwg.mxu0
    %v806 = vsel %vm674, %v671, 0
    %v809 = vsel %vm674, %v432, 0
    %811 = vmatpush.xpose.msra.mxu0 0.0
    %812 = vmatpush.xpose.msra.mxu0 0.0
    %813 = vmatpush.xpose.msra.mxu0 0.0
    %814 = vmatpush.xpose.msra.mxu0 0.0
    %815 = vmatpush.xpose.msra.mxu0 0.0
    %816 = vmatpush.xpose.msra.mxu0 0.0
    %817 = vmatpush.xpose.msra.mxu0 0.0
    %818 = vmatpush.xpose.msra.mxu0 0.0
    %819 = vmatpush.xpose.msra.mxu0 0.0
    %820 = vmatpush.xpose.msra.mxu0 0.0
    %821 = vmatpush.xpose.msra.mxu0 0.0
    %822 = vmatpush.xpose.msra.mxu0 0.0
    %823 = vmatpush.xpose.msra.mxu0 0.0
    %824 = vmatpush.xpose.msra.mxu0 0.0
    %825 = vmatpush.xpose.msra.mxu0 0.0
    %826 = vmatpush.xpose.msra.mxu0 %v809
    %827 = vmatmul.f32.gmra.mxu0 %v806
    %v828 = vpop.f32.mrf.mxu0
    %v829 = vadd.f32 %v82, %v828
    %830 = vdwg.mxu0
    %v832 = vsel %vm674, %v672, 0
    %v835 = vsel %vm674, %v452, 0
    %837 = vmatpush.xpose.msra.mxu0 0.0
    %838 = vmatpush.xpose.msra.mxu0 0.0
    %839 = vmatpush.xpose.msra.mxu0 0.0
    %840 = vmatpush.xpose.msra.mxu0 0.0
    %841 = vmatpush.xpose.msra.mxu0 0.0
    %842 = vmatpush.xpose.msra.mxu0 0.0
    %843 = vmatpush.xpose.msra.mxu0 0.0
    %844 = vmatpush.xpose.msra.mxu0 0.0
    %845 = vmatpush.xpose.msra.mxu0 0.0
    %846 = vmatpush.xpose.msra.mxu0 0.0
    %847 = vmatpush.xpose.msra.mxu0 0.0
    %848 = vmatpush.xpose.msra.mxu0 0.0
    %849 = vmatpush.xpose.msra.mxu0 0.0
    %850 = vmatpush.xpose.msra.mxu0 0.0
    %851 = vmatpush.xpose.msra.mxu0 0.0
    %852 = vmatpush.xpose.msra.mxu0 %v835
    %853 = vmatmul.f32.gmra.mxu0 %v832
    %v854 = vpop.f32.mrf.mxu0
    %v855 = vadd.f32 %v82, %v854
    %856 = vdwg.mxu0
    %v858 = vsel %vm674, %v673, 0
    %v861 = vsel %vm674, %v472, 0
    %863 = vmatpush.xpose.msra.mxu0 0.0
    %864 = vmatpush.xpose.msra.mxu0 0.0
    %865 = vmatpush.xpose.msra.mxu0 0.0
    %866 = vmatpush.xpose.msra.mxu0 0.0
    %867 = vmatpush.xpose.msra.mxu0 0.0
    %868 = vmatpush.xpose.msra.mxu0 0.0
    %869 = vmatpush.xpose.msra.mxu0 0.0
    %870 = vmatpush.xpose.msra.mxu0 0.0
    %871 = vmatpush.xpose.msra.mxu0 0.0
    %872 = vmatpush.xpose.msra.mxu0 0.0
    %873 = vmatpush.xpose.msra.mxu0 0.0
    %874 = vmatpush.xpose.msra.mxu0 0.0
    %875 = vmatpush.xpose.msra.mxu0 0.0
    %876 = vmatpush.xpose.msra.mxu0 0.0
    %877 = vmatpush.xpose.msra.mxu0 0.0
    %878 = vmatpush.xpose.msra.mxu0 %v861
    %879 = vmatmul.f32.gmra.mxu0 %v858
    %v880 = vpop.f32.mrf.mxu0
    %v881 = vadd.f32 %v82, %v880
    %882 = vdwg.mxu0
    %v883 = vsel %vm674, %v699, -inf
    %884 = vmax.xlane.f32.xlu0 %v883
    %v885 = vpop.xlane.xlu0 %884
    %v886 = vsel %vm674, %v725, -inf
    %887 = vmax.xlane.f32.xlu0 %v886
    %v888 = vpop.xlane.xlu0 %887
    %v889 = vsel %vm674, %v751, -inf
    %890 = vmax.xlane.f32.xlu0 %v889
    %v891 = vpop.xlane.xlu0 %890
    %v892 = vsel %vm674, %v777, -inf
    %893 = vmax.xlane.f32.xlu0 %v892
    %v894 = vpop.xlane.xlu0 %893
    %v895 = vsel %vm674, %v803, -inf
    %896 = vmax.xlane.f32.xlu0 %v895
    %v897 = vpop.xlane.xlu0 %896
    %v898 = vsel %vm674, %v829, -inf
    %899 = vmax.xlane.f32.xlu0 %v898
    %v900 = vpop.xlane.xlu0 %899
    %v901 = vsel %vm674, %v855, -inf
    %902 = vmax.xlane.f32.xlu0 %v901
    %v903 = vpop.xlane.xlu0 %902
    %v904 = vsel %vm674, %v881, -inf
    %905 = vmax.xlane.f32.xlu0 %v904
    %v906 = vpop.xlane.xlu0 %905
    %v907 = vsub.f32 %v699, %v885
    %v908 = vsub.f32 %v725, %v888
    %v909 = vsub.f32 %v751, %v891
    %v910 = vsub.f32 %v777, %v894
    %v911 = vsub.f32 %v803, %v897
    %v912 = vsub.f32 %v829, %v900
    %v913 = vsub.f32 %v855, %v903
    %v914 = vsub.f32 %v881, %v906
    %v915 = vmul.f32 %v907, 1.442695
    %v916 = vpow.pop %v915
    %v917 = vmul.f32 %v908, 1.442695
    %v918 = vpow.pop %v917
    %v919 = vmul.f32 %v909, 1.442695
    %v920 = vpow.pop %v919
    %v921 = vmul.f32 %v910, 1.442695
    %v922 = vpow.pop %v921
    %v923 = vmul.f32 %v911, 1.442695
    %v924 = vpow.pop %v923
    %v925 = vmul.f32 %v912, 1.442695
    %v926 = vpow.pop %v925
    %v927 = vmul.f32 %v913, 1.442695
    %v928 = vpow.pop %v927
    %v929 = vmul.f32 %v914, 1.442695
    %v930 = vpow.pop %v929
    %v931 = vsel %vm674, %v916, 0.0
    %932 = vadd.xlane.f32.xlu0 %v931
    %v933 = vpop.xlane.xlu0 %932
    %v934 = vsel %vm674, %v918, 0.0
    %935 = vadd.xlane.f32.xlu0 %v934
    %v936 = vpop.xlane.xlu0 %935
    %v937 = vsel %vm674, %v920, 0.0
    %938 = vadd.xlane.f32.xlu0 %v937
    %v939 = vpop.xlane.xlu0 %938
    %v940 = vsel %vm674, %v922, 0.0
    %941 = vadd.xlane.f32.xlu0 %v940
    %v942 = vpop.xlane.xlu0 %941
    %v943 = vsel %vm674, %v924, 0.0
    %944 = vadd.xlane.f32.xlu0 %v943
    %v945 = vpop.xlane.xlu0 %944
    %v946 = vsel %vm674, %v926, 0.0
    %947 = vadd.xlane.f32.xlu0 %v946
    %v948 = vpop.xlane.xlu0 %947
    %v949 = vsel %vm674, %v928, 0.0
    %950 = vadd.xlane.f32.xlu0 %v949
    %v951 = vpop.xlane.xlu0 %950
    %v952 = vsel %vm674, %v930, 0.0
    %953 = vadd.xlane.f32.xlu0 %v952
    %v954 = vpop.xlane.xlu0 %953
    %v955 = vrcp.pop %v933
    %v956 = vrcp.pop %v936
    %v957 = vrcp.pop %v939
    %v958 = vrcp.pop %v942
    %v959 = vrcp.pop %v945
    %v960 = vrcp.pop %v948
    %v961 = vrcp.pop %v951
    %v962 = vrcp.pop %v954
    %v963 = vmul.f32 %v916, %v955
    %v964 = vmul.f32 %v918, %v956
    %v965 = vmul.f32 %v920, %v957
    %v966 = vmul.f32 %v922, %v958
    %v967 = vmul.f32 %v924, %v959
    %v968 = vmul.f32 %v926, %v960
    %v969 = vmul.f32 %v928, %v961
    %v970 = vmul.f32 %v930, %v962
    %v972 = vsel %vm674, %v963, 0
    %974 = vmatpush.msra.mxu0 0.0
    %975 = vmatpush.msra.mxu0 0.0
    %976 = vmatpush.msra.mxu0 0.0
    %977 = vmatpush.msra.mxu0 0.0
    %978 = vmatpush.msra.mxu0 0.0
    %979 = vmatpush.msra.mxu0 0.0
    %980 = vmatpush.msra.mxu0 0.0
    %981 = vmatpush.msra.mxu0 0.0
    %982 = vmatpush.msra.mxu0 0.0
    %983 = vmatpush.msra.mxu0 0.0
    %984 = vmatpush.msra.mxu0 0.0
    %985 = vmatpush.msra.mxu0 0.0
    %986 = vmatpush.msra.mxu0 0.0
    %987 = vmatpush.msra.mxu0 0.0
    %988 = vmatpush.msra.mxu0 0.0
    %989 = vmatpush.msra.mxu0 %v524
    %990 = vmatmul.f32.gmra.mxu0 %v972
    %v991 = vpop.f32.mrf.mxu0
    %v992 = vadd.f32 0.0, %v991
    %993 = vdwg.mxu0
    %v995 = vsel %vm674, %v964, 0
    %997 = vmatpush.msra.mxu0 0.0
    %998 = vmatpush.msra.mxu0 0.0
    %999 = vmatpush.msra.mxu0 0.0
    %1000 = vmatpush.msra.mxu0 0.0
    %1001 = vmatpush.msra.mxu0 0.0
    %1002 = vmatpush.msra.mxu0 0.0
    %1003 = vmatpush.msra.mxu0 0.0
    %1004 = vmatpush.msra.mxu0 0.0
    %1005 = vmatpush.msra.mxu0 0.0
    %1006 = vmatpush.msra.mxu0 0.0
    %1007 = vmatpush.msra.mxu0 0.0
    %1008 = vmatpush.msra.mxu0 0.0
    %1009 = vmatpush.msra.mxu0 0.0
    %1010 = vmatpush.msra.mxu0 0.0
    %1011 = vmatpush.msra.mxu0 0.0
    %1012 = vmatpush.msra.mxu0 %v544
    %1013 = vmatmul.f32.gmra.mxu0 %v995
    %v1014 = vpop.f32.mrf.mxu0
    %v1015 = vadd.f32 0.0, %v1014
    %1016 = vdwg.mxu0
    %v1018 = vsel %vm674, %v965, 0
    %1020 = vmatpush.msra.mxu0 0.0
    %1021 = vmatpush.msra.mxu0 0.0
    %1022 = vmatpush.msra.mxu0 0.0
    %1023 = vmatpush.msra.mxu0 0.0
    %1024 = vmatpush.msra.mxu0 0.0
    %1025 = vmatpush.msra.mxu0 0.0
    %1026 = vmatpush.msra.mxu0 0.0
    %1027 = vmatpush.msra.mxu0 0.0
    %1028 = vmatpush.msra.mxu0 0.0
    %1029 = vmatpush.msra.mxu0 0.0
    %1030 = vmatpush.msra.mxu0 0.0
    %1031 = vmatpush.msra.mxu0 0.0
    %1032 = vmatpush.msra.mxu0 0.0
    %1033 = vmatpush.msra.mxu0 0.0
    %1034 = vmatpush.msra.mxu0 0.0
    %1035 = vmatpush.msra.mxu0 %v564
    %1036 = vmatmul.f32.gmra.mxu0 %v1018
    %v1037 = vpop.f32.mrf.mxu0
    %v1038 = vadd.f32 0.0, %v1037
    %1039 = vdwg.mxu0
    %v1041 = vsel %vm674, %v966, 0
    %1043 = vmatpush.msra.mxu0 0.0
    %1044 = vmatpush.msra.mxu0 0.0
    %1045 = vmatpush.msra.mxu0 0.0
    %1046 = vmatpush.msra.mxu0 0.0
    %1047 = vmatpush.msra.mxu0 0.0
    %1048 = vmatpush.msra.mxu0 0.0
    %1049 = vmatpush.msra.mxu0 0.0
    %1050 = vmatpush.msra.mxu0 0.0
    %1051 = vmatpush.msra.mxu0 0.0
    %1052 = vmatpush.msra.mxu0 0.0
    %1053 = vmatpush.msra.mxu0 0.0
    %1054 = vmatpush.msra.mxu0 0.0
    %1055 = vmatpush.msra.mxu0 0.0
    %1056 = vmatpush.msra.mxu0 0.0
    %1057 = vmatpush.msra.mxu0 0.0
    %1058 = vmatpush.msra.mxu0 %v584
    %1059 = vmatmul.f32.gmra.mxu0 %v1041
    %v1060 = vpop.f32.mrf.mxu0
    %v1061 = vadd.f32 0.0, %v1060
    %1062 = vdwg.mxu0
    %v1064 = vsel %vm674, %v967, 0
    %1066 = vmatpush.msra.mxu0 0.0
    %1067 = vmatpush.msra.mxu0 0.0
    %1068 = vmatpush.msra.mxu0 0.0
    %1069 = vmatpush.msra.mxu0 0.0
    %1070 = vmatpush.msra.mxu0 0.0
    %1071 = vmatpush.msra.mxu0 0.0
    %1072 = vmatpush.msra.mxu0 0.0
    %1073 = vmatpush.msra.mxu0 0.0
    %1074 = vmatpush.msra.mxu0 0.0
    %1075 = vmatpush.msra.mxu0 0.0
    %1076 = vmatpush.msra.mxu0 0.0
    %1077 = vmatpush.msra.mxu0 0.0
    %1078 = vmatpush.msra.mxu0 0.0
    %1079 = vmatpush.msra.mxu0 0.0
    %1080 = vmatpush.msra.mxu0 0.0
    %1081 = vmatpush.msra.mxu0 %v604
    %1082 = vmatmul.f32.gmra.mxu0 %v1064
    %v1083 = vpop.f32.mrf.mxu0
    %v1084 = vadd.f32 0.0, %v1083
    %1085 = vdwg.mxu0
    %v1087 = vsel %vm674, %v968, 0
    %1089 = vmatpush.msra.mxu0 0.0
    %1090 = vmatpush.msra.mxu0 0.0
    %1091 = vmatpush.msra.mxu0 0.0
    %1092 = vmatpush.msra.mxu0 0.0
    %1093 = vmatpush.msra.mxu0 0.0
    %1094 = vmatpush.msra.mxu0 0.0
    %1095 = vmatpush.msra.mxu0 0.0
    %1096 = vmatpush.msra.mxu0 0.0
    %1097 = vmatpush.msra.mxu0 0.0
    %1098 = vmatpush.msra.mxu0 0.0
    %1099 = vmatpush.msra.mxu0 0.0
    %1100 = vmatpush.msra.mxu0 0.0
    %1101 = vmatpush.msra.mxu0 0.0
    %1102 = vmatpush.msra.mxu0 0.0
    %1103 = vmatpush.msra.mxu0 0.0
    %1104 = vmatpush.msra.mxu0 %v624
    %1105 = vmatmul.f32.gmra.mxu0 %v1087
    %v1106 = vpop.f32.mrf.mxu0
    %v1107 = vadd.f32 0.0, %v1106
    %1108 = vdwg.mxu0
    %v1110 = vsel %vm674, %v969, 0
    %1112 = vmatpush.msra.mxu0 0.0
    %1113 = vmatpush.msra.mxu0 0.0
    %1114 = vmatpush.msra.mxu0 0.0
    %1115 = vmatpush.msra.mxu0 0.0
    %1116 = vmatpush.msra.mxu0 0.0
    %1117 = vmatpush.msra.mxu0 0.0
    %1118 = vmatpush.msra.mxu0 0.0
    %1119 = vmatpush.msra.mxu0 0.0
    %1120 = vmatpush.msra.mxu0 0.0
    %1121 = vmatpush.msra.mxu0 0.0
    %1122 = vmatpush.msra.mxu0 0.0
    %1123 = vmatpush.msra.mxu0 0.0
    %1124 = vmatpush.msra.mxu0 0.0
    %1125 = vmatpush.msra.mxu0 0.0
    %1126 = vmatpush.msra.mxu0 0.0
    %1127 = vmatpush.msra.mxu0 %v644
    %1128 = vmatmul.f32.gmra.mxu0 %v1110
    %v1129 = vpop.f32.mrf.mxu0
    %v1130 = vadd.f32 0.0, %v1129
    %1131 = vdwg.mxu0
    %v1133 = vsel %vm674, %v970, 0
    %1135 = vmatpush.msra.mxu0 0.0
    %1136 = vmatpush.msra.mxu0 0.0
    %1137 = vmatpush.msra.mxu0 0.0
    %1138 = vmatpush.msra.mxu0 0.0
    %1139 = vmatpush.msra.mxu0 0.0
    %1140 = vmatpush.msra.mxu0 0.0
    %1141 = vmatpush.msra.mxu0 0.0
    %1142 = vmatpush.msra.mxu0 0.0
    %1143 = vmatpush.msra.mxu0 0.0
    %1144 = vmatpush.msra.mxu0 0.0
    %1145 = vmatpush.msra.mxu0 0.0
    %1146 = vmatpush.msra.mxu0 0.0
    %1147 = vmatpush.msra.mxu0 0.0
    %1148 = vmatpush.msra.mxu0 0.0
    %1149 = vmatpush.msra.mxu0 0.0
    %1150 = vmatpush.msra.mxu0 %v664
    %1151 = vmatmul.f32.gmra.mxu0 %v1133
    %v1152 = vpop.f32.mrf.mxu0
    %v1153 = vadd.f32 0.0, %v1152
    %1154 = vdwg.mxu0
    %v1155 = vld [vmem:[%s8] sm:$0xff]
    %v1156 = vld [vmem:[%s8 + $0x8] sm:$0xff]
    %v1157 = vld [vmem:[%s8 + $0x10] sm:$0xff]
    %v1158 = vld [vmem:[%s8 + $0x18] sm:$0xff]
    %v1160 = vsel %vm674, %v992, 0
    %1162 = vmatpush.msra.mxu0 0.0
    %1163 = vmatpush.msra.mxu0 0.0
    %1164 = vmatpush.msra.mxu0 0.0
    %1165 = vmatpush.msra.mxu0 0.0
    %1166 = vmatpush.msra.mxu0 0.0
    %1167 = vmatpush.msra.mxu0 0.0
    %1168 = vmatpush.msra.mxu0 0.0
    %1169 = vmatpush.msra.mxu0 0.0
    %1170 = vmatpush.msra.mxu0 0.0
    %1171 = vmatpush.msra.mxu0 0.0
    %1172 = vmatpush.msra.mxu0 0.0
    %1173 = vmatpush.msra.mxu0 0.0
    %1174 = vmatpush.msra.mxu0 0.0
    %1175 = vmatpush.msra.mxu0 0.0
    %1176 = vmatpush.msra.mxu0 0.0
    %1177 = vmatpush.msra.mxu0 %v1155
    %1178 = vmatmul.f32.gmra.mxu0 %v1160
    %v1179 = vpop.f32.mrf.mxu0
    %v1180 = vadd.f32 0.0, %v1179
    %1181 = vdwg.mxu0
    %v1183 = vsel %vm674, %v1015, 0
    %1185 = vmatpush.msra.mxu0 0.0
    %1186 = vmatpush.msra.mxu0 0.0
    %1187 = vmatpush.msra.mxu0 0.0
    %1188 = vmatpush.msra.mxu0 0.0
    %1189 = vmatpush.msra.mxu0 0.0
    %1190 = vmatpush.msra.mxu0 0.0
    %1191 = vmatpush.msra.mxu0 0.0
    %1192 = vmatpush.msra.mxu0 0.0
    %1193 = vmatpush.msra.mxu0 0.0
    %1194 = vmatpush.msra.mxu0 0.0
    %1195 = vmatpush.msra.mxu0 0.0
    %1196 = vmatpush.msra.mxu0 0.0
    %1197 = vmatpush.msra.mxu0 0.0
    %1198 = vmatpush.msra.mxu0 0.0
    %1199 = vmatpush.msra.mxu0 0.0
    %1200 = vmatpush.msra.mxu0 %v1155
    %1201 = vmatmul.f32.gmra.mxu0 %v1183
    %v1202 = vpop.f32.mrf.mxu0
    %v1203 = vadd.f32 0.0, %v1202
    %1204 = vdwg.mxu0
    %v1206 = vsel %vm674, %v1038, 0
    %1208 = vmatpush.msra.mxu0 0.0
    %1209 = vmatpush.msra.mxu0 0.0
    %1210 = vmatpush.msra.mxu0 0.0
    %1211 = vmatpush.msra.mxu0 0.0
    %1212 = vmatpush.msra.mxu0 0.0
    %1213 = vmatpush.msra.mxu0 0.0
    %1214 = vmatpush.msra.mxu0 0.0
    %1215 = vmatpush.msra.mxu0 0.0
    %1216 = vmatpush.msra.mxu0 0.0
    %1217 = vmatpush.msra.mxu0 0.0
    %1218 = vmatpush.msra.mxu0 0.0
    %1219 = vmatpush.msra.mxu0 0.0
    %1220 = vmatpush.msra.mxu0 0.0
    %1221 = vmatpush.msra.mxu0 0.0
    %1222 = vmatpush.msra.mxu0 0.0
    %1223 = vmatpush.msra.mxu0 %v1156
    %1224 = vmatmul.f32.gmra.mxu0 %v1206
    %v1225 = vpop.f32.mrf.mxu0
    %v1226 = vadd.f32 0.0, %v1225
    %1227 = vdwg.mxu0
    %v1229 = vsel %vm674, %v1061, 0
    %1231 = vmatpush.msra.mxu0 0.0
    %1232 = vmatpush.msra.mxu0 0.0
    %1233 = vmatpush.msra.mxu0 0.0
    %1234 = vmatpush.msra.mxu0 0.0
    %1235 = vmatpush.msra.mxu0 0.0
    %1236 = vmatpush.msra.mxu0 0.0
    %1237 = vmatpush.msra.mxu0 0.0
    %1238 = vmatpush.msra.mxu0 0.0
    %1239 = vmatpush.msra.mxu0 0.0
    %1240 = vmatpush.msra.mxu0 0.0
    %1241 = vmatpush.msra.mxu0 0.0
    %1242 = vmatpush.msra.mxu0 0.0
    %1243 = vmatpush.msra.mxu0 0.0
    %1244 = vmatpush.msra.mxu0 0.0
    %1245 = vmatpush.msra.mxu0 0.0
    %1246 = vmatpush.msra.mxu0 %v1156
    %1247 = vmatmul.f32.gmra.mxu0 %v1229
    %v1248 = vpop.f32.mrf.mxu0
    %v1249 = vadd.f32 0.0, %v1248
    %1250 = vdwg.mxu0
    %v1252 = vsel %vm674, %v1084, 0
    %1254 = vmatpush.msra.mxu0 0.0
    %1255 = vmatpush.msra.mxu0 0.0
    %1256 = vmatpush.msra.mxu0 0.0
    %1257 = vmatpush.msra.mxu0 0.0
    %1258 = vmatpush.msra.mxu0 0.0
    %1259 = vmatpush.msra.mxu0 0.0
    %1260 = vmatpush.msra.mxu0 0.0
    %1261 = vmatpush.msra.mxu0 0.0
    %1262 = vmatpush.msra.mxu0 0.0
    %1263 = vmatpush.msra.mxu0 0.0
    %1264 = vmatpush.msra.mxu0 0.0
    %1265 = vmatpush.msra.mxu0 0.0
    %1266 = vmatpush.msra.mxu0 0.0
    %1267 = vmatpush.msra.mxu0 0.0
    %1268 = vmatpush.msra.mxu0 0.0
    %1269 = vmatpush.msra.mxu0 %v1157
    %1270 = vmatmul.f32.gmra.mxu0 %v1252
    %v1271 = vpop.f32.mrf.mxu0
    %v1272 = vadd.f32 0.0, %v1271
    %1273 = vdwg.mxu0
    %v1275 = vsel %vm674, %v1107, 0
    %1277 = vmatpush.msra.mxu0 0.0
    %1278 = vmatpush.msra.mxu0 0.0
    %1279 = vmatpush.msra.mxu0 0.0
    %1280 = vmatpush.msra.mxu0 0.0
    %1281 = vmatpush.msra.mxu0 0.0
    %1282 = vmatpush.msra.mxu0 0.0
    %1283 = vmatpush.msra.mxu0 0.0
    %1284 = vmatpush.msra.mxu0 0.0
    %1285 = vmatpush.msra.mxu0 0.0
    %1286 = vmatpush.msra.mxu0 0.0
    %1287 = vmatpush.msra.mxu0 0.0
    %1288 = vmatpush.msra.mxu0 0.0
    %1289 = vmatpush.msra.mxu0 0.0
    %1290 = vmatpush.msra.mxu0 0.0
    %1291 = vmatpush.msra.mxu0 0.0
    %1292 = vmatpush.msra.mxu0 %v1157
    %1293 = vmatmul.f32.gmra.mxu0 %v1275
    %v1294 = vpop.f32.mrf.mxu0
    %v1295 = vadd.f32 0.0, %v1294
    %1296 = vdwg.mxu0
    %v1298 = vsel %vm674, %v1130, 0
    %1300 = vmatpush.msra.mxu0 0.0
    %1301 = vmatpush.msra.mxu0 0.0
    %1302 = vmatpush.msra.mxu0 0.0
    %1303 = vmatpush.msra.mxu0 0.0
    %1304 = vmatpush.msra.mxu0 0.0
    %1305 = vmatpush.msra.mxu0 0.0
    %1306 = vmatpush.msra.mxu0 0.0
    %1307 = vmatpush.msra.mxu0 0.0
    %1308 = vmatpush.msra.mxu0 0.0
    %1309 = vmatpush.msra.mxu0 0.0
    %1310 = vmatpush.msra.mxu0 0.0
    %1311 = vmatpush.msra.mxu0 0.0
    %1312 = vmatpush.msra.mxu0 0.0
    %1313 = vmatpush.msra.mxu0 0.0
    %1314 = vmatpush.msra.mxu0 0.0
    %1315 = vmatpush.msra.mxu0 %v1158
    %1316 = vmatmul.f32.gmra.mxu0 %v1298
    %v1317 = vpop.f32.mrf.mxu0
    %v1318 = vadd.f32 0.0, %v1317
    %1319 = vdwg.mxu0
    %v1321 = vsel %vm674, %v1153, 0
    %1323 = vmatpush.msra.mxu0 0.0
    %1324 = vmatpush.msra.mxu0 0.0
    %1325 = vmatpush.msra.mxu0 0.0
    %1326 = vmatpush.msra.mxu0 0.0
    %1327 = vmatpush.msra.mxu0 0.0
    %1328 = vmatpush.msra.mxu0 0.0
    %1329 = vmatpush.msra.mxu0 0.0
    %1330 = vmatpush.msra.mxu0 0.0
    %1331 = vmatpush.msra.mxu0 0.0
    %1332 = vmatpush.msra.mxu0 0.0
    %1333 = vmatpush.msra.mxu0 0.0
    %1334 = vmatpush.msra.mxu0 0.0
    %1335 = vmatpush.msra.mxu0 0.0
    %1336 = vmatpush.msra.mxu0 0.0
    %1337 = vmatpush.msra.mxu0 0.0
    %1338 = vmatpush.msra.mxu0 %v1158
    %1339 = vmatmul.f32.gmra.mxu0 %v1321
    %v1340 = vpop.f32.mrf.mxu0
    %v1341 = vadd.f32 0.0, %v1340
    %1342 = vdwg.mxu0
    %v1343 = vsel %vm115, %v1180, 0.0
    %v1344 = vsel %vm115, %v1226, 0.0
    %v1345 = vadd.f32 %v1343, %v1344
    %v1346 = vsel %vm115, %v1272, 0.0
    %v1347 = vadd.f32 %v1345, %v1346
    %v1348 = vsel %vm115, %v1318, 0.0
    %v1349 = vadd.f32 %v1347, %v1348
    %v1350 = vsel %vm115, %v1203, 0.0
    %v1351 = vsel %vm115, %v1249, 0.0
    %v1352 = vadd.f32 %v1350, %v1351
    %v1353 = vsel %vm115, %v1295, 0.0
    %v1354 = vadd.f32 %v1352, %v1353
    %v1355 = vsel %vm115, %v1341, 0.0
    %v1356 = vadd.f32 %v1354, %v1355
    %v1357 = vld [vmem:[%s9] sm:$0x1]
    %v1359 = vperm.slane %v1357, 0
    %v1361 = vadd.f32 %v1349, %v1359
    %v1362 = vadd.f32 %v1356, %v1359
    %v1363 = vadd.f32 %v75, %v1361
    %v1364 = vadd.f32 %v76, %v1362
    %v1365 = vld [vmem:[%s10] sm:$0x1]
    %v1366 = vld [vmem:[%s11] sm:$0x1]
    %v1367 = vsel %vm115, %v1363, 0.0
    %1368 = vadd.xlane.f32.xlu0 %v1367
    %v1369 = vpop.xlane.xlu0 %1368
    %v1370 = vsel %vm115, %v1364, 0.0
    %1371 = vadd.xlane.f32.xlu0 %v1370
    %v1372 = vpop.xlane.xlu0 %1371
    %v1373 = vrcp.pop 32.0
    %v1374 = vmul.f32 32.0, %v1373
    %v1375 = vsub.f32 1.0, %v1374
    %v1376 = vmul.f32 %v1373, %v1375
    %v1377 = vadd.f32 %v1373, %v1376
    %vm1378 = vweird.f32 %v1373
    %v1379 = vsel %vm1378, %v1373, %v1377
    %v1380 = vmul.f32 %v1369, %v1379
    %v1381 = vmul.f32 %v1372, %v1379
    %v1382 = vsub.f32 %v1363, %v1380
    %v1383 = vsub.f32 %v1364, %v1381
    %v1384 = vmul.f32 %v1382, %v1382
    %v1385 = vmul.f32 %v1383, %v1383
    %v1386 = vsel %vm115, %v1384, 0.0
    %1387 = vadd.xlane.f32.xlu0 %v1386
    %v1388 = vpop.xlane.xlu0 %1387
    %v1389 = vsel %vm115, %v1385, 0.0
    %1390 = vadd.xlane.f32.xlu0 %v1389
    %v1391 = vpop.xlane.xlu0 %1390
    %v1392 = vmul.f32 %v1388, %v1379
    %v1393 = vmul.f32 %v1391, %v1379
    %v1394 = vadd.f32 %v1392, 1e-05
    %v1395 = vadd.f32 %v1393, 1e-05
    %v1396 = vrsqrt.pop %v1394
    %v1397 = vmul.f32 %v1396, %v1394
    %v1398 = vmul.f32 %v1397, %v1396
    %v1399 = vmul.f32 0.5, %v1398
    %v1400 = vsub.f32 1.5, %v1399
    %v1401 = vmul.f32 %v1396, %v1400
    %vm1402 = vweird.f32 %v1394
    %vm1403 = vweird.f32 %v1396
    %vm1404 = vmor %vm1402, %vm1403
    %v1405 = vsel %vm1404, %v1396, %v1401
    %v1406 = vrsqrt.pop %v1395
    %v1407 = vmul.f32 %v1406, %v1395
    %v1408 = vmul.f32 %v1407, %v1406
    %v1409 = vmul.f32 0.5, %v1408
    %v1410 = vsub.f32 1.5, %v1409
    %v1411 = vmul.f32 %v1406, %v1410
    %vm1412 = vweird.f32 %v1395
    %vm1413 = vweird.f32 %v1406
    %vm1414 = vmor %vm1412, %vm1413
    %v1415 = vsel %vm1414, %v1406, %v1411
    %v1416 = vmul.f32 %v1382, %v1405
    %v1417 = vmul.f32 %v1383, %v1415
    %v1419 = vperm.slane %v1365, 0
    %v1421 = vmul.f32 %v1416, %v1419
    %v1422 = vmul.f32 %v1417, %v1419
    %v1424 = vperm.slane %v1366, 0
    %v1426 = vadd.f32 %v1421, %v1424
    %v1427 = vadd.f32 %v1422, %v1424
    %v1428 = vld [vmem:[%s12] sm:$0xff]
    %v1429 = vld [vmem:[%s12 + $0x8] sm:$0xff]
    %v1430 = vld [vmem:[%s12 + $0x10] sm:$0xff]
    %v1431 = vld [vmem:[%s12 + $0x18] sm:$0xff]
    %v1432 = vld [vmem:[%s13] sm:$0x1]
    %v1434 = vperm.slane %v1432, 0
    %v1437 = vsel %vm115, %v1426, 0
    %v1440 = vsel %vm115, %v1427, 0
    %1442 = vmatpush.msra.mxu0 0.0
    %1443 = vmatpush.msra.mxu0 0.0
    %1444 = vmatpush.msra.mxu0 0.0
    %1445 = vmatpush.msra.mxu0 0.0
    %1446 = vmatpush.msra.mxu0 0.0
    %1447 = vmatpush.msra.mxu0 0.0
    %1448 = vmatpush.msra.mxu0 0.0
    %1449 = vmatpush.msra.mxu0 0.0
    %1450 = vmatpush.msra.mxu0 0.0
    %1451 = vmatpush.msra.mxu0 0.0
    %1452 = vmatpush.msra.mxu0 0.0
    %1453 = vmatpush.msra.mxu0 0.0
    %1454 = vmatpush.msra.mxu0 %v1431
    %1455 = vmatpush.msra.mxu0 %v1430
    %1456 = vmatpush.msra.mxu0 %v1429
    %1457 = vmatpush.msra.mxu0 %v1428
    %1458 = vmatmul.f32.gmra.mxu0 %v1437
    %v1459 = vpop.f32.mrf.mxu0
    %v1460 = vadd.f32 %v1434, %v1459
    %1461 = vmatmul.f32.gmra.mxu0 %v1440
    %v1462 = vpop.f32.mrf.mxu0
    %v1463 = vadd.f32 %v1434, %v1462
    %1464 = vdwg.mxu0
    %v1465 = vmul.f32 %v1460, 0.5
    %v1466 = vmul.f32 %v1463, 0.5
    %v1467 = vmul.f32 %v1460, 0.70710677
    %v1468 = vmul.f32 %v1463, 0.70710677
    %vm1469 = vcmp.ge.f32.partialorder %v1467, 0.0
    %vm1470 = vcmp.ge.f32.partialorder %v1468, 0.0
    %v1471 = vsel %vm1469, 1.0, -1.0
    %v1472 = vsel %vm1470, 1.0, -1.0
    %v1473 = vand.u32 2147483647, %v1467
    %v1474 = vand.u32 2147483647, %v1468
    %v1475 = vmul.f32 %v1473, 0.3275911
    %v1476 = vmul.f32 %v1474, 0.3275911
    %v1477 = vadd.f32 %v1475, 1.0
    %v1478 = vadd.f32 %v1476, 1.0
    %v1479 = vrcp.pop %v1477
    %v1480 = vmul.f32 %v1477, %v1479
    %v1481 = vsub.f32 1.0, %v1480
    %v1482 = vmul.f32 %v1479, %v1481
    %v1483 = vadd.f32 %v1479, %v1482
    %vm1484 = vweird.f32 %v1477
    %vm1485 = vweird.f32 %v1479
    %vm1486 = vmor %vm1484, %vm1485
    %v1487 = vsel %vm1486, %v1479, %v1483
    %v1488 = vand.u32 2147483647, %v1477
    %vm1489 = vcmp.eq.f32.partialorder %v1488, 8.507059e+37
    %v1490 = vand.u32 %v1477, 2147483648
    %v1491 = vor.u32 1.1754944e-38, %v1490
    %v1492 = vsel %vm1489, %v1491, %v1487
    %v1493 = vmul.f32 1.0, %v1492
    %v1494 = vrcp.pop %v1478
    %v1495 = vmul.f32 %v1478, %v1494
    %v1496 = vsub.f32 1.0, %v1495
    %v1497 = vmul.f32 %v1494, %v1496
    %v1498 = vadd.f32 %v1494, %v1497
    %vm1499 = vweird.f32 %v1478
    %vm1500 = vweird.f32 %v1494
    %vm1501 = vmor %vm1499, %vm1500
    %v1502 = vsel %vm1501, %v1494, %v1498
    %v1503 = vand.u32 2147483647, %v1478
    %vm1504 = vcmp.eq.f32.partialorder %v1503, 8.507059e+37
    %v1505 = vand.u32 %v1478, 2147483648
    %v1506 = vor.u32 1.1754944e-38, %v1505
    %v1507 = vsel %vm1504, %v1506, %v1502
    %v1508 = vmul.f32 1.0, %v1507
    %v1509 = vmul.f32 %v1493, 1.0614054
    %v1510 = vmul.f32 %v1508, 1.0614054
    %v1511 = vadd.f32 %v1509, -1.4531521
    %v1512 = vadd.f32 %v1510, -1.4531521
    %v1513 = vmul.f32 %v1511, %v1493
    %v1514 = vmul.f32 %v1512, %v1508
    %v1515 = vadd.f32 %v1513, 1.4214138
    %v1516 = vadd.f32 %v1514, 1.4214138
    %v1517 = vmul.f32 %v1515, %v1493
    %v1518 = vmul.f32 %v1516, %v1508
    %v1519 = vadd.f32 %v1517, -0.28449672
    %v1520 = vadd.f32 %v1518, -0.28449672
    %v1521 = vmul.f32 %v1519, %v1493
    %v1522 = vmul.f32 %v1520, %v1508
    %v1523 = vadd.f32 %v1521, 0.2548296
    %v1524 = vadd.f32 %v1522, 0.2548296
    %v1525 = vmul.f32 %v1523, %v1493
    %v1526 = vmul.f32 %v1524, %v1508
    %v1527 = vsub.f32 0.0, %v1473
    %v1528 = vsub.f32 0.0, %v1474
    %v1529 = vmul.f32 %v1527, %v1473
    %v1530 = vmul.f32 %v1528, %v1474
    %v1531 = vmul.f32 %v1529, 1.442695
    %v1532 = vpow.pop %v1531
    %v1533 = vmul.f32 %v1530, 1.442695
    %v1534 = vpow.pop %v1533
    %v1535 = vmul.f32 %v1525, %v1532
    %v1536 = vmul.f32 %v1526, %v1534
    %v1537 = vsub.f32 1.0, %v1535
    %v1538 = vsub.f32 1.0, %v1536
    %v1539 = vmul.f32 %v1471, %v1537
    %v1540 = vmul.f32 %v1472, %v1538
    %v1541 = vadd.f32 %v1539, 1.0
    %v1542 = vadd.f32 %v1540, 1.0
    %v1543 = vmul.f32 %v1465, %v1541
    %v1544 = vmul.f32 %v1466, %v1542
    %v1545 = vld [vmem:[%s14] sm:$0xff]
    %v1546 = vld [vmem:[%s14 + $0x8] sm:$0xff]
    %v1547 = vld [vmem:[%s14 + $0x10] sm:$0xff]
    %v1548 = vld [vmem:[%s14 + $0x18] sm:$0xff]
    %v1549 = vld [vmem:[%s14 + $0x20] sm:$0xff]
    %v1550 = vld [vmem:[%s14 + $0x28] sm:$0xff]
    %v1551 = vld [vmem:[%s14 + $0x30] sm:$0xff]
    %v1552 = vld [vmem:[%s14 + $0x38] sm:$0xff]
    %v1553 = vld [vmem:[%s14 + $0x40] sm:$0xff]
    %v1554 = vld [vmem:[%s14 + $0x48] sm:$0xff]
    %v1555 = vld [vmem:[%s14 + $0x50] sm:$0xff]
    %v1556 = vld [vmem:[%s14 + $0x58] sm:$0xff]
    %v1557 = vld [vmem:[%s14 + $0x60] sm:$0xff]
    %v1558 = vld [vmem:[%s14 + $0x68] sm:$0xff]
    %v1559 = vld [vmem:[%s14 + $0x70] sm:$0xff]
    %v1560 = vld [vmem:[%s14 + $0x78] sm:$0xff]
    %v1561 = vld [vmem:[%s15] sm:$0x1]
    %v1563 = vperm.slane %v1561, 0
    %1565 = vmatpush.msra.mxu0 %v1560
    %1566 = vmatpush.msra.mxu0 %v1559
    %1567 = vmatpush.msra.mxu0 %v1558
    %1568 = vmatpush.msra.mxu0 %v1557
    %1569 = vmatpush.msra.mxu0 %v1556
    %1570 = vmatpush.msra.mxu0 %v1555
    %1571 = vmatpush.msra.mxu0 %v1554
    %1572 = vmatpush.msra.mxu0 %v1553
    %1573 = vmatpush.msra.mxu0 %v1552
    %1574 = vmatpush.msra.mxu0 %v1551
    %1575 = vmatpush.msra.mxu0 %v1550
    %1576 = vmatpush.msra.mxu0 %v1549
    %1577 = vmatpush.msra.mxu0 %v1548
    %1578 = vmatpush.msra.mxu0 %v1547
    %1579 = vmatpush.msra.mxu0 %v1546
    %1580 = vmatpush.msra.mxu0 %v1545
    %1581 = vmatmul.f32.gmra.mxu0 %v1543
    %v1582 = vpop.f32.mrf.mxu0
    %v1583 = vadd.f32 %v1563, %v1582
    %1584 = vmatmul.f32.gmra.mxu0 %v1544
    %v1585 = vpop.f32.mrf.mxu0
    %v1586 = vadd.f32 %v1563, %v1585
    %1587 = vdwg.mxu0
    %v1588 = vadd.f32 %v1426, %v1583
    %v1589 = vadd.f32 %v1427, %v1586
    %v1590 = vld [vmem:[%s16] sm:$0x1]
    %v1591 = vld [vmem:[%s17] sm:$0x1]
    %v1592 = vsel %vm115, %v1588, 0.0
    %1593 = vadd.xlane.f32.xlu0 %v1592
    %v1594 = vpop.xlane.xlu0 %1593
    %v1595 = vsel %vm115, %v1589, 0.0
    %1596 = vadd.xlane.f32.xlu0 %v1595
    %v1597 = vpop.xlane.xlu0 %1596
    %v1598 = vmul.f32 %v1594, %v1379
    %v1599 = vmul.f32 %v1597, %v1379
    %v1600 = vsub.f32 %v1588, %v1598
    %v1601 = vsub.f32 %v1589, %v1599
    %v1602 = vmul.f32 %v1600, %v1600
    %v1603 = vmul.f32 %v1601, %v1601
    %v1604 = vsel %vm115, %v1602, 0.0
    %1605 = vadd.xlane.f32.xlu0 %v1604
    %v1606 = vpop.xlane.xlu0 %1605
    %v1607 = vsel %vm115, %v1603, 0.0
    %1608 = vadd.xlane.f32.xlu0 %v1607
    %v1609 = vpop.xlane.xlu0 %1608
    %v1610 = vmul.f32 %v1606, %v1379
    %v1611 = vmul.f32 %v1609, %v1379
    %v1612 = vadd.f32 %v1610, 1e-05
    %v1613 = vadd.f32 %v1611, 1e-05
    %v1614 = vrsqrt.pop %v1612
    %v1615 = vmul.f32 %v1614, %v1612
    %v1616 = vmul.f32 %v1615, %v1614
    %v1617 = vmul.f32 0.5, %v1616
    %v1618 = vsub.f32 1.5, %v1617
    %v1619 = vmul.f32 %v1614, %v1618
    %vm1620 = vweird.f32 %v1612
    %vm1621 = vweird.f32 %v1614
    %vm1622 = vmor %vm1620, %vm1621
    %v1623 = vsel %vm1622, %v1614, %v1619
    %v1624 = vrsqrt.pop %v1613
    %v1625 = vmul.f32 %v1624, %v1613
    %v1626 = vmul.f32 %v1625, %v1624
    %v1627 = vmul.f32 0.5, %v1626
    %v1628 = vsub.f32 1.5, %v1627
    %v1629 = vmul.f32 %v1624, %v1628
    %vm1630 = vweird.f32 %v1613
    %vm1631 = vweird.f32 %v1624
    %vm1632 = vmor %vm1630, %vm1631
    %v1633 = vsel %vm1632, %v1624, %v1629
    %v1634 = vmul.f32 %v1600, %v1623
    %v1635 = vmul.f32 %v1601, %v1633
    %v1637 = vperm.slane %v1590, 0
    %v1639 = vmul.f32 %v1634, %v1637
    %v1640 = vmul.f32 %v1635, %v1637
    %v1642 = vperm.slane %v1591, 0
    %v1644 = vadd.f32 %v1639, %v1642
    %v1645 = vadd.f32 %v1640, %v1642
    %s1646 = scalar_lea.vmem %s2, 128
    %v1647 = vld [vmem:[%s1646] sm:$0xff]
    %v1648 = vld [vmem:[%s1646 + $0x8] sm:$0xff]
    %v1649 = vld [vmem:[%s1646 + $0x10] sm:$0xff]
    %v1650 = vld [vmem:[%s1646 + $0x18] sm:$0xff]
    %v1651 = vld [vmem:[%s1646 + $0x20] sm:$0xff]
    %v1652 = vld [vmem:[%s1646 + $0x28] sm:$0xff]
    %v1653 = vld [vmem:[%s1646 + $0x30] sm:$0xff]
    %v1654 = vld [vmem:[%s1646 + $0x38] sm:$0xff]
    %v1655 = vld [vmem:[%s1646 + $0x40] sm:$0xff]
    %v1656 = vld [vmem:[%s1646 + $0x48] sm:$0xff]
    %v1657 = vld [vmem:[%s1646 + $0x50] sm:$0xff]
    %v1658 = vld [vmem:[%s1646 + $0x58] sm:$0xff]
    %v1659 = vld [vmem:[%s1646 + $0x60] sm:$0xff]
    %v1660 = vld [vmem:[%s1646 + $0x68] sm:$0xff]
    %v1661 = vld [vmem:[%s1646 + $0x70] sm:$0xff]
    %v1662 = vld [vmem:[%s1646 + $0x78] sm:$0xff]
    %s1663 = scalar_lea.vmem %s3, 4
    %v1664 = vld [vmem:[%s1663] sm:$0x1]
    %v1665 = vld [vmem:[%s1663 + $0x1] sm:$0x1]
    %v1666 = vld [vmem:[%s1663 + $0x2] sm:$0x1]
    %v1667 = vld [vmem:[%s1663 + $0x3] sm:$0x1]
    %v1672 = vperm.slane %v1664, 0
    %v1673 = vperm.slane %v1665, 0
    %v1674 = vperm.slane %v1666, 0
    %v1675 = vperm.slane %v1667, 0
    %v1681 = vsel %vm115, %v1644, 0
    %1683 = vmatpush.msra.mxu0 0.0
    %1684 = vmatpush.msra.mxu0 0.0
    %1685 = vmatpush.msra.mxu0 0.0
    %1686 = vmatpush.msra.mxu0 0.0
    %1687 = vmatpush.msra.mxu0 0.0
    %1688 = vmatpush.msra.mxu0 0.0
    %1689 = vmatpush.msra.mxu0 0.0
    %1690 = vmatpush.msra.mxu0 0.0
    %1691 = vmatpush.msra.mxu0 0.0
    %1692 = vmatpush.msra.mxu0 0.0
    %1693 = vmatpush.msra.mxu0 0.0
    %1694 = vmatpush.msra.mxu0 0.0
    %1695 = vmatpush.msra.mxu0 %v1650
    %1696 = vmatpush.msra.mxu0 %v1649
    %1697 = vmatpush.msra.mxu0 %v1648
    %1698 = vmatpush.msra.mxu0 %v1647
    %1699 = vmatmul.f32.gmra.mxu0 %v1681
    %v1700 = vpop.f32.mrf.mxu0
    %v1701 = vadd.f32 %v1672, %v1700
    %1702 = vdwg.mxu0
    %v1704 = vsel %vm115, %v1645, 0
    %1706 = vmatpush.msra.mxu0 0.0
    %1707 = vmatpush.msra.mxu0 0.0
    %1708 = vmatpush.msra.mxu0 0.0
    %1709 = vmatpush.msra.mxu0 0.0
    %1710 = vmatpush.msra.mxu0 0.0
    %1711 = vmatpush.msra.mxu0 0.0
    %1712 = vmatpush.msra.mxu0 0.0
    %1713 = vmatpush.msra.mxu0 0.0
    %1714 = vmatpush.msra.mxu0 0.0
    %1715 = vmatpush.msra.mxu0 0.0
    %1716 = vmatpush.msra.mxu0 0.0
    %1717 = vmatpush.msra.mxu0 0.0
    %1718 = vmatpush.msra.mxu0 %v1650
    %1719 = vmatpush.msra.mxu0 %v1649
    %1720 = vmatpush.msra.mxu0 %v1648
    %1721 = vmatpush.msra.mxu0 %v1647
    %1722 = vmatmul.f32.gmra.mxu0 %v1704
    %v1723 = vpop.f32.mrf.mxu0
    %v1724 = vadd.f32 %v1672, %v1723
    %1725 = vdwg.mxu0
    %1726 = vmatpush.msra.mxu0 0.0
    %1727 = vmatpush.msra.mxu0 0.0
    %1728 = vmatpush.msra.mxu0 0.0
    %1729 = vmatpush.msra.mxu0 0.0
    %1730 = vmatpush.msra.mxu0 0.0
    %1731 = vmatpush.msra.mxu0 0.0
    %1732 = vmatpush.msra.mxu0 0.0
    %1733 = vmatpush.msra.mxu0 0.0
    %1734 = vmatpush.msra.mxu0 0.0
    %1735 = vmatpush.msra.mxu0 0.0
    %1736 = vmatpush.msra.mxu0 0.0
    %1737 = vmatpush.msra.mxu0 0.0
    %1738 = vmatpush.msra.mxu0 %v1654
    %1739 = vmatpush.msra.mxu0 %v1653
    %1740 = vmatpush.msra.mxu0 %v1652
    %1741 = vmatpush.msra.mxu0 %v1651
    %1742 = vmatmul.f32.gmra.mxu0 %v1681
    %v1743 = vpop.f32.mrf.mxu0
    %v1744 = vadd.f32 %v1673, %v1743
    %1745 = vdwg.mxu0
    %1746 = vmatpush.msra.mxu0 0.0
    %1747 = vmatpush.msra.mxu0 0.0
    %1748 = vmatpush.msra.mxu0 0.0
    %1749 = vmatpush.msra.mxu0 0.0
    %1750 = vmatpush.msra.mxu0 0.0
    %1751 = vmatpush.msra.mxu0 0.0
    %1752 = vmatpush.msra.mxu0 0.0
    %1753 = vmatpush.msra.mxu0 0.0
    %1754 = vmatpush.msra.mxu0 0.0
    %1755 = vmatpush.msra.mxu0 0.0
    %1756 = vmatpush.msra.mxu0 0.0
    %1757 = vmatpush.msra.mxu0 0.0
    %1758 = vmatpush.msra.mxu0 %v1654
    %1759 = vmatpush.msra.mxu0 %v1653
    %1760 = vmatpush.msra.mxu0 %v1652
    %1761 = vmatpush.msra.mxu0 %v1651
    %1762 = vmatmul.f32.gmra.mxu0 %v1704
    %v1763 = vpop.f32.mrf.mxu0
    %v1764 = vadd.f32 %v1673, %v1763
    %1765 = vdwg.mxu0
    %1766 = vmatpush.msra.mxu0 0.0
    %1767 = vmatpush.msra.mxu0 0.0
    %1768 = vmatpush.msra.mxu0 0.0
    %1769 = vmatpush.msra.mxu0 0.0
    %1770 = vmatpush.msra.mxu0 0.0
    %1771 = vmatpush.msra.mxu0 0.0
    %1772 = vmatpush.msra.mxu0 0.0
    %1773 = vmatpush.msra.mxu0 0.0
    %1774 = vmatpush.msra.mxu0 0.0
    %1775 = vmatpush.msra.mxu0 0.0
    %1776 = vmatpush.msra.mxu0 0.0
    %1777 = vmatpush.msra.mxu0 0.0
    %1778 = vmatpush.msra.mxu0 %v1658
    %1779 = vmatpush.msra.mxu0 %v1657
    %1780 = vmatpush.msra.mxu0 %v1656
    %1781 = vmatpush.msra.mxu0 %v1655
    %1782 = vmatmul.f32.gmra.mxu0 %v1681
    %v1783 = vpop.f32.mrf.mxu0
    %v1784 = vadd.f32 %v1674, %v1783
    %1785 = vdwg.mxu0
    %1786 = vmatpush.msra.mxu0 0.0
    %1787 = vmatpush.msra.mxu0 0.0
    %1788 = vmatpush.msra.mxu0 0.0
    %1789 = vmatpush.msra.mxu0 0.0
    %1790 = vmatpush.msra.mxu0 0.0
    %1791 = vmatpush.msra.mxu0 0.0
    %1792 = vmatpush.msra.mxu0 0.0
    %1793 = vmatpush.msra.mxu0 0.0
    %1794 = vmatpush.msra.mxu0 0.0
    %1795 = vmatpush.msra.mxu0 0.0
    %1796 = vmatpush.msra.mxu0 0.0
    %1797 = vmatpush.msra.mxu0 0.0
    %1798 = vmatpush.msra.mxu0 %v1658
    %1799 = vmatpush.msra.mxu0 %v1657
    %1800 = vmatpush.msra.mxu0 %v1656
    %1801 = vmatpush.msra.mxu0 %v1655
    %1802 = vmatmul.f32.gmra.mxu0 %v1704
    %v1803 = vpop.f32.mrf.mxu0
    %v1804 = vadd.f32 %v1674, %v1803
    %1805 = vdwg.mxu0
    %1806 = vmatpush.msra.mxu0 0.0
    %1807 = vmatpush.msra.mxu0 0.0
    %1808 = vmatpush.msra.mxu0 0.0
    %1809 = vmatpush.msra.mxu0 0.0
    %1810 = vmatpush.msra.mxu0 0.0
    %1811 = vmatpush.msra.mxu0 0.0
    %1812 = vmatpush.msra.mxu0 0.0
    %1813 = vmatpush.msra.mxu0 0.0
    %1814 = vmatpush.msra.mxu0 0.0
    %1815 = vmatpush.msra.mxu0 0.0
    %1816 = vmatpush.msra.mxu0 0.0
    %1817 = vmatpush.msra.mxu0 0.0
    %1818 = vmatpush.msra.mxu0 %v1662
    %1819 = vmatpush.msra.mxu0 %v1661
    %1820 = vmatpush.msra.mxu0 %v1660
    %1821 = vmatpush.msra.mxu0 %v1659
    %1822 = vmatmul.f32.gmra.mxu0 %v1681
    %v1823 = vpop.f32.mrf.mxu0
    %v1824 = vadd.f32 %v1675, %v1823
    %1825 = vdwg.mxu0
    %1826 = vmatpush.msra.mxu0 0.0
    %1827 = vmatpush.msra.mxu0 0.0
    %1828 = vmatpush.msra.mxu0 0.0
    %1829 = vmatpush.msra.mxu0 0.0
    %1830 = vmatpush.msra.mxu0 0.0
    %1831 = vmatpush.msra.mxu0 0.0
    %1832 = vmatpush.msra.mxu0 0.0
    %1833 = vmatpush.msra.mxu0 0.0
    %1834 = vmatpush.msra.mxu0 0.0
    %1835 = vmatpush.msra.mxu0 0.0
    %1836 = vmatpush.msra.mxu0 0.0
    %1837 = vmatpush.msra.mxu0 0.0
    %1838 = vmatpush.msra.mxu0 %v1662
    %1839 = vmatpush.msra.mxu0 %v1661
    %1840 = vmatpush.msra.mxu0 %v1660
    %1841 = vmatpush.msra.mxu0 %v1659
    %1842 = vmatmul.f32.gmra.mxu0 %v1704
    %v1843 = vpop.f32.mrf.mxu0
    %v1844 = vadd.f32 %v1675, %v1843
    %1845 = vdwg.mxu0
    %s1846 = scalar_lea.vmem %s4, 128
    %v1847 = vld [vmem:[%s1846] sm:$0xff]
    %v1848 = vld [vmem:[%s1846 + $0x8] sm:$0xff]
    %v1849 = vld [vmem:[%s1846 + $0x10] sm:$0xff]
    %v1850 = vld [vmem:[%s1846 + $0x18] sm:$0xff]
    %v1851 = vld [vmem:[%s1846 + $0x20] sm:$0xff]
    %v1852 = vld [vmem:[%s1846 + $0x28] sm:$0xff]
    %v1853 = vld [vmem:[%s1846 + $0x30] sm:$0xff]
    %v1854 = vld [vmem:[%s1846 + $0x38] sm:$0xff]
    %v1855 = vld [vmem:[%s1846 + $0x40] sm:$0xff]
    %v1856 = vld [vmem:[%s1846 + $0x48] sm:$0xff]
    %v1857 = vld [vmem:[%s1846 + $0x50] sm:$0xff]
    %v1858 = vld [vmem:[%s1846 + $0x58] sm:$0xff]
    %v1859 = vld [vmem:[%s1846 + $0x60] sm:$0xff]
    %v1860 = vld [vmem:[%s1846 + $0x68] sm:$0xff]
    %v1861 = vld [vmem:[%s1846 + $0x70] sm:$0xff]
    %v1862 = vld [vmem:[%s1846 + $0x78] sm:$0xff]
    %s1863 = scalar_lea.vmem %s5, 4
    %v1864 = vld [vmem:[%s1863] sm:$0x1]
    %v1865 = vld [vmem:[%s1863 + $0x1] sm:$0x1]
    %v1866 = vld [vmem:[%s1863 + $0x2] sm:$0x1]
    %v1867 = vld [vmem:[%s1863 + $0x3] sm:$0x1]
    %v1872 = vperm.slane %v1864, 0
    %v1873 = vperm.slane %v1865, 0
    %v1874 = vperm.slane %v1866, 0
    %v1875 = vperm.slane %v1867, 0
    %1880 = vmatpush.msra.mxu0 0.0
    %1881 = vmatpush.msra.mxu0 0.0
    %1882 = vmatpush.msra.mxu0 0.0
    %1883 = vmatpush.msra.mxu0 0.0
    %1884 = vmatpush.msra.mxu0 0.0
    %1885 = vmatpush.msra.mxu0 0.0
    %1886 = vmatpush.msra.mxu0 0.0
    %1887 = vmatpush.msra.mxu0 0.0
    %1888 = vmatpush.msra.mxu0 0.0
    %1889 = vmatpush.msra.mxu0 0.0
    %1890 = vmatpush.msra.mxu0 0.0
    %1891 = vmatpush.msra.mxu0 0.0
    %1892 = vmatpush.msra.mxu0 %v1850
    %1893 = vmatpush.msra.mxu0 %v1849
    %1894 = vmatpush.msra.mxu0 %v1848
    %1895 = vmatpush.msra.mxu0 %v1847
    %1896 = vmatmul.f32.gmra.mxu0 %v1681
    %v1897 = vpop.f32.mrf.mxu0
    %v1898 = vadd.f32 %v1872, %v1897
    %1899 = vdwg.mxu0
    %1900 = vmatpush.msra.mxu0 0.0
    %1901 = vmatpush.msra.mxu0 0.0
    %1902 = vmatpush.msra.mxu0 0.0
    %1903 = vmatpush.msra.mxu0 0.0
    %1904 = vmatpush.msra.mxu0 0.0
    %1905 = vmatpush.msra.mxu0 0.0
    %1906 = vmatpush.msra.mxu0 0.0
    %1907 = vmatpush.msra.mxu0 0.0
    %1908 = vmatpush.msra.mxu0 0.0
    %1909 = vmatpush.msra.mxu0 0.0
    %1910 = vmatpush.msra.mxu0 0.0
    %1911 = vmatpush.msra.mxu0 0.0
    %1912 = vmatpush.msra.mxu0 %v1850
    %1913 = vmatpush.msra.mxu0 %v1849
    %1914 = vmatpush.msra.mxu0 %v1848
    %1915 = vmatpush.msra.mxu0 %v1847
    %1916 = vmatmul.f32.gmra.mxu0 %v1704
    %v1917 = vpop.f32.mrf.mxu0
    %v1918 = vadd.f32 %v1872, %v1917
    %1919 = vdwg.mxu0
    %1920 = vmatpush.msra.mxu0 0.0
    %1921 = vmatpush.msra.mxu0 0.0
    %1922 = vmatpush.msra.mxu0 0.0
    %1923 = vmatpush.msra.mxu0 0.0
    %1924 = vmatpush.msra.mxu0 0.0
    %1925 = vmatpush.msra.mxu0 0.0
    %1926 = vmatpush.msra.mxu0 0.0
    %1927 = vmatpush.msra.mxu0 0.0
    %1928 = vmatpush.msra.mxu0 0.0
    %1929 = vmatpush.msra.mxu0 0.0
    %1930 = vmatpush.msra.mxu0 0.0
    %1931 = vmatpush.msra.mxu0 0.0
    %1932 = vmatpush.msra.mxu0 %v1854
    %1933 = vmatpush.msra.mxu0 %v1853
    %1934 = vmatpush.msra.mxu0 %v1852
    %1935 = vmatpush.msra.mxu0 %v1851
    %1936 = vmatmul.f32.gmra.mxu0 %v1681
    %v1937 = vpop.f32.mrf.mxu0
    %v1938 = vadd.f32 %v1873, %v1937
    %1939 = vdwg.mxu0
    %1940 = vmatpush.msra.mxu0 0.0
    %1941 = vmatpush.msra.mxu0 0.0
    %1942 = vmatpush.msra.mxu0 0.0
    %1943 = vmatpush.msra.mxu0 0.0
    %1944 = vmatpush.msra.mxu0 0.0
    %1945 = vmatpush.msra.mxu0 0.0
    %1946 = vmatpush.msra.mxu0 0.0
    %1947 = vmatpush.msra.mxu0 0.0
    %1948 = vmatpush.msra.mxu0 0.0
    %1949 = vmatpush.msra.mxu0 0.0
    %1950 = vmatpush.msra.mxu0 0.0
    %1951 = vmatpush.msra.mxu0 0.0
    %1952 = vmatpush.msra.mxu0 %v1854
    %1953 = vmatpush.msra.mxu0 %v1853
    %1954 = vmatpush.msra.mxu0 %v1852
    %1955 = vmatpush.msra.mxu0 %v1851
    %1956 = vmatmul.f32.gmra.mxu0 %v1704
    %v1957 = vpop.f32.mrf.mxu0
    %v1958 = vadd.f32 %v1873, %v1957
    %1959 = vdwg.mxu0
    %1960 = vmatpush.msra.mxu0 0.0
    %1961 = vmatpush.msra.mxu0 0.0
    %1962 = vmatpush.msra.mxu0 0.0
    %1963 = vmatpush.msra.mxu0 0.0
    %1964 = vmatpush.msra.mxu0 0.0
    %1965 = vmatpush.msra.mxu0 0.0
    %1966 = vmatpush.msra.mxu0 0.0
    %1967 = vmatpush.msra.mxu0 0.0
    %1968 = vmatpush.msra.mxu0 0.0
    %1969 = vmatpush.msra.mxu0 0.0
    %1970 = vmatpush.msra.mxu0 0.0
    %1971 = vmatpush.msra.mxu0 0.0
    %1972 = vmatpush.msra.mxu0 %v1858
    %1973 = vmatpush.msra.mxu0 %v1857
    %1974 = vmatpush.msra.mxu0 %v1856
    %1975 = vmatpush.msra.mxu0 %v1855
    %1976 = vmatmul.f32.gmra.mxu0 %v1681
    %v1977 = vpop.f32.mrf.mxu0
    %v1978 = vadd.f32 %v1874, %v1977
    %1979 = vdwg.mxu0
    %1980 = vmatpush.msra.mxu0 0.0
    %1981 = vmatpush.msra.mxu0 0.0
    %1982 = vmatpush.msra.mxu0 0.0
    %1983 = vmatpush.msra.mxu0 0.0
    %1984 = vmatpush.msra.mxu0 0.0
    %1985 = vmatpush.msra.mxu0 0.0
    %1986 = vmatpush.msra.mxu0 0.0
    %1987 = vmatpush.msra.mxu0 0.0
    %1988 = vmatpush.msra.mxu0 0.0
    %1989 = vmatpush.msra.mxu0 0.0
    %1990 = vmatpush.msra.mxu0 0.0
    %1991 = vmatpush.msra.mxu0 0.0
    %1992 = vmatpush.msra.mxu0 %v1858
    %1993 = vmatpush.msra.mxu0 %v1857
    %1994 = vmatpush.msra.mxu0 %v1856
    %1995 = vmatpush.msra.mxu0 %v1855
    %1996 = vmatmul.f32.gmra.mxu0 %v1704
    %v1997 = vpop.f32.mrf.mxu0
    %v1998 = vadd.f32 %v1874, %v1997
    %1999 = vdwg.mxu0
    %2000 = vmatpush.msra.mxu0 0.0
    %2001 = vmatpush.msra.mxu0 0.0
    %2002 = vmatpush.msra.mxu0 0.0
    %2003 = vmatpush.msra.mxu0 0.0
    %2004 = vmatpush.msra.mxu0 0.0
    %2005 = vmatpush.msra.mxu0 0.0
    %2006 = vmatpush.msra.mxu0 0.0
    %2007 = vmatpush.msra.mxu0 0.0
    %2008 = vmatpush.msra.mxu0 0.0
    %2009 = vmatpush.msra.mxu0 0.0
    %2010 = vmatpush.msra.mxu0 0.0
    %2011 = vmatpush.msra.mxu0 0.0
    %2012 = vmatpush.msra.mxu0 %v1862
    %2013 = vmatpush.msra.mxu0 %v1861
    %2014 = vmatpush.msra.mxu0 %v1860
    %2015 = vmatpush.msra.mxu0 %v1859
    %2016 = vmatmul.f32.gmra.mxu0 %v1681
    %v2017 = vpop.f32.mrf.mxu0
    %v2018 = vadd.f32 %v1875, %v2017
    %2019 = vdwg.mxu0
    %2020 = vmatpush.msra.mxu0 0.0
    %2021 = vmatpush.msra.mxu0 0.0
    %2022 = vmatpush.msra.mxu0 0.0
    %2023 = vmatpush.msra.mxu0 0.0
    %2024 = vmatpush.msra.mxu0 0.0
    %2025 = vmatpush.msra.mxu0 0.0
    %2026 = vmatpush.msra.mxu0 0.0
    %2027 = vmatpush.msra.mxu0 0.0
    %2028 = vmatpush.msra.mxu0 0.0
    %2029 = vmatpush.msra.mxu0 0.0
    %2030 = vmatpush.msra.mxu0 0.0
    %2031 = vmatpush.msra.mxu0 0.0
    %2032 = vmatpush.msra.mxu0 %v1862
    %2033 = vmatpush.msra.mxu0 %v1861
    %2034 = vmatpush.msra.mxu0 %v1860
    %2035 = vmatpush.msra.mxu0 %v1859
    %2036 = vmatmul.f32.gmra.mxu0 %v1704
    %v2037 = vpop.f32.mrf.mxu0
    %v2038 = vadd.f32 %v1875, %v2037
    %2039 = vdwg.mxu0
    %s2040 = scalar_lea.vmem %s6, 128
    %v2041 = vld [vmem:[%s2040] sm:$0xff]
    %v2042 = vld [vmem:[%s2040 + $0x8] sm:$0xff]
    %v2043 = vld [vmem:[%s2040 + $0x10] sm:$0xff]
    %v2044 = vld [vmem:[%s2040 + $0x18] sm:$0xff]
    %v2045 = vld [vmem:[%s2040 + $0x20] sm:$0xff]
    %v2046 = vld [vmem:[%s2040 + $0x28] sm:$0xff]
    %v2047 = vld [vmem:[%s2040 + $0x30] sm:$0xff]
    %v2048 = vld [vmem:[%s2040 + $0x38] sm:$0xff]
    %v2049 = vld [vmem:[%s2040 + $0x40] sm:$0xff]
    %v2050 = vld [vmem:[%s2040 + $0x48] sm:$0xff]
    %v2051 = vld [vmem:[%s2040 + $0x50] sm:$0xff]
    %v2052 = vld [vmem:[%s2040 + $0x58] sm:$0xff]
    %v2053 = vld [vmem:[%s2040 + $0x60] sm:$0xff]
    %v2054 = vld [vmem:[%s2040 + $0x68] sm:$0xff]
    %v2055 = vld [vmem:[%s2040 + $0x70] sm:$0xff]
    %v2056 = vld [vmem:[%s2040 + $0x78] sm:$0xff]
    %s2057 = scalar_lea.vmem %s7, 4
    %v2058 = vld [vmem:[%s2057] sm:$0x1]
    %v2059 = vld [vmem:[%s2057 + $0x1] sm:$0x1]
    %v2060 = vld [vmem:[%s2057 + $0x2] sm:$0x1]
    %v2061 = vld [vmem:[%s2057 + $0x3] sm:$0x1]
    %v2066 = vperm.slane %v2058, 0
    %v2067 = vperm.slane %v2059, 0
    %v2068 = vperm.slane %v2060, 0
    %v2069 = vperm.slane %v2061, 0
    %2074 = vmatpush.msra.mxu0 0.0
    %2075 = vmatpush.msra.mxu0 0.0
    %2076 = vmatpush.msra.mxu0 0.0
    %2077 = vmatpush.msra.mxu0 0.0
    %2078 = vmatpush.msra.mxu0 0.0
    %2079 = vmatpush.msra.mxu0 0.0
    %2080 = vmatpush.msra.mxu0 0.0
    %2081 = vmatpush.msra.mxu0 0.0
    %2082 = vmatpush.msra.mxu0 0.0
    %2083 = vmatpush.msra.mxu0 0.0
    %2084 = vmatpush.msra.mxu0 0.0
    %2085 = vmatpush.msra.mxu0 0.0
    %2086 = vmatpush.msra.mxu0 %v2044
    %2087 = vmatpush.msra.mxu0 %v2043
    %2088 = vmatpush.msra.mxu0 %v2042
    %2089 = vmatpush.msra.mxu0 %v2041
    %2090 = vmatmul.f32.gmra.mxu0 %v1681
    %v2091 = vpop.f32.mrf.mxu0
    %v2092 = vadd.f32 %v2066, %v2091
    %2093 = vdwg.mxu0
    %2094 = vmatpush.msra.mxu0 0.0
    %2095 = vmatpush.msra.mxu0 0.0
    %2096 = vmatpush.msra.mxu0 0.0
    %2097 = vmatpush.msra.mxu0 0.0
    %2098 = vmatpush.msra.mxu0 0.0
    %2099 = vmatpush.msra.mxu0 0.0
    %2100 = vmatpush.msra.mxu0 0.0
    %2101 = vmatpush.msra.mxu0 0.0
    %2102 = vmatpush.msra.mxu0 0.0
    %2103 = vmatpush.msra.mxu0 0.0
    %2104 = vmatpush.msra.mxu0 0.0
    %2105 = vmatpush.msra.mxu0 0.0
    %2106 = vmatpush.msra.mxu0 %v2044
    %2107 = vmatpush.msra.mxu0 %v2043
    %2108 = vmatpush.msra.mxu0 %v2042
    %2109 = vmatpush.msra.mxu0 %v2041
    %2110 = vmatmul.f32.gmra.mxu0 %v1704
    %v2111 = vpop.f32.mrf.mxu0
    %v2112 = vadd.f32 %v2066, %v2111
    %2113 = vdwg.mxu0
    %2114 = vmatpush.msra.mxu0 0.0
    %2115 = vmatpush.msra.mxu0 0.0
    %2116 = vmatpush.msra.mxu0 0.0
    %2117 = vmatpush.msra.mxu0 0.0
    %2118 = vmatpush.msra.mxu0 0.0
    %2119 = vmatpush.msra.mxu0 0.0
    %2120 = vmatpush.msra.mxu0 0.0
    %2121 = vmatpush.msra.mxu0 0.0
    %2122 = vmatpush.msra.mxu0 0.0
    %2123 = vmatpush.msra.mxu0 0.0
    %2124 = vmatpush.msra.mxu0 0.0
    %2125 = vmatpush.msra.mxu0 0.0
    %2126 = vmatpush.msra.mxu0 %v2048
    %2127 = vmatpush.msra.mxu0 %v2047
    %2128 = vmatpush.msra.mxu0 %v2046
    %2129 = vmatpush.msra.mxu0 %v2045
    %2130 = vmatmul.f32.gmra.mxu0 %v1681
    %v2131 = vpop.f32.mrf.mxu0
    %v2132 = vadd.f32 %v2067, %v2131
    %2133 = vdwg.mxu0
    %2134 = vmatpush.msra.mxu0 0.0
    %2135 = vmatpush.msra.mxu0 0.0
    %2136 = vmatpush.msra.mxu0 0.0
    %2137 = vmatpush.msra.mxu0 0.0
    %2138 = vmatpush.msra.mxu0 0.0
    %2139 = vmatpush.msra.mxu0 0.0
    %2140 = vmatpush.msra.mxu0 0.0
    %2141 = vmatpush.msra.mxu0 0.0
    %2142 = vmatpush.msra.mxu0 0.0
    %2143 = vmatpush.msra.mxu0 0.0
    %2144 = vmatpush.msra.mxu0 0.0
    %2145 = vmatpush.msra.mxu0 0.0
    %2146 = vmatpush.msra.mxu0 %v2048
    %2147 = vmatpush.msra.mxu0 %v2047
    %2148 = vmatpush.msra.mxu0 %v2046
    %2149 = vmatpush.msra.mxu0 %v2045
    %2150 = vmatmul.f32.gmra.mxu0 %v1704
    %v2151 = vpop.f32.mrf.mxu0
    %v2152 = vadd.f32 %v2067, %v2151
    %2153 = vdwg.mxu0
    %2154 = vmatpush.msra.mxu0 0.0
    %2155 = vmatpush.msra.mxu0 0.0
    %2156 = vmatpush.msra.mxu0 0.0
    %2157 = vmatpush.msra.mxu0 0.0
    %2158 = vmatpush.msra.mxu0 0.0
    %2159 = vmatpush.msra.mxu0 0.0
    %2160 = vmatpush.msra.mxu0 0.0
    %2161 = vmatpush.msra.mxu0 0.0
    %2162 = vmatpush.msra.mxu0 0.0
    %2163 = vmatpush.msra.mxu0 0.0
    %2164 = vmatpush.msra.mxu0 0.0
    %2165 = vmatpush.msra.mxu0 0.0
    %2166 = vmatpush.msra.mxu0 %v2052
    %2167 = vmatpush.msra.mxu0 %v2051
    %2168 = vmatpush.msra.mxu0 %v2050
    %2169 = vmatpush.msra.mxu0 %v2049
    %2170 = vmatmul.f32.gmra.mxu0 %v1681
    %v2171 = vpop.f32.mrf.mxu0
    %v2172 = vadd.f32 %v2068, %v2171
    %2173 = vdwg.mxu0
    %2174 = vmatpush.msra.mxu0 0.0
    %2175 = vmatpush.msra.mxu0 0.0
    %2176 = vmatpush.msra.mxu0 0.0
    %2177 = vmatpush.msra.mxu0 0.0
    %2178 = vmatpush.msra.mxu0 0.0
    %2179 = vmatpush.msra.mxu0 0.0
    %2180 = vmatpush.msra.mxu0 0.0
    %2181 = vmatpush.msra.mxu0 0.0
    %2182 = vmatpush.msra.mxu0 0.0
    %2183 = vmatpush.msra.mxu0 0.0
    %2184 = vmatpush.msra.mxu0 0.0
    %2185 = vmatpush.msra.mxu0 0.0
    %2186 = vmatpush.msra.mxu0 %v2052
    %2187 = vmatpush.msra.mxu0 %v2051
    %2188 = vmatpush.msra.mxu0 %v2050
    %2189 = vmatpush.msra.mxu0 %v2049
    %2190 = vmatmul.f32.gmra.mxu0 %v1704
    %v2191 = vpop.f32.mrf.mxu0
    %v2192 = vadd.f32 %v2068, %v2191
    %2193 = vdwg.mxu0
    %2194 = vmatpush.msra.mxu0 0.0
    %2195 = vmatpush.msra.mxu0 0.0
    %2196 = vmatpush.msra.mxu0 0.0
    %2197 = vmatpush.msra.mxu0 0.0
    %2198 = vmatpush.msra.mxu0 0.0
    %2199 = vmatpush.msra.mxu0 0.0
    %2200 = vmatpush.msra.mxu0 0.0
    %2201 = vmatpush.msra.mxu0 0.0
    %2202 = vmatpush.msra.mxu0 0.0
    %2203 = vmatpush.msra.mxu0 0.0
    %2204 = vmatpush.msra.mxu0 0.0
    %2205 = vmatpush.msra.mxu0 0.0
    %2206 = vmatpush.msra.mxu0 %v2056
    %2207 = vmatpush.msra.mxu0 %v2055
    %2208 = vmatpush.msra.mxu0 %v2054
    %2209 = vmatpush.msra.mxu0 %v2053
    %2210 = vmatmul.f32.gmra.mxu0 %v1681
    %v2211 = vpop.f32.mrf.mxu0
    %v2212 = vadd.f32 %v2069, %v2211
    %2213 = vdwg.mxu0
    %2214 = vmatpush.msra.mxu0 0.0
    %2215 = vmatpush.msra.mxu0 0.0
    %2216 = vmatpush.msra.mxu0 0.0
    %2217 = vmatpush.msra.mxu0 0.0
    %2218 = vmatpush.msra.mxu0 0.0
    %2219 = vmatpush.msra.mxu0 0.0
    %2220 = vmatpush.msra.mxu0 0.0
    %2221 = vmatpush.msra.mxu0 0.0
    %2222 = vmatpush.msra.mxu0 0.0
    %2223 = vmatpush.msra.mxu0 0.0
    %2224 = vmatpush.msra.mxu0 0.0
    %2225 = vmatpush.msra.mxu0 0.0
    %2226 = vmatpush.msra.mxu0 %v2056
    %2227 = vmatpush.msra.mxu0 %v2055
    %2228 = vmatpush.msra.mxu0 %v2054
    %2229 = vmatpush.msra.mxu0 %v2053
    %2230 = vmatmul.f32.gmra.mxu0 %v1704
    %v2231 = vpop.f32.mrf.mxu0
    %v2232 = vadd.f32 %v2069, %v2231
    %2233 = vdwg.mxu0
    %v2234 = vmul.f32 %v1701, 0.35355338
    %v2235 = vmul.f32 %v1724, 0.35355338
    %v2236 = vmul.f32 %v1744, 0.35355338
    %v2237 = vmul.f32 %v1764, 0.35355338
    %v2238 = vmul.f32 %v1784, 0.35355338
    %v2239 = vmul.f32 %v1804, 0.35355338
    %v2240 = vmul.f32 %v1824, 0.35355338
    %v2241 = vmul.f32 %v1844, 0.35355338
    %v2243 = vsel %vm674, %v2234, 0
    %v2246 = vsel %vm674, %v1898, 0
    %2248 = vmatpush.xpose.msra.mxu0 0.0
    %2249 = vmatpush.xpose.msra.mxu0 0.0
    %2250 = vmatpush.xpose.msra.mxu0 0.0
    %2251 = vmatpush.xpose.msra.mxu0 0.0
    %2252 = vmatpush.xpose.msra.mxu0 0.0
    %2253 = vmatpush.xpose.msra.mxu0 0.0
    %2254 = vmatpush.xpose.msra.mxu0 0.0
    %2255 = vmatpush.xpose.msra.mxu0 0.0
    %2256 = vmatpush.xpose.msra.mxu0 0.0
    %2257 = vmatpush.xpose.msra.mxu0 0.0
    %2258 = vmatpush.xpose.msra.mxu0 0.0
    %2259 = vmatpush.xpose.msra.mxu0 0.0
    %2260 = vmatpush.xpose.msra.mxu0 0.0
    %2261 = vmatpush.xpose.msra.mxu0 0.0
    %2262 = vmatpush.xpose.msra.mxu0 0.0
    %2263 = vmatpush.xpose.msra.mxu0 %v2246
    %2264 = vmatmul.f32.gmra.mxu0 %v2243
    %v2265 = vpop.f32.mrf.mxu0
    %v2266 = vadd.f32 %v82, %v2265
    %2267 = vdwg.mxu0
    %v2269 = vsel %vm674, %v2235, 0
    %v2272 = vsel %vm674, %v1918, 0
    %2274 = vmatpush.xpose.msra.mxu0 0.0
    %2275 = vmatpush.xpose.msra.mxu0 0.0
    %2276 = vmatpush.xpose.msra.mxu0 0.0
    %2277 = vmatpush.xpose.msra.mxu0 0.0
    %2278 = vmatpush.xpose.msra.mxu0 0.0
    %2279 = vmatpush.xpose.msra.mxu0 0.0
    %2280 = vmatpush.xpose.msra.mxu0 0.0
    %2281 = vmatpush.xpose.msra.mxu0 0.0
    %2282 = vmatpush.xpose.msra.mxu0 0.0
    %2283 = vmatpush.xpose.msra.mxu0 0.0
    %2284 = vmatpush.xpose.msra.mxu0 0.0
    %2285 = vmatpush.xpose.msra.mxu0 0.0
    %2286 = vmatpush.xpose.msra.mxu0 0.0
    %2287 = vmatpush.xpose.msra.mxu0 0.0
    %2288 = vmatpush.xpose.msra.mxu0 0.0
    %2289 = vmatpush.xpose.msra.mxu0 %v2272
    %2290 = vmatmul.f32.gmra.mxu0 %v2269
    %v2291 = vpop.f32.mrf.mxu0
    %v2292 = vadd.f32 %v82, %v2291
    %2293 = vdwg.mxu0
    %v2295 = vsel %vm674, %v2236, 0
    %v2298 = vsel %vm674, %v1938, 0
    %2300 = vmatpush.xpose.msra.mxu0 0.0
    %2301 = vmatpush.xpose.msra.mxu0 0.0
    %2302 = vmatpush.xpose.msra.mxu0 0.0
    %2303 = vmatpush.xpose.msra.mxu0 0.0
    %2304 = vmatpush.xpose.msra.mxu0 0.0
    %2305 = vmatpush.xpose.msra.mxu0 0.0
    %2306 = vmatpush.xpose.msra.mxu0 0.0
    %2307 = vmatpush.xpose.msra.mxu0 0.0
    %2308 = vmatpush.xpose.msra.mxu0 0.0
    %2309 = vmatpush.xpose.msra.mxu0 0.0
    %2310 = vmatpush.xpose.msra.mxu0 0.0
    %2311 = vmatpush.xpose.msra.mxu0 0.0
    %2312 = vmatpush.xpose.msra.mxu0 0.0
    %2313 = vmatpush.xpose.msra.mxu0 0.0
    %2314 = vmatpush.xpose.msra.mxu0 0.0
    %2315 = vmatpush.xpose.msra.mxu0 %v2298
    %2316 = vmatmul.f32.gmra.mxu0 %v2295
    %v2317 = vpop.f32.mrf.mxu0
    %v2318 = vadd.f32 %v82, %v2317
    %2319 = vdwg.mxu0
    %v2321 = vsel %vm674, %v2237, 0
    %v2324 = vsel %vm674, %v1958, 0
    %2326 = vmatpush.xpose.msra.mxu0 0.0
    %2327 = vmatpush.xpose.msra.mxu0 0.0
    %2328 = vmatpush.xpose.msra.mxu0 0.0
    %2329 = vmatpush.xpose.msra.mxu0 0.0
    %2330 = vmatpush.xpose.msra.mxu0 0.0
    %2331 = vmatpush.xpose.msra.mxu0 0.0
    %2332 = vmatpush.xpose.msra.mxu0 0.0
    %2333 = vmatpush.xpose.msra.mxu0 0.0
    %2334 = vmatpush.xpose.msra.mxu0 0.0
    %2335 = vmatpush.xpose.msra.mxu0 0.0
    %2336 = vmatpush.xpose.msra.mxu0 0.0
    %2337 = vmatpush.xpose.msra.mxu0 0.0
    %2338 = vmatpush.xpose.msra.mxu0 0.0
    %2339 = vmatpush.xpose.msra.mxu0 0.0
    %2340 = vmatpush.xpose.msra.mxu0 0.0
    %2341 = vmatpush.xpose.msra.mxu0 %v2324
    %2342 = vmatmul.f32.gmra.mxu0 %v2321
    %v2343 = vpop.f32.mrf.mxu0
    %v2344 = vadd.f32 %v82, %v2343
    %2345 = vdwg.mxu0
    %v2347 = vsel %vm674, %v2238, 0
    %v2350 = vsel %vm674, %v1978, 0
    %2352 = vmatpush.xpose.msra.mxu0 0.0
    %2353 = vmatpush.xpose.msra.mxu0 0.0
    %2354 = vmatpush.xpose.msra.mxu0 0.0
    %2355 = vmatpush.xpose.msra.mxu0 0.0
    %2356 = vmatpush.xpose.msra.mxu0 0.0
    %2357 = vmatpush.xpose.msra.mxu0 0.0
    %2358 = vmatpush.xpose.msra.mxu0 0.0
    %2359 = vmatpush.xpose.msra.mxu0 0.0
    %2360 = vmatpush.xpose.msra.mxu0 0.0
    %2361 = vmatpush.xpose.msra.mxu0 0.0
    %2362 = vmatpush.xpose.msra.mxu0 0.0
    %2363 = vmatpush.xpose.msra.mxu0 0.0
    %2364 = vmatpush.xpose.msra.mxu0 0.0
    %2365 = vmatpush.xpose.msra.mxu0 0.0
    %2366 = vmatpush.xpose.msra.mxu0 0.0
    %2367 = vmatpush.xpose.msra.mxu0 %v2350
    %2368 = vmatmul.f32.gmra.mxu0 %v2347
    %v2369 = vpop.f32.mrf.mxu0
    %v2370 = vadd.f32 %v82, %v2369
    %2371 = vdwg.mxu0
    %v2373 = vsel %vm674, %v2239, 0
    %v2376 = vsel %vm674, %v1998, 0
    %2378 = vmatpush.xpose.msra.mxu0 0.0
    %2379 = vmatpush.xpose.msra.mxu0 0.0
    %2380 = vmatpush.xpose.msra.mxu0 0.0
    %2381 = vmatpush.xpose.msra.mxu0 0.0
    %2382 = vmatpush.xpose.msra.mxu0 0.0
    %2383 = vmatpush.xpose.msra.mxu0 0.0
    %2384 = vmatpush.xpose.msra.mxu0 0.0
    %2385 = vmatpush.xpose.msra.mxu0 0.0
    %2386 = vmatpush.xpose.msra.mxu0 0.0
    %2387 = vmatpush.xpose.msra.mxu0 0.0
    %2388 = vmatpush.xpose.msra.mxu0 0.0
    %2389 = vmatpush.xpose.msra.mxu0 0.0
    %2390 = vmatpush.xpose.msra.mxu0 0.0
    %2391 = vmatpush.xpose.msra.mxu0 0.0
    %2392 = vmatpush.xpose.msra.mxu0 0.0
    %2393 = vmatpush.xpose.msra.mxu0 %v2376
    %2394 = vmatmul.f32.gmra.mxu0 %v2373
    %v2395 = vpop.f32.mrf.mxu0
    %v2396 = vadd.f32 %v82, %v2395
    %2397 = vdwg.mxu0
    %v2399 = vsel %vm674, %v2240, 0
    %v2402 = vsel %vm674, %v2018, 0
    %2404 = vmatpush.xpose.msra.mxu0 0.0
    %2405 = vmatpush.xpose.msra.mxu0 0.0
    %2406 = vmatpush.xpose.msra.mxu0 0.0
    %2407 = vmatpush.xpose.msra.mxu0 0.0
    %2408 = vmatpush.xpose.msra.mxu0 0.0
    %2409 = vmatpush.xpose.msra.mxu0 0.0
    %2410 = vmatpush.xpose.msra.mxu0 0.0
    %2411 = vmatpush.xpose.msra.mxu0 0.0
    %2412 = vmatpush.xpose.msra.mxu0 0.0
    %2413 = vmatpush.xpose.msra.mxu0 0.0
    %2414 = vmatpush.xpose.msra.mxu0 0.0
    %2415 = vmatpush.xpose.msra.mxu0 0.0
    %2416 = vmatpush.xpose.msra.mxu0 0.0
    %2417 = vmatpush.xpose.msra.mxu0 0.0
    %2418 = vmatpush.xpose.msra.mxu0 0.0
    %2419 = vmatpush.xpose.msra.mxu0 %v2402
    %2420 = vmatmul.f32.gmra.mxu0 %v2399
    %v2421 = vpop.f32.mrf.mxu0
    %v2422 = vadd.f32 %v82, %v2421
    %2423 = vdwg.mxu0
    %v2425 = vsel %vm674, %v2241, 0
    %v2428 = vsel %vm674, %v2038, 0
    %2430 = vmatpush.xpose.msra.mxu0 0.0
    %2431 = vmatpush.xpose.msra.mxu0 0.0
    %2432 = vmatpush.xpose.msra.mxu0 0.0
    %2433 = vmatpush.xpose.msra.mxu0 0.0
    %2434 = vmatpush.xpose.msra.mxu0 0.0
    %2435 = vmatpush.xpose.msra.mxu0 0.0
    %2436 = vmatpush.xpose.msra.mxu0 0.0
    %2437 = vmatpush.xpose.msra.mxu0 0.0
    %2438 = vmatpush.xpose.msra.mxu0 0.0
    %2439 = vmatpush.xpose.msra.mxu0 0.0
    %2440 = vmatpush.xpose.msra.mxu0 0.0
    %2441 = vmatpush.xpose.msra.mxu0 0.0
    %2442 = vmatpush.xpose.msra.mxu0 0.0
    %2443 = vmatpush.xpose.msra.mxu0 0.0
    %2444 = vmatpush.xpose.msra.mxu0 0.0
    %2445 = vmatpush.xpose.msra.mxu0 %v2428
    %2446 = vmatmul.f32.gmra.mxu0 %v2425
    %v2447 = vpop.f32.mrf.mxu0
    %v2448 = vadd.f32 %v82, %v2447
    %2449 = vdwg.mxu0
    %v2450 = vsel %vm674, %v2266, -inf
    %2451 = vmax.xlane.f32.xlu0 %v2450
    %v2452 = vpop.xlane.xlu0 %2451
    %v2453 = vsel %vm674, %v2292, -inf
    %2454 = vmax.xlane.f32.xlu0 %v2453
    %v2455 = vpop.xlane.xlu0 %2454
    %v2456 = vsel %vm674, %v2318, -inf
    %2457 = vmax.xlane.f32.xlu0 %v2456
    %v2458 = vpop.xlane.xlu0 %2457
    %v2459 = vsel %vm674, %v2344, -inf
    %2460 = vmax.xlane.f32.xlu0 %v2459
    %v2461 = vpop.xlane.xlu0 %2460
    %v2462 = vsel %vm674, %v2370, -inf
    %2463 = vmax.xlane.f32.xlu0 %v2462
    %v2464 = vpop.xlane.xlu0 %2463
    %v2465 = vsel %vm674, %v2396, -inf
    %2466 = vmax.xlane.f32.xlu0 %v2465
    %v2467 = vpop.xlane.xlu0 %2466
    %v2468 = vsel %vm674, %v2422, -inf
    %2469 = vmax.xlane.f32.xlu0 %v2468
    %v2470 = vpop.xlane.xlu0 %2469
    %v2471 = vsel %vm674, %v2448, -inf
    %2472 = vmax.xlane.f32.xlu0 %v2471
    %v2473 = vpop.xlane.xlu0 %2472
    %v2474 = vsub.f32 %v2266, %v2452
    %v2475 = vsub.f32 %v2292, %v2455
    %v2476 = vsub.f32 %v2318, %v2458
    %v2477 = vsub.f32 %v2344, %v2461
    %v2478 = vsub.f32 %v2370, %v2464
    %v2479 = vsub.f32 %v2396, %v2467
    %v2480 = vsub.f32 %v2422, %v2470
    %v2481 = vsub.f32 %v2448, %v2473
    %v2482 = vmul.f32 %v2474, 1.442695
    %v2483 = vpow.pop %v2482
    %v2484 = vmul.f32 %v2475, 1.442695
    %v2485 = vpow.pop %v2484
    %v2486 = vmul.f32 %v2476, 1.442695
    %v2487 = vpow.pop %v2486
    %v2488 = vmul.f32 %v2477, 1.442695
    %v2489 = vpow.pop %v2488
    %v2490 = vmul.f32 %v2478, 1.442695
    %v2491 = vpow.pop %v2490
    %v2492 = vmul.f32 %v2479, 1.442695
    %v2493 = vpow.pop %v2492
    %v2494 = vmul.f32 %v2480, 1.442695
    %v2495 = vpow.pop %v2494
    %v2496 = vmul.f32 %v2481, 1.442695
    %v2497 = vpow.pop %v2496
    %v2498 = vsel %vm674, %v2483, 0.0
    %2499 = vadd.xlane.f32.xlu0 %v2498
    %v2500 = vpop.xlane.xlu0 %2499
    %v2501 = vsel %vm674, %v2485, 0.0
    %2502 = vadd.xlane.f32.xlu0 %v2501
    %v2503 = vpop.xlane.xlu0 %2502
    %v2504 = vsel %vm674, %v2487, 0.0
    %2505 = vadd.xlane.f32.xlu0 %v2504
    %v2506 = vpop.xlane.xlu0 %2505
    %v2507 = vsel %vm674, %v2489, 0.0
    %2508 = vadd.xlane.f32.xlu0 %v2507
    %v2509 = vpop.xlane.xlu0 %2508
    %v2510 = vsel %vm674, %v2491, 0.0
    %2511 = vadd.xlane.f32.xlu0 %v2510
    %v2512 = vpop.xlane.xlu0 %2511
    %v2513 = vsel %vm674, %v2493, 0.0
    %2514 = vadd.xlane.f32.xlu0 %v2513
    %v2515 = vpop.xlane.xlu0 %2514
    %v2516 = vsel %vm674, %v2495, 0.0
    %2517 = vadd.xlane.f32.xlu0 %v2516
    %v2518 = vpop.xlane.xlu0 %2517
    %v2519 = vsel %vm674, %v2497, 0.0
    %2520 = vadd.xlane.f32.xlu0 %v2519
    %v2521 = vpop.xlane.xlu0 %2520
    %v2522 = vrcp.pop %v2500
    %v2523 = vrcp.pop %v2503
    %v2524 = vrcp.pop %v2506
    %v2525 = vrcp.pop %v2509
    %v2526 = vrcp.pop %v2512
    %v2527 = vrcp.pop %v2515
    %v2528 = vrcp.pop %v2518
    %v2529 = vrcp.pop %v2521
    %v2530 = vmul.f32 %v2483, %v2522
    %v2531 = vmul.f32 %v2485, %v2523
    %v2532 = vmul.f32 %v2487, %v2524
    %v2533 = vmul.f32 %v2489, %v2525
    %v2534 = vmul.f32 %v2491, %v2526
    %v2535 = vmul.f32 %v2493, %v2527
    %v2536 = vmul.f32 %v2495, %v2528
    %v2537 = vmul.f32 %v2497, %v2529
    %v2539 = vsel %vm674, %v2530, 0
    %2541 = vmatpush.msra.mxu0 0.0
    %2542 = vmatpush.msra.mxu0 0.0
    %2543 = vmatpush.msra.mxu0 0.0
    %2544 = vmatpush.msra.mxu0 0.0
    %2545 = vmatpush.msra.mxu0 0.0
    %2546 = vmatpush.msra.mxu0 0.0
    %2547 = vmatpush.msra.mxu0 0.0
    %2548 = vmatpush.msra.mxu0 0.0
    %2549 = vmatpush.msra.mxu0 0.0
    %2550 = vmatpush.msra.mxu0 0.0
    %2551 = vmatpush.msra.mxu0 0.0
    %2552 = vmatpush.msra.mxu0 0.0
    %2553 = vmatpush.msra.mxu0 0.0
    %2554 = vmatpush.msra.mxu0 0.0
    %2555 = vmatpush.msra.mxu0 0.0
    %2556 = vmatpush.msra.mxu0 %v2092
    %2557 = vmatmul.f32.gmra.mxu0 %v2539
    %v2558 = vpop.f32.mrf.mxu0
    %v2559 = vadd.f32 0.0, %v2558
    %2560 = vdwg.mxu0
    %v2562 = vsel %vm674, %v2531, 0
    %2564 = vmatpush.msra.mxu0 0.0
    %2565 = vmatpush.msra.mxu0 0.0
    %2566 = vmatpush.msra.mxu0 0.0
    %2567 = vmatpush.msra.mxu0 0.0
    %2568 = vmatpush.msra.mxu0 0.0
    %2569 = vmatpush.msra.mxu0 0.0
    %2570 = vmatpush.msra.mxu0 0.0
    %2571 = vmatpush.msra.mxu0 0.0
    %2572 = vmatpush.msra.mxu0 0.0
    %2573 = vmatpush.msra.mxu0 0.0
    %2574 = vmatpush.msra.mxu0 0.0
    %2575 = vmatpush.msra.mxu0 0.0
    %2576 = vmatpush.msra.mxu0 0.0
    %2577 = vmatpush.msra.mxu0 0.0
    %2578 = vmatpush.msra.mxu0 0.0
    %2579 = vmatpush.msra.mxu0 %v2112
    %2580 = vmatmul.f32.gmra.mxu0 %v2562
    %v2581 = vpop.f32.mrf.mxu0
    %v2582 = vadd.f32 0.0, %v2581
    %2583 = vdwg.mxu0
    %v2585 = vsel %vm674, %v2532, 0
    %2587 = vmatpush.msra.mxu0 0.0
    %2588 = vmatpush.msra.mxu0 0.0
    %2589 = vmatpush.msra.mxu0 0.0
    %2590 = vmatpush.msra.mxu0 0.0
    %2591 = vmatpush.msra.mxu0 0.0
    %2592 = vmatpush.msra.mxu0 0.0
    %2593 = vmatpush.msra.mxu0 0.0
    %2594 = vmatpush.msra.mxu0 0.0
    %2595 = vmatpush.msra.mxu0 0.0
    %2596 = vmatpush.msra.mxu0 0.0
    %2597 = vmatpush.msra.mxu0 0.0
    %2598 = vmatpush.msra.mxu0 0.0
    %2599 = vmatpush.msra.mxu0 0.0
    %2600 = vmatpush.msra.mxu0 0.0
    %2601 = vmatpush.msra.mxu0 0.0
    %2602 = vmatpush.msra.mxu0 %v2132
    %2603 = vmatmul.f32.gmra.mxu0 %v2585
    %v2604 = vpop.f32.mrf.mxu0
    %v2605 = vadd.f32 0.0, %v2604
    %2606 = vdwg.mxu0
    %v2608 = vsel %vm674, %v2533, 0
    %2610 = vmatpush.msra.mxu0 0.0
    %2611 = vmatpush.msra.mxu0 0.0
    %2612 = vmatpush.msra.mxu0 0.0
    %2613 = vmatpush.msra.mxu0 0.0
    %2614 = vmatpush.msra.mxu0 0.0
    %2615 = vmatpush.msra.mxu0 0.0
    %2616 = vmatpush.msra.mxu0 0.0
    %2617 = vmatpush.msra.mxu0 0.0
    %2618 = vmatpush.msra.mxu0 0.0
    %2619 = vmatpush.msra.mxu0 0.0
    %2620 = vmatpush.msra.mxu0 0.0
    %2621 = vmatpush.msra.mxu0 0.0
    %2622 = vmatpush.msra.mxu0 0.0
    %2623 = vmatpush.msra.mxu0 0.0
    %2624 = vmatpush.msra.mxu0 0.0
    %2625 = vmatpush.msra.mxu0 %v2152
    %2626 = vmatmul.f32.gmra.mxu0 %v2608
    %v2627 = vpop.f32.mrf.mxu0
    %v2628 = vadd.f32 0.0, %v2627
    %2629 = vdwg.mxu0
    %v2631 = vsel %vm674, %v2534, 0
    %2633 = vmatpush.msra.mxu0 0.0
    %2634 = vmatpush.msra.mxu0 0.0
    %2635 = vmatpush.msra.mxu0 0.0
    %2636 = vmatpush.msra.mxu0 0.0
    %2637 = vmatpush.msra.mxu0 0.0
    %2638 = vmatpush.msra.mxu0 0.0
    %2639 = vmatpush.msra.mxu0 0.0
    %2640 = vmatpush.msra.mxu0 0.0
    %2641 = vmatpush.msra.mxu0 0.0
    %2642 = vmatpush.msra.mxu0 0.0
    %2643 = vmatpush.msra.mxu0 0.0
    %2644 = vmatpush.msra.mxu0 0.0
    %2645 = vmatpush.msra.mxu0 0.0
    %2646 = vmatpush.msra.mxu0 0.0
    %2647 = vmatpush.msra.mxu0 0.0
    %2648 = vmatpush.msra.mxu0 %v2172
    %2649 = vmatmul.f32.gmra.mxu0 %v2631
    %v2650 = vpop.f32.mrf.mxu0
    %v2651 = vadd.f32 0.0, %v2650
    %2652 = vdwg.mxu0
    %v2654 = vsel %vm674, %v2535, 0
    %2656 = vmatpush.msra.mxu0 0.0
    %2657 = vmatpush.msra.mxu0 0.0
    %2658 = vmatpush.msra.mxu0 0.0
    %2659 = vmatpush.msra.mxu0 0.0
    %2660 = vmatpush.msra.mxu0 0.0
    %2661 = vmatpush.msra.mxu0 0.0
    %2662 = vmatpush.msra.mxu0 0.0
    %2663 = vmatpush.msra.mxu0 0.0
    %2664 = vmatpush.msra.mxu0 0.0
    %2665 = vmatpush.msra.mxu0 0.0
    %2666 = vmatpush.msra.mxu0 0.0
    %2667 = vmatpush.msra.mxu0 0.0
    %2668 = vmatpush.msra.mxu0 0.0
    %2669 = vmatpush.msra.mxu0 0.0
    %2670 = vmatpush.msra.mxu0 0.0
    %2671 = vmatpush.msra.mxu0 %v2192
    %2672 = vmatmul.f32.gmra.mxu0 %v2654
    %v2673 = vpop.f32.mrf.mxu0
    %v2674 = vadd.f32 0.0, %v2673
    %2675 = vdwg.mxu0
    %v2677 = vsel %vm674, %v2536, 0
    %2679 = vmatpush.msra.mxu0 0.0
    %2680 = vmatpush.msra.mxu0 0.0
    %2681 = vmatpush.msra.mxu0 0.0
    %2682 = vmatpush.msra.mxu0 0.0
    %2683 = vmatpush.msra.mxu0 0.0
    %2684 = vmatpush.msra.mxu0 0.0
    %2685 = vmatpush.msra.mxu0 0.0
    %2686 = vmatpush.msra.mxu0 0.0
    %2687 = vmatpush.msra.mxu0 0.0
    %2688 = vmatpush.msra.mxu0 0.0
    %2689 = vmatpush.msra.mxu0 0.0
    %2690 = vmatpush.msra.mxu0 0.0
    %2691 = vmatpush.msra.mxu0 0.0
    %2692 = vmatpush.msra.mxu0 0.0
    %2693 = vmatpush.msra.mxu0 0.0
    %2694 = vmatpush.msra.mxu0 %v2212
    %2695 = vmatmul.f32.gmra.mxu0 %v2677
    %v2696 = vpop.f32.mrf.mxu0
    %v2697 = vadd.f32 0.0, %v2696
    %2698 = vdwg.mxu0
    %v2700 = vsel %vm674, %v2537, 0
    %2702 = vmatpush.msra.mxu0 0.0
    %2703 = vmatpush.msra.mxu0 0.0
    %2704 = vmatpush.msra.mxu0 0.0
    %2705 = vmatpush.msra.mxu0 0.0
    %2706 = vmatpush.msra.mxu0 0.0
    %2707 = vmatpush.msra.mxu0 0.0
    %2708 = vmatpush.msra.mxu0 0.0
    %2709 = vmatpush.msra.mxu0 0.0
    %2710 = vmatpush.msra.mxu0 0.0
    %2711 = vmatpush.msra.mxu0 0.0
    %2712 = vmatpush.msra.mxu0 0.0
    %2713 = vmatpush.msra.mxu0 0.0
    %2714 = vmatpush.msra.mxu0 0.0
    %2715 = vmatpush.msra.mxu0 0.0
    %2716 = vmatpush.msra.mxu0 0.0
    %2717 = vmatpush.msra.mxu0 %v2232
    %2718 = vmatmul.f32.gmra.mxu0 %v2700
    %v2719 = vpop.f32.mrf.mxu0
    %v2720 = vadd.f32 0.0, %v2719
    %2721 = vdwg.mxu0
    %s2722 = scalar_lea.vmem %s8, 32
    %v2723 = vld [vmem:[%s2722] sm:$0xff]
    %v2724 = vld [vmem:[%s2722 + $0x8] sm:$0xff]
    %v2725 = vld [vmem:[%s2722 + $0x10] sm:$0xff]
    %v2726 = vld [vmem:[%s2722 + $0x18] sm:$0xff]
    %v2728 = vsel %vm674, %v2559, 0
    %2730 = vmatpush.msra.mxu0 0.0
    %2731 = vmatpush.msra.mxu0 0.0
    %2732 = vmatpush.msra.mxu0 0.0
    %2733 = vmatpush.msra.mxu0 0.0
    %2734 = vmatpush.msra.mxu0 0.0
    %2735 = vmatpush.msra.mxu0 0.0
    %2736 = vmatpush.msra.mxu0 0.0
    %2737 = vmatpush.msra.mxu0 0.0
    %2738 = vmatpush.msra.mxu0 0.0
    %2739 = vmatpush.msra.mxu0 0.0
    %2740 = vmatpush.msra.mxu0 0.0
    %2741 = vmatpush.msra.mxu0 0.0
    %2742 = vmatpush.msra.mxu0 0.0
    %2743 = vmatpush.msra.mxu0 0.0
    %2744 = vmatpush.msra.mxu0 0.0
    %2745 = vmatpush.msra.mxu0 %v2723
    %2746 = vmatmul.f32.gmra.mxu0 %v2728
    %v2747 = vpop.f32.mrf.mxu0
    %v2748 = vadd.f32 0.0, %v2747
    %2749 = vdwg.mxu0
    %v2751 = vsel %vm674, %v2582, 0
    %2753 = vmatpush.msra.mxu0 0.0
    %2754 = vmatpush.msra.mxu0 0.0
    %2755 = vmatpush.msra.mxu0 0.0
    %2756 = vmatpush.msra.mxu0 0.0
    %2757 = vmatpush.msra.mxu0 0.0
    %2758 = vmatpush.msra.mxu0 0.0
    %2759 = vmatpush.msra.mxu0 0.0
    %2760 = vmatpush.msra.mxu0 0.0
    %2761 = vmatpush.msra.mxu0 0.0
    %2762 = vmatpush.msra.mxu0 0.0
    %2763 = vmatpush.msra.mxu0 0.0
    %2764 = vmatpush.msra.mxu0 0.0
    %2765 = vmatpush.msra.mxu0 0.0
    %2766 = vmatpush.msra.mxu0 0.0
    %2767 = vmatpush.msra.mxu0 0.0
    %2768 = vmatpush.msra.mxu0 %v2723
    %2769 = vmatmul.f32.gmra.mxu0 %v2751
    %v2770 = vpop.f32.mrf.mxu0
    %v2771 = vadd.f32 0.0, %v2770
    %2772 = vdwg.mxu0
    %v2774 = vsel %vm674, %v2605, 0
    %2776 = vmatpush.msra.mxu0 0.0
    %2777 = vmatpush.msra.mxu0 0.0
    %2778 = vmatpush.msra.mxu0 0.0
    %2779 = vmatpush.msra.mxu0 0.0
    %2780 = vmatpush.msra.mxu0 0.0
    %2781 = vmatpush.msra.mxu0 0.0
    %2782 = vmatpush.msra.mxu0 0.0
    %2783 = vmatpush.msra.mxu0 0.0
    %2784 = vmatpush.msra.mxu0 0.0
    %2785 = vmatpush.msra.mxu0 0.0
    %2786 = vmatpush.msra.mxu0 0.0
    %2787 = vmatpush.msra.mxu0 0.0
    %2788 = vmatpush.msra.mxu0 0.0
    %2789 = vmatpush.msra.mxu0 0.0
    %2790 = vmatpush.msra.mxu0 0.0
    %2791 = vmatpush.msra.mxu0 %v2724
    %2792 = vmatmul.f32.gmra.mxu0 %v2774
    %v2793 = vpop.f32.mrf.mxu0
    %v2794 = vadd.f32 0.0, %v2793
    %2795 = vdwg.mxu0
    %v2797 = vsel %vm674, %v2628, 0
    %2799 = vmatpush.msra.mxu0 0.0
    %2800 = vmatpush.msra.mxu0 0.0
    %2801 = vmatpush.msra.mxu0 0.0
    %2802 = vmatpush.msra.mxu0 0.0
    %2803 = vmatpush.msra.mxu0 0.0
    %2804 = vmatpush.msra.mxu0 0.0
    %2805 = vmatpush.msra.mxu0 0.0
    %2806 = vmatpush.msra.mxu0 0.0
    %2807 = vmatpush.msra.mxu0 0.0
    %2808 = vmatpush.msra.mxu0 0.0
    %2809 = vmatpush.msra.mxu0 0.0
    %2810 = vmatpush.msra.mxu0 0.0
    %2811 = vmatpush.msra.mxu0 0.0
    %2812 = vmatpush.msra.mxu0 0.0
    %2813 = vmatpush.msra.mxu0 0.0
    %2814 = vmatpush.msra.mxu0 %v2724
    %2815 = vmatmul.f32.gmra.mxu0 %v2797
    %v2816 = vpop.f32.mrf.mxu0
    %v2817 = vadd.f32 0.0, %v2816
    %2818 = vdwg.mxu0
    %v2820 = vsel %vm674, %v2651, 0
    %2822 = vmatpush.msra.mxu0 0.0
    %2823 = vmatpush.msra.mxu0 0.0
    %2824 = vmatpush.msra.mxu0 0.0
    %2825 = vmatpush.msra.mxu0 0.0
    %2826 = vmatpush.msra.mxu0 0.0
    %2827 = vmatpush.msra.mxu0 0.0
    %2828 = vmatpush.msra.mxu0 0.0
    %2829 = vmatpush.msra.mxu0 0.0
    %2830 = vmatpush.msra.mxu0 0.0
    %2831 = vmatpush.msra.mxu0 0.0
    %2832 = vmatpush.msra.mxu0 0.0
    %2833 = vmatpush.msra.mxu0 0.0
    %2834 = vmatpush.msra.mxu0 0.0
    %2835 = vmatpush.msra.mxu0 0.0
    %2836 = vmatpush.msra.mxu0 0.0
    %2837 = vmatpush.msra.mxu0 %v2725
    %2838 = vmatmul.f32.gmra.mxu0 %v2820
    %v2839 = vpop.f32.mrf.mxu0
    %v2840 = vadd.f32 0.0, %v2839
    %2841 = vdwg.mxu0
    %v2843 = vsel %vm674, %v2674, 0
    %2845 = vmatpush.msra.mxu0 0.0
    %2846 = vmatpush.msra.mxu0 0.0
    %2847 = vmatpush.msra.mxu0 0.0
    %2848 = vmatpush.msra.mxu0 0.0
    %2849 = vmatpush.msra.mxu0 0.0
    %2850 = vmatpush.msra.mxu0 0.0
    %2851 = vmatpush.msra.mxu0 0.0
    %2852 = vmatpush.msra.mxu0 0.0
    %2853 = vmatpush.msra.mxu0 0.0
    %2854 = vmatpush.msra.mxu0 0.0
    %2855 = vmatpush.msra.mxu0 0.0
    %2856 = vmatpush.msra.mxu0 0.0
    %2857 = vmatpush.msra.mxu0 0.0
    %2858 = vmatpush.msra.mxu0 0.0
    %2859 = vmatpush.msra.mxu0 0.0
    %2860 = vmatpush.msra.mxu0 %v2725
    %2861 = vmatmul.f32.gmra.mxu0 %v2843
    %v2862 = vpop.f32.mrf.mxu0
    %v2863 = vadd.f32 0.0, %v2862
    %2864 = vdwg.mxu0
    %v2866 = vsel %vm674, %v2697, 0
    %2868 = vmatpush.msra.mxu0 0.0
    %2869 = vmatpush.msra.mxu0 0.0
    %2870 = vmatpush.msra.mxu0 0.0
    %2871 = vmatpush.msra.mxu0 0.0
    %2872 = vmatpush.msra.mxu0 0.0
    %2873 = vmatpush.msra.mxu0 0.0
    %2874 = vmatpush.msra.mxu0 0.0
    %2875 = vmatpush.msra.mxu0 0.0
    %2876 = vmatpush.msra.mxu0 0.0
    %2877 = vmatpush.msra.mxu0 0.0
    %2878 = vmatpush.msra.mxu0 0.0
    %2879 = vmatpush.msra.mxu0 0.0
    %2880 = vmatpush.msra.mxu0 0.0
    %2881 = vmatpush.msra.mxu0 0.0
    %2882 = vmatpush.msra.mxu0 0.0
    %2883 = vmatpush.msra.mxu0 %v2726
    %2884 = vmatmul.f32.gmra.mxu0 %v2866
    %v2885 = vpop.f32.mrf.mxu0
    %v2886 = vadd.f32 0.0, %v2885
    %2887 = vdwg.mxu0
    %v2889 = vsel %vm674, %v2720, 0
    %2891 = vmatpush.msra.mxu0 0.0
    %2892 = vmatpush.msra.mxu0 0.0
    %2893 = vmatpush.msra.mxu0 0.0
    %2894 = vmatpush.msra.mxu0 0.0
    %2895 = vmatpush.msra.mxu0 0.0
    %2896 = vmatpush.msra.mxu0 0.0
    %2897 = vmatpush.msra.mxu0 0.0
    %2898 = vmatpush.msra.mxu0 0.0
    %2899 = vmatpush.msra.mxu0 0.0
    %2900 = vmatpush.msra.mxu0 0.0
    %2901 = vmatpush.msra.mxu0 0.0
    %2902 = vmatpush.msra.mxu0 0.0
    %2903 = vmatpush.msra.mxu0 0.0
    %2904 = vmatpush.msra.mxu0 0.0
    %2905 = vmatpush.msra.mxu0 0.0
    %2906 = vmatpush.msra.mxu0 %v2726
    %2907 = vmatmul.f32.gmra.mxu0 %v2889
    %v2908 = vpop.f32.mrf.mxu0
    %v2909 = vadd.f32 0.0, %v2908
    %2910 = vdwg.mxu0
    %v2911 = vsel %vm115, %v2748, 0.0
    %v2912 = vsel %vm115, %v2794, 0.0
    %v2913 = vadd.f32 %v2911, %v2912
    %v2914 = vsel %vm115, %v2840, 0.0
    %v2915 = vadd.f32 %v2913, %v2914
    %v2916 = vsel %vm115, %v2886, 0.0
    %v2917 = vadd.f32 %v2915, %v2916
    %v2918 = vsel %vm115, %v2771, 0.0
    %v2919 = vsel %vm115, %v2817, 0.0
    %v2920 = vadd.f32 %v2918, %v2919
    %v2921 = vsel %vm115, %v2863, 0.0
    %v2922 = vadd.f32 %v2920, %v2921
    %v2923 = vsel %vm115, %v2909, 0.0
    %v2924 = vadd.f32 %v2922, %v2923
    %s2925 = scalar_lea.vmem %s9, 1
    %v2926 = vld [vmem:[%s2925] sm:$0x1]
    %v2928 = vperm.slane %v2926, 0
    %v2930 = vadd.f32 %v2917, %v2928
    %v2931 = vadd.f32 %v2924, %v2928
    %v2932 = vadd.f32 %v1644, %v2930
    %v2933 = vadd.f32 %v1645, %v2931
    %s2934 = scalar_lea.vmem %s10, 1
    %v2935 = vld [vmem:[%s2934] sm:$0x1]
    %s2936 = scalar_lea.vmem %s11, 1
    %v2937 = vld [vmem:[%s2936] sm:$0x1]
    %v2938 = vsel %vm115, %v2932, 0.0
    %2939 = vadd.xlane.f32.xlu0 %v2938
    %v2940 = vpop.xlane.xlu0 %2939
    %v2941 = vsel %vm115, %v2933, 0.0
    %2942 = vadd.xlane.f32.xlu0 %v2941
    %v2943 = vpop.xlane.xlu0 %2942
    %v2944 = vmul.f32 %v2940, %v1379
    %v2945 = vmul.f32 %v2943, %v1379
    %v2946 = vsub.f32 %v2932, %v2944
    %v2947 = vsub.f32 %v2933, %v2945
    %v2948 = vmul.f32 %v2946, %v2946
    %v2949 = vmul.f32 %v2947, %v2947
    %v2950 = vsel %vm115, %v2948, 0.0
    %2951 = vadd.xlane.f32.xlu0 %v2950
    %v2952 = vpop.xlane.xlu0 %2951
    %v2953 = vsel %vm115, %v2949, 0.0
    %2954 = vadd.xlane.f32.xlu0 %v2953
    %v2955 = vpop.xlane.xlu0 %2954
    %v2956 = vmul.f32 %v2952, %v1379
    %v2957 = vmul.f32 %v2955, %v1379
    %v2958 = vadd.f32 %v2956, 1e-05
    %v2959 = vadd.f32 %v2957, 1e-05
    %v2960 = vrsqrt.pop %v2958
    %v2961 = vmul.f32 %v2960, %v2958
    %v2962 = vmul.f32 %v2961, %v2960
    %v2963 = vmul.f32 0.5, %v2962
    %v2964 = vsub.f32 1.5, %v2963
    %v2965 = vmul.f32 %v2960, %v2964
    %vm2966 = vweird.f32 %v2958
    %vm2967 = vweird.f32 %v2960
    %vm2968 = vmor %vm2966, %vm2967
    %v2969 = vsel %vm2968, %v2960, %v2965
    %v2970 = vrsqrt.pop %v2959
    %v2971 = vmul.f32 %v2970, %v2959
    %v2972 = vmul.f32 %v2971, %v2970
    %v2973 = vmul.f32 0.5, %v2972
    %v2974 = vsub.f32 1.5, %v2973
    %v2975 = vmul.f32 %v2970, %v2974
    %vm2976 = vweird.f32 %v2959
    %vm2977 = vweird.f32 %v2970
    %vm2978 = vmor %vm2976, %vm2977
    %v2979 = vsel %vm2978, %v2970, %v2975
    %v2980 = vmul.f32 %v2946, %v2969
    %v2981 = vmul.f32 %v2947, %v2979
    %v2983 = vperm.slane %v2935, 0
    %v2985 = vmul.f32 %v2980, %v2983
    %v2986 = vmul.f32 %v2981, %v2983
    %v2988 = vperm.slane %v2937, 0
    %v2990 = vadd.f32 %v2985, %v2988
    %v2991 = vadd.f32 %v2986, %v2988
    %s2992 = scalar_lea.vmem %s12, 32
    %v2993 = vld [vmem:[%s2992] sm:$0xff]
    %v2994 = vld [vmem:[%s2992 + $0x8] sm:$0xff]
    %v2995 = vld [vmem:[%s2992 + $0x10] sm:$0xff]
    %v2996 = vld [vmem:[%s2992 + $0x18] sm:$0xff]
    %s2997 = scalar_lea.vmem %s13, 1
    %v2998 = vld [vmem:[%s2997] sm:$0x1]
    %v3000 = vperm.slane %v2998, 0
    %v3003 = vsel %vm115, %v2990, 0
    %v3006 = vsel %vm115, %v2991, 0
    %3008 = vmatpush.msra.mxu0 0.0
    %3009 = vmatpush.msra.mxu0 0.0
    %3010 = vmatpush.msra.mxu0 0.0
    %3011 = vmatpush.msra.mxu0 0.0
    %3012 = vmatpush.msra.mxu0 0.0
    %3013 = vmatpush.msra.mxu0 0.0
    %3014 = vmatpush.msra.mxu0 0.0
    %3015 = vmatpush.msra.mxu0 0.0
    %3016 = vmatpush.msra.mxu0 0.0
    %3017 = vmatpush.msra.mxu0 0.0
    %3018 = vmatpush.msra.mxu0 0.0
    %3019 = vmatpush.msra.mxu0 0.0
    %3020 = vmatpush.msra.mxu0 %v2996
    %3021 = vmatpush.msra.mxu0 %v2995
    %3022 = vmatpush.msra.mxu0 %v2994
    %3023 = vmatpush.msra.mxu0 %v2993
    %3024 = vmatmul.f32.gmra.mxu0 %v3003
    %v3025 = vpop.f32.mrf.mxu0
    %v3026 = vadd.f32 %v3000, %v3025
    %3027 = vmatmul.f32.gmra.mxu0 %v3006
    %v3028 = vpop.f32.mrf.mxu0
    %v3029 = vadd.f32 %v3000, %v3028
    %3030 = vdwg.mxu0
    %v3031 = vmul.f32 %v3026, 0.5
    %v3032 = vmul.f32 %v3029, 0.5
    %v3033 = vmul.f32 %v3026, 0.70710677
    %v3034 = vmul.f32 %v3029, 0.70710677
    %vm3035 = vcmp.ge.f32.partialorder %v3033, 0.0
    %vm3036 = vcmp.ge.f32.partialorder %v3034, 0.0
    %v3037 = vsel %vm3035, 1.0, -1.0
    %v3038 = vsel %vm3036, 1.0, -1.0
    %v3039 = vand.u32 2147483647, %v3033
    %v3040 = vand.u32 2147483647, %v3034
    %v3041 = vmul.f32 %v3039, 0.3275911
    %v3042 = vmul.f32 %v3040, 0.3275911
    %v3043 = vadd.f32 %v3041, 1.0
    %v3044 = vadd.f32 %v3042, 1.0
    %v3045 = vrcp.pop %v3043
    %v3046 = vmul.f32 %v3043, %v3045
    %v3047 = vsub.f32 1.0, %v3046
    %v3048 = vmul.f32 %v3045, %v3047
    %v3049 = vadd.f32 %v3045, %v3048
    %vm3050 = vweird.f32 %v3043
    %vm3051 = vweird.f32 %v3045
    %vm3052 = vmor %vm3050, %vm3051
    %v3053 = vsel %vm3052, %v3045, %v3049
    %v3054 = vand.u32 2147483647, %v3043
    %vm3055 = vcmp.eq.f32.partialorder %v3054, 8.507059e+37
    %v3056 = vand.u32 %v3043, 2147483648
    %v3057 = vor.u32 1.1754944e-38, %v3056
    %v3058 = vsel %vm3055, %v3057, %v3053
    %v3059 = vmul.f32 1.0, %v3058
    %v3060 = vrcp.pop %v3044
    %v3061 = vmul.f32 %v3044, %v3060
    %v3062 = vsub.f32 1.0, %v3061
    %v3063 = vmul.f32 %v3060, %v3062
    %v3064 = vadd.f32 %v3060, %v3063
    %vm3065 = vweird.f32 %v3044
    %vm3066 = vweird.f32 %v3060
    %vm3067 = vmor %vm3065, %vm3066
    %v3068 = vsel %vm3067, %v3060, %v3064
    %v3069 = vand.u32 2147483647, %v3044
    %vm3070 = vcmp.eq.f32.partialorder %v3069, 8.507059e+37
    %v3071 = vand.u32 %v3044, 2147483648
    %v3072 = vor.u32 1.1754944e-38, %v3071
    %v3073 = vsel %vm3070, %v3072, %v3068
    %v3074 = vmul.f32 1.0, %v3073
    %v3075 = vmul.f32 %v3059, 1.0614054
    %v3076 = vmul.f32 %v3074, 1.0614054
    %v3077 = vadd.f32 %v3075, -1.4531521
    %v3078 = vadd.f32 %v3076, -1.4531521
    %v3079 = vmul.f32 %v3077, %v3059
    %v3080 = vmul.f32 %v3078, %v3074
    %v3081 = vadd.f32 %v3079, 1.4214138
    %v3082 = vadd.f32 %v3080, 1.4214138
    %v3083 = vmul.f32 %v3081, %v3059
    %v3084 = vmul.f32 %v3082, %v3074
    %v3085 = vadd.f32 %v3083, -0.28449672
    %v3086 = vadd.f32 %v3084, -0.28449672
    %v3087 = vmul.f32 %v3085, %v3059
    %v3088 = vmul.f32 %v3086, %v3074
    %v3089 = vadd.f32 %v3087, 0.2548296
    %v3090 = vadd.f32 %v3088, 0.2548296
    %v3091 = vmul.f32 %v3089, %v3059
    %v3092 = vmul.f32 %v3090, %v3074
    %v3093 = vsub.f32 0.0, %v3039
    %v3094 = vsub.f32 0.0, %v3040
    %v3095 = vmul.f32 %v3093, %v3039
    %v3096 = vmul.f32 %v3094, %v3040
    %v3097 = vmul.f32 %v3095, 1.442695
    %v3098 = vpow.pop %v3097
    %v3099 = vmul.f32 %v3096, 1.442695
    %v3100 = vpow.pop %v3099
    %v3101 = vmul.f32 %v3091, %v3098
    %v3102 = vmul.f32 %v3092, %v3100
    %v3103 = vsub.f32 1.0, %v3101
    %v3104 = vsub.f32 1.0, %v3102
    %v3105 = vmul.f32 %v3037, %v3103
    %v3106 = vmul.f32 %v3038, %v3104
    %v3107 = vadd.f32 %v3105, 1.0
    %v3108 = vadd.f32 %v3106, 1.0
    %v3109 = vmul.f32 %v3031, %v3107
    %v3110 = vmul.f32 %v3032, %v3108
    %s3111 = scalar_lea.vmem %s14, 128
    %v3112 = vld [vmem:[%s3111] sm:$0xff]
    %v3113 = vld [vmem:[%s3111 + $0x8] sm:$0xff]
    %v3114 = vld [vmem:[%s3111 + $0x10] sm:$0xff]
    %v3115 = vld [vmem:[%s3111 + $0x18] sm:$0xff]
    %v3116 = vld [vmem:[%s3111 + $0x20] sm:$0xff]
    %v3117 = vld [vmem:[%s3111 + $0x28] sm:$0xff]
    %v3118 = vld [vmem:[%s3111 + $0x30] sm:$0xff]
    %v3119 = vld [vmem:[%s3111 + $0x38] sm:$0xff]
    %v3120 = vld [vmem:[%s3111 + $0x40] sm:$0xff]
    %v3121 = vld [vmem:[%s3111 + $0x48] sm:$0xff]
    %v3122 = vld [vmem:[%s3111 + $0x50] sm:$0xff]
    %v3123 = vld [vmem:[%s3111 + $0x58] sm:$0xff]
    %v3124 = vld [vmem:[%s3111 + $0x60] sm:$0xff]
    %v3125 = vld [vmem:[%s3111 + $0x68] sm:$0xff]
    %v3126 = vld [vmem:[%s3111 + $0x70] sm:$0xff]
    %v3127 = vld [vmem:[%s3111 + $0x78] sm:$0xff]
    %s3128 = scalar_lea.vmem %s15, 1
    %v3129 = vld [vmem:[%s3128] sm:$0x1]
    %v3131 = vperm.slane %v3129, 0
    %3133 = vmatpush.msra.mxu0 %v3127
    %3134 = vmatpush.msra.mxu0 %v3126
    %3135 = vmatpush.msra.mxu0 %v3125
    %3136 = vmatpush.msra.mxu0 %v3124
    %3137 = vmatpush.msra.mxu0 %v3123
    %3138 = vmatpush.msra.mxu0 %v3122
    %3139 = vmatpush.msra.mxu0 %v3121
    %3140 = vmatpush.msra.mxu0 %v3120
    %3141 = vmatpush.msra.mxu0 %v3119
    %3142 = vmatpush.msra.mxu0 %v3118
    %3143 = vmatpush.msra.mxu0 %v3117
    %3144 = vmatpush.msra.mxu0 %v3116
    %3145 = vmatpush.msra.mxu0 %v3115
    %3146 = vmatpush.msra.mxu0 %v3114
    %3147 = vmatpush.msra.mxu0 %v3113
    %3148 = vmatpush.msra.mxu0 %v3112
    %3149 = vmatmul.f32.gmra.mxu0 %v3109
    %v3150 = vpop.f32.mrf.mxu0
    %v3151 = vadd.f32 %v3131, %v3150
    %3152 = vmatmul.f32.gmra.mxu0 %v3110
    %v3153 = vpop.f32.mrf.mxu0
    %v3154 = vadd.f32 %v3131, %v3153
    %3155 = vdwg.mxu0
    %v3156 = vadd.f32 %v2990, %v3151
    %v3157 = vadd.f32 %v2991, %v3154
    %s3158 = scalar_lea.vmem %s16, 1
    %v3159 = vld [vmem:[%s3158] sm:$0x1]
    %s3160 = scalar_lea.vmem %s17, 1
    %v3161 = vld [vmem:[%s3160] sm:$0x1]
    %v3162 = vsel %vm115, %v3156, 0.0
    %3163 = vadd.xlane.f32.xlu0 %v3162
    %v3164 = vpop.xlane.xlu0 %3163
    %v3165 = vsel %vm115, %v3157, 0.0
    %3166 = vadd.xlane.f32.xlu0 %v3165
    %v3167 = vpop.xlane.xlu0 %3166
    %v3168 = vmul.f32 %v3164, %v1379
    %v3169 = vmul.f32 %v3167, %v1379
    %v3170 = vsub.f32 %v3156, %v3168
    %v3171 = vsub.f32 %v3157, %v3169
    %v3172 = vmul.f32 %v3170, %v3170
    %v3173 = vmul.f32 %v3171, %v3171
    %v3174 = vsel %vm115, %v3172, 0.0
    %3175 = vadd.xlane.f32.xlu0 %v3174
    %v3176 = vpop.xlane.xlu0 %3175
    %v3177 = vsel %vm115, %v3173, 0.0
    %3178 = vadd.xlane.f32.xlu0 %v3177
    %v3179 = vpop.xlane.xlu0 %3178
    %v3180 = vmul.f32 %v3176, %v1379
    %v3181 = vmul.f32 %v3179, %v1379
    %v3182 = vadd.f32 %v3180, 1e-05
    %v3183 = vadd.f32 %v3181, 1e-05
    %v3184 = vrsqrt.pop %v3182
    %v3185 = vmul.f32 %v3184, %v3182
    %v3186 = vmul.f32 %v3185, %v3184
    %v3187 = vmul.f32 0.5, %v3186
    %v3188 = vsub.f32 1.5, %v3187
    %v3189 = vmul.f32 %v3184, %v3188
    %vm3190 = vweird.f32 %v3182
    %vm3191 = vweird.f32 %v3184
    %vm3192 = vmor %vm3190, %vm3191
    %v3193 = vsel %vm3192, %v3184, %v3189
    %v3194 = vrsqrt.pop %v3183
    %v3195 = vmul.f32 %v3194, %v3183
    %v3196 = vmul.f32 %v3195, %v3194
    %v3197 = vmul.f32 0.5, %v3196
    %v3198 = vsub.f32 1.5, %v3197
    %v3199 = vmul.f32 %v3194, %v3198
    %vm3200 = vweird.f32 %v3183
    %vm3201 = vweird.f32 %v3194
    %vm3202 = vmor %vm3200, %vm3201
    %v3203 = vsel %vm3202, %v3194, %v3199
    %v3204 = vmul.f32 %v3170, %v3193
    %v3205 = vmul.f32 %v3171, %v3203
    %v3207 = vperm.slane %v3159, 0
    %v3209 = vmul.f32 %v3204, %v3207
    %v3210 = vmul.f32 %v3205, %v3207
    %v3212 = vperm.slane %v3161, 0
    %v3214 = vadd.f32 %v3209, %v3212
    %v3215 = vadd.f32 %v3210, %v3212
    %v3216 = vld [vmem:[%s18] sm:$0x1]
    %v3217 = vld [vmem:[%s19] sm:$0x1]
    %v3220 = vrot.slane %v3215, 7
    %vm3223 = vcmask 261127
    %v3224 = vsel %vm3223, %v3214, 0.0
    %3225 = vadd.xlane.f32.xlu0 %v3224
    %v3226 = vpop.xlane.xlu0 %3225
    %vm3227 = vcmask 253952
    %v3228 = vsel %vm3227, %v3220, 0.0
    %3229 = vadd.xlane.f32.xlu0 %v3228
    %v3230 = vpop.xlane.xlu0 %3229
    %v3231 = vmul.f32 %v3226, %v1379
    %v3232 = vmul.f32 %v3230, %v1379
    %v3235 = vrot.slane %v3232, 1
    %v3238 = vsub.f32 %v3214, %v3231
    %v3239 = vsub.f32 %v3215, %v3235
    %v3240 = vmul.f32 %v3238, %v3238
    %v3241 = vmul.f32 %v3239, %v3239
    %v3244 = vrot.slane %v3241, 7
    %v3247 = vsel %vm3223, %v3240, 0.0
    %3248 = vadd.xlane.f32.xlu0 %v3247
    %v3249 = vpop.xlane.xlu0 %3248
    %v3250 = vsel %vm3227, %v3244, 0.0
    %3251 = vadd.xlane.f32.xlu0 %v3250
    %v3252 = vpop.xlane.xlu0 %3251
    %v3253 = vmul.f32 %v3249, %v1379
    %v3254 = vmul.f32 %v3252, %v1379
    %v3255 = vadd.f32 %v3253, 1e-05
    %v3256 = vadd.f32 %v3254, 1e-05
    %v3257 = vrsqrt.pop %v3255
    %v3258 = vmul.f32 %v3257, %v3255
    %v3259 = vmul.f32 %v3258, %v3257
    %v3260 = vmul.f32 0.5, %v3259
    %v3261 = vsub.f32 1.5, %v3260
    %v3262 = vmul.f32 %v3257, %v3261
    %vm3263 = vweird.f32 %v3255
    %vm3264 = vweird.f32 %v3257
    %vm3265 = vmor %vm3263, %vm3264
    %v3266 = vsel %vm3265, %v3257, %v3262
    %v3267 = vrsqrt.pop %v3256
    %v3268 = vmul.f32 %v3267, %v3256
    %v3269 = vmul.f32 %v3268, %v3267
    %v3270 = vmul.f32 0.5, %v3269
    %v3271 = vsub.f32 1.5, %v3270
    %v3272 = vmul.f32 %v3267, %v3271
    %vm3273 = vweird.f32 %v3256
    %vm3274 = vweird.f32 %v3267
    %vm3275 = vmor %vm3273, %vm3274
    %v3276 = vsel %vm3275, %v3267, %v3272
    %v3279 = vrot.slane %v3276, 1
    %v3282 = vmul.f32 %v3238, %v3266
    %v3283 = vmul.f32 %v3239, %v3279
    %v3285 = vperm.slane %v3216, 0
    %v3287 = vmul.f32 %v3282, %v3285
    %v3288 = vmul.f32 %v3283, %v3285
    %v3290 = vperm.slane %v3217, 0
    %v3292 = vadd.f32 %v3287, %v3290
    %v3293 = vadd.f32 %v3288, %v3290
    %v3294 = vld [vmem:[%s20] sm:$0xff]
    %v3295 = vld [vmem:[%s20 + $0x8] sm:$0xff]
    %v3296 = vld [vmem:[%s20 + $0x10] sm:$0xff]
    %v3297 = vld [vmem:[%s20 + $0x18] sm:$0xff]
    %v3298 = vld [vmem:[%s21] sm:$0x1]
    %v3300 = vperm.slane %v3298, 0
    %v3304 = vrot.slane %v3292, 7
    %v3305 = vrot.slane %v3293, 6
    %vm3306 = vcmask 1041409
    %v3307 = vsel %vm3306, %v3305, %v3304
    %v3308 = vsel %vm115, %v3307, 0
    %3310 = vmatpush.msra.mxu0 0.0
    %3311 = vmatpush.msra.mxu0 0.0
    %3312 = vmatpush.msra.mxu0 0.0
    %3313 = vmatpush.msra.mxu0 0.0
    %3314 = vmatpush.msra.mxu0 0.0
    %3315 = vmatpush.msra.mxu0 0.0
    %3316 = vmatpush.msra.mxu0 0.0
    %3317 = vmatpush.msra.mxu0 0.0
    %3318 = vmatpush.msra.mxu0 0.0
    %3319 = vmatpush.msra.mxu0 0.0
    %3320 = vmatpush.msra.mxu0 0.0
    %3321 = vmatpush.msra.mxu0 0.0
    %3322 = vmatpush.msra.mxu0 %v3297
    %3323 = vmatpush.msra.mxu0 %v3296
    %3324 = vmatpush.msra.mxu0 %v3295
    %3325 = vmatpush.msra.mxu0 %v3294
    %3326 = vmatmul.f32.gmra.mxu0 %v3308
    %v3327 = vpop.f32.mrf.mxu0
    %v3328 = vadd.f32 %v3300, %v3327
    %3329 = vdwg.mxu0
    %vm3330 = vcmask 123904
    %3331 = vst.msk [vmem:[#allocation2] sm:$0x3] %vm3330, %v3328
    // Predicated region
    $region90: #{transformer_forward.1} parent=1 // pred_check
      _
    $region91: #{transformer_forward.1} parent=1 // pred_check_branch
      %3333 = sbr.rel (0) target = $region93
    $region92: #{transformer_forward.1} parent=1 // pred_region
      %3335 = vsyncadd [#allocation3], 0
      %s3337 = sshll.u32 [#allocation2], 4
      %s3338 = int_to_ptr.vmem [resolvable:$true] %s3337
      %s3339 = sshll.u32 %s22, 4
      %s3340 = int_to_ptr.hbm [resolvable:$true] %s3339
      %3342 = dma.vmem_to_hbm [thread:$0]  %s3338, 32, %s3340, [#allocation3]
    $region93: #{transformer_forward.1} parent=1 // pred_fallthru
      _
    // Predicated region
    $region94: #{transformer_forward.1} parent=1 // pred_check
      _
    $region95: #{transformer_forward.1} parent=1 // pred_check_branch
      %3344 = sbr.rel (0) target = $region97
    $region96: #{transformer_forward.1} parent=1 // pred_region
      %3346 = dma.done [#allocation3], 32
    $region97: #{transformer_forward.1} parent=1 // pred_fallthru
      _
    %3347 = vsyncpa [#allocation3], 1

</llo_original>
